<compile_context>
chip_gen: v7x
topology: tpu7x:2x2x1
jax: 0.10.0
libtpu: 0.0.40
codegen_flags: <defaults>
</compile_context>

<pallas_src>
import functools
import math

import jax
import jax.numpy as jnp
from jax.experimental import pallas as pl
from jax.experimental.pallas import tpu as pltpu

EPS = 1e-5        # PyTorch LayerNorm default eps
NEG_INF = -1e9    # additive mask value (exp underflows to exactly 0 in f32)


def _layernorm(x, w, b):
    mu = jnp.mean(x, axis=-1, keepdims=True)
    xc = x - mu
    var = jnp.mean(xc * xc, axis=-1, keepdims=True)
    return xc * jax.lax.rsqrt(var + EPS) * w + b


def _gelu_exact(x):
    # torch.nn.functional.gelu(approximate='none'): 0.5*x*(1+erf(x/sqrt(2)))
    return 0.5 * x * (1.0 + jax.lax.erf(x * 0.7071067811865475))


# ------------------------------ fused kernel --------------------------------


def encoder_kernel(x_ref, mask_ref, wt_ref, bt_ref, pos_ref,
                   wqkv_ref, bqkv_ref, wo_ref, bo_ref,
                   ln1w_ref, ln1b_ref, w1_ref, b1_ref, w2_ref, b2_ref,
                   ln2w_ref, ln2b_ref, lnfw_ref, lnfb_ref,
                   o_ref, *, n_layers, n_heads, head_dim):
    D = n_heads * head_dim
    scale = 1.0 / math.sqrt(head_dim)
    mask = mask_ref[...]                                        # (BT, BT) additive

    # token embed + positional embed, whole flattened batch (BT rows) at once
    h = jnp.dot(x_ref[...], wt_ref[...], preferred_element_type=jnp.float32)
    h = h + bt_ref[...] + pos_ref[...]

    for l in range(n_layers):                                   # static unroll; weights VMEM-resident
        # ---------------- multi-head self attention (post-norm) ----------------
        # fused QKV projection: one (BT, D) @ (D, 3D) matmul
        qkv = jnp.dot(h, wqkv_ref[l], preferred_element_type=jnp.float32) + bqkv_ref[l]
        acc = jnp.zeros_like(h)
        for hd in range(n_heads):                               # static unroll over heads
            lo = hd * head_dim
            q = qkv[:, lo:lo + head_dim]                        # (BT, dh)
            k = qkv[:, D + lo:D + lo + head_dim]
            v = qkv[:, 2 * D + lo:2 * D + lo + head_dim]
            # scores over the whole flattened batch; block-diag mask keeps
            # sequences independent (off-batch entries -> exp() == 0 exactly)
            s = jnp.einsum('td,sd->ts', q, k,
                           preferred_element_type=jnp.float32) * scale + mask
            s = s - jnp.max(s, axis=-1, keepdims=True)
            p = jnp.exp(s)
            p = p * pl.reciprocal(jnp.sum(p, axis=-1, keepdims=True), approx=False)
            ctx = jnp.dot(p, v, preferred_element_type=jnp.float32)          # (BT, dh)
            # out_proj on per-head slices, summed == out_proj(concat(heads))
            acc = acc + jnp.dot(ctx, wo_ref[l, hd], preferred_element_type=jnp.float32)
        attn = acc + bo_ref[l]
        h = _layernorm(h + attn, ln1w_ref[l], ln1b_ref[l])

        # ---------------- feed-forward (lane-dense 4D intermediate) ------------
        ff = jnp.dot(h, w1_ref[l], preferred_element_type=jnp.float32) + b1_ref[l]
        ff = _gelu_exact(ff)
        ff = jnp.dot(ff, w2_ref[l], preferred_element_type=jnp.float32) + b2_ref[l]
        h = _layernorm(h + ff, ln2w_ref[l], ln2b_ref[l])

    o_ref[...] = _layernorm(h, lnfw_ref[...], lnfb_ref[...])


# -------------------------------- wrapper ------------------------------------


def encoder_forward(x, params):
    B, T, Fin = x.shape
    D = params['wt_t'].shape[1]
    BT = B * T
    st = params['stacked']

    x2d = x.reshape(BT, Fin)
    pos2d = jnp.tile(params['pos'], (B, 1))                     # (BT, D)
    bid = jnp.arange(BT) // T
    mask = jnp.where(bid[:, None] == bid[None, :], 0.0, NEG_INF).astype(jnp.float32)

    vmem = pl.BlockSpec(memory_space=pltpu.MemorySpace.VMEM)
    args = (x2d, mask, params['wt_t'], params['bt_row'], pos2d,
            st['wqkv_t'], st['bqkv'], st['wo_t'], st['bo'],
            st['ln1w'], st['ln1b'], st['w1_t'], st['b1'],
            st['w2_t'], st['b2'], st['ln2w'], st['ln2b'],
            params['lnfw'], params['lnfb'])

    out2d = pl.pallas_call(
        functools.partial(encoder_kernel,
                          n_layers=params['n_layers'],
                          n_heads=params['n_heads'],
                          head_dim=params['head_dim']),
        out_shape=jax.ShapeDtypeStruct((BT, D), jnp.float32),
        in_specs=[vmem] * len(args),
        out_specs=vmem,
    )(*args)
    return out2d.reshape(B, T, D)


# ------------------------- deterministic parameters --------------------------


def xavier_uniform(key, shape, gain=1.0):
    fan_out, fan_in = shape  # torch Linear weight layout: (out_features, in_features)
    limit = gain * math.sqrt(6.0 / (fan_in + fan_out))
    return jax.random.uniform(key, shape, jnp.float32, -limit, limit)


def init_encoder_params(key, v_net_feature_dim, embedding_dim, n_heads,
                        n_layers, max_seq_len, seq_len):
    D, H = embedding_dim, n_heads
    dh = D // H
    F = 4 * D
    k_tok, k_pos, *k_layers = jax.random.split(key, 2 + n_layers)

    wt = xavier_uniform(k_tok, (D, v_net_feature_dim), gain=1.0)   # token_embed.weight
    bt = jnp.zeros((D,), jnp.float32)                              # token_embed.bias
    pos_table = jax.random.normal(k_pos, (max_seq_len, D), jnp.float32)  # nn.Embedding ~ N(0,1)

    layers = []
    for kl in k_layers:
        k1, k2, k3, k4 = jax.random.split(kl, 4)
        in_proj_w = xavier_uniform(k1, (3 * D, D), gain=1.0)       # MHA in_proj_weight
        in_proj_b = jnp.zeros((3 * D,), jnp.float32)
        out_proj_w = xavier_uniform(k2, (D, D), gain=1.0)
        out_proj_b = jnp.zeros((D,), jnp.float32)
        lin1_w = xavier_uniform(k3, (F, D), gain=1.43)             # per-module init
        lin1_b = jnp.zeros((F,), jnp.float32)
        lin2_w = xavier_uniform(k4, (D, F), gain=1.0)
        lin2_b = jnp.zeros((D,), jnp.float32)
        layers.append(dict(
            in_proj_w=in_proj_w, in_proj_b=in_proj_b,
            out_proj_w=out_proj_w, out_proj_b=out_proj_b,
            lin1_w=lin1_w, lin1_b=lin1_b, lin2_w=lin2_w, lin2_b=lin2_b,
            ln1w=jnp.ones((1, D), jnp.float32), ln1b=jnp.zeros((1, D), jnp.float32),
            ln2w=jnp.ones((1, D), jnp.float32), ln2b=jnp.zeros((1, D), jnp.float32),
        ))

    # kernel-friendly stacked layouts (leading L axis, pre-transposed)
    stacked = dict(
        wqkv_t=jnp.stack([lp['in_proj_w'].T for lp in layers]),                    # (L, D, 3D)
        bqkv=jnp.stack([lp['in_proj_b'].reshape(1, 3 * D) for lp in layers]),      # (L, 1, 3D)
        wo_t=jnp.stack([lp['out_proj_w'].T.reshape(H, dh, D) for lp in layers]),   # (L, H, dh, D)
        bo=jnp.stack([lp['out_proj_b'].reshape(1, D) for lp in layers]),           # (L, 1, D)
        ln1w=jnp.stack([lp['ln1w'] for lp in layers]),                             # (L, 1, D)
        ln1b=jnp.stack([lp['ln1b'] for lp in layers]),
        w1_t=jnp.stack([lp['lin1_w'].T for lp in layers]),                         # (L, D, F)
        b1=jnp.stack([lp['lin1_b'].reshape(1, F) for lp in layers]),               # (L, 1, F)
        w2_t=jnp.stack([lp['lin2_w'].T for lp in layers]),                         # (L, F, D)
        b2=jnp.stack([lp['lin2_b'].reshape(1, D) for lp in layers]),               # (L, 1, D)
        ln2w=jnp.stack([lp['ln2w'] for lp in layers]),
        ln2b=jnp.stack([lp['ln2b'] for lp in layers]),
    )

    return dict(
        n_heads=H, head_dim=dh, n_layers=n_layers,
        wt=wt, wt_t=wt.T, bt=bt, bt_row=bt.reshape(1, D),
        pos_table=pos_table, pos=pos_table[:seq_len],
        lnfw=jnp.ones((1, D), jnp.float32), lnfb=jnp.zeros((1, D), jnp.float32),
        layers=layers, stacked=stacked,
    )


# ---------------------------- pure-JAX reference -----------------------------


def ref_forward(x, params):
    H, dh = params['n_heads'], params['head_dim']
    B, T, _ = x.shape
    D = params['wt'].shape[0]
    h = x @ params['wt'].T + params['bt'] + params['pos']
    for lp in params['layers']:
        qkv = h @ lp['in_proj_w'].T + lp['in_proj_b']
        q, k, v = jnp.split(qkv, 3, axis=-1)
        sh = lambda t: t.reshape(B, T, H, dh).transpose(0, 2, 1, 3)
        q, k, v = sh(q), sh(k), sh(v)
        s = jnp.einsum('bhtd,bhsd->bhts', q, k) / math.sqrt(dh)
        p = jax.nn.softmax(s, axis=-1)
        ctx = jnp.einsum('bhts,bhsd->bhtd', p, v).transpose(0, 2, 1, 3).reshape(B, T, D)
        attn = ctx @ lp['out_proj_w'].T + lp['out_proj_b']
        h = _layernorm(h + attn, lp['ln1w'], lp['ln1b'])
        ff = jax.nn.gelu(h @ lp['lin1_w'].T + lp['lin1_b'], approximate=False)
        ff = ff @ lp['lin2_w'].T + lp['lin2_b']
        h = _layernorm(h + ff, lp['ln2w'], lp['ln2b'])
    return _layernorm(h, params['lnfw'], params['lnfb'])


if __name__ == "__main__":
    key = jax.random.PRNGKey(0)
    # small shapes consistent with the module's forward (B, T, feature_dim)
    B, T = 2, 8
    v_net_feature_dim = 8
    embedding_dim, n_heads, n_layers, max_seq_len = 32, 4, 2, 15

    k_param, k_x = jax.random.split(key)
    params = init_encoder_params(k_param, v_net_feature_dim, embedding_dim,
                                 n_heads, n_layers, max_seq_len, T)
    x = jax.random.normal(k_x, (B, T, v_net_feature_dim), jnp.float32)

    out = jax.block_until_ready(encoder_forward(x, params))
    ref = jax.block_until_ready(ref_forward(x, params))

    assert out.shape == (B, T, embedding_dim)
    max_err = float(jnp.max(jnp.abs(out - ref)))
    assert jnp.allclose(out, ref, atol=1e-3, rtol=1e-3), f"max_err={max_err}"
    print("KERNEL_OK")
</pallas_src>

<mosaic_0001>
module attributes {stable_mosaic.version = 11 : i64} {
  func.func @encoder_kernel(%arg0: memref<16x8xf32, #tpu.memory_space<vmem>>, %arg1: memref<16x16xf32, #tpu.memory_space<vmem>>, %arg2: memref<8x32xf32, #tpu.memory_space<vmem>>, %arg3: memref<1x32xf32, #tpu.memory_space<vmem>>, %arg4: memref<16x32xf32, #tpu.memory_space<vmem>>, %arg5: memref<2x32x96xf32, #tpu.memory_space<vmem>>, %arg6: memref<2x1x96xf32, #tpu.memory_space<vmem>>, %arg7: memref<2x4x8x32xf32, #tpu.memory_space<vmem>>, %arg8: memref<2x1x32xf32, #tpu.memory_space<vmem>>, %arg9: memref<2x1x32xf32, #tpu.memory_space<vmem>>, %arg10: memref<2x1x32xf32, #tpu.memory_space<vmem>>, %arg11: memref<2x32x128xf32, #tpu.memory_space<vmem>>, %arg12: memref<2x1x128xf32, #tpu.memory_space<vmem>>, %arg13: memref<2x128x32xf32, #tpu.memory_space<vmem>>, %arg14: memref<2x1x32xf32, #tpu.memory_space<vmem>>, %arg15: memref<2x1x32xf32, #tpu.memory_space<vmem>>, %arg16: memref<2x1x32xf32, #tpu.memory_space<vmem>>, %arg17: memref<1x32xf32, #tpu.memory_space<vmem>>, %arg18: memref<1x32xf32, #tpu.memory_space<vmem>>, %arg19: memref<16x32xf32, #tpu.memory_space<vmem>>) attributes {dimension_semantics = [], scalar_prefetch = 0 : i64, scratch_operands = 0 : i64, tpu.core_type = #tpu.core_type<tc>} {
    %c0 = arith.constant 0 : index
    %c0_0 = arith.constant 0 : index
    %0 = vector.load %arg1[%c0, %c0_0] : memref<16x16xf32, #tpu.memory_space<vmem>>, vector<16x16xf32>
    %c0_1 = arith.constant 0 : index
    %c0_2 = arith.constant 0 : index
    %1 = vector.load %arg0[%c0_1, %c0_2] : memref<16x8xf32, #tpu.memory_space<vmem>>, vector<16x8xf32>
    %c0_3 = arith.constant 0 : index
    %c0_4 = arith.constant 0 : index
    %2 = vector.load %arg2[%c0_3, %c0_4] : memref<8x32xf32, #tpu.memory_space<vmem>>, vector<8x32xf32>
    %cst = arith.constant dense<0.000000e+00> : vector<16x32xf32>
    %3 = tpu.matmul %1, %2, %cst {dimension_numbers = #tpu.dot_dimension_numbers<[1], [0], [0], [1], [0, 0, 1, 1], [], []>} : vector<16x8xf32>, vector<8x32xf32>, vector<16x32xf32> -> vector<16x32xf32>
    %c0_5 = arith.constant 0 : index
    %c0_6 = arith.constant 0 : index
    %4 = vector.load %arg3[%c0_5, %c0_6] : memref<1x32xf32, #tpu.memory_space<vmem>>, vector<1x32xf32>
    %5 = vector.broadcast %4 : vector<1x32xf32> to vector<16x32xf32>
    %6 = arith.addf %3, %5 : vector<16x32xf32>
    %c0_7 = arith.constant 0 : index
    %c0_8 = arith.constant 0 : index
    %7 = vector.load %arg4[%c0_7, %c0_8] : memref<16x32xf32, #tpu.memory_space<vmem>>, vector<16x32xf32>
    %8 = arith.addf %6, %7 : vector<16x32xf32>
    %c0_9 = arith.constant 0 : index
    %c0_10 = arith.constant 0 : index
    %c0_11 = arith.constant 0 : index
    %9 = vector.load %arg5[%c0_9, %c0_10, %c0_11] : memref<2x32x96xf32, #tpu.memory_space<vmem>>, vector<1x32x96xf32>
    %10 = vector.shape_cast %9 : vector<1x32x96xf32> to vector<32x96xf32>
    %cst_12 = arith.constant dense<0.000000e+00> : vector<16x96xf32>
    %11 = tpu.matmul %8, %10, %cst_12 {dimension_numbers = #tpu.dot_dimension_numbers<[1], [0], [0], [1], [0, 0, 1, 1], [], []>} : vector<16x32xf32>, vector<32x96xf32>, vector<16x96xf32> -> vector<16x96xf32>
    %c0_13 = arith.constant 0 : index
    %c0_14 = arith.constant 0 : index
    %c0_15 = arith.constant 0 : index
    %12 = vector.load %arg6[%c0_13, %c0_14, %c0_15] : memref<2x1x96xf32, #tpu.memory_space<vmem>>, vector<1x1x96xf32>
    %13 = vector.shape_cast %12 : vector<1x1x96xf32> to vector<1x96xf32>
    %14 = vector.broadcast %13 : vector<1x96xf32> to vector<16x96xf32>
    %15 = arith.addf %11, %14 : vector<16x96xf32>
    %cst_16 = arith.constant 0.000000e+00 : f32
    %16 = vector.broadcast %cst_16 : f32 to vector<16x32xf32>
    %17 = vector.extract_strided_slice %15 {offsets = [0, 0], sizes = [16, 8], strides = [1, 1]} : vector<16x96xf32> to vector<16x8xf32>
    %18 = vector.extract_strided_slice %15 {offsets = [0, 32], sizes = [16, 8], strides = [1, 1]} : vector<16x96xf32> to vector<16x8xf32>
    %19 = vector.extract_strided_slice %15 {offsets = [0, 64], sizes = [16, 8], strides = [1, 1]} : vector<16x96xf32> to vector<16x8xf32>
    "tpu.trace_start"() <{level = 10 : i32, message = "td,sd->ts"}> : () -> ()
    %cst_17 = arith.constant dense<0.000000e+00> : vector<16x16xf32>
    %20 = tpu.matmul %17, %18, %cst_17 {dimension_numbers = #tpu.dot_dimension_numbers<[1], [1], [0], [0], [0, 0, 1, 0], [], []>} : vector<16x8xf32>, vector<16x8xf32>, vector<16x16xf32> -> vector<16x16xf32>
    "tpu.trace_stop"() : () -> ()
    %cst_18 = arith.constant 0.353553385 : f32
    %21 = vector.broadcast %cst_18 : f32 to vector<16x16xf32>
    %22 = arith.mulf %20, %21 : vector<16x16xf32>
    %23 = arith.addf %22, %0 : vector<16x16xf32>
    %cst_19 = arith.constant dense<0xFF800000> : vector<16xf32>
    %24 = vector.multi_reduction <maximumf>, %23, %cst_19 [1] : vector<16x16xf32> to vector<16xf32>
    %25 = vector.shape_cast %24 : vector<16xf32> to vector<16x1xf32>
    %26 = vector.broadcast %25 : vector<16x1xf32> to vector<16x16xf32>
    %27 = arith.subf %23, %26 : vector<16x16xf32>
    %28 = math.exp %27 : vector<16x16xf32>
    %cst_20 = arith.constant dense<0.000000e+00> : vector<16xf32>
    %29 = vector.multi_reduction <add>, %28, %cst_20 [1] : vector<16x16xf32> to vector<16xf32>
    %30 = vector.shape_cast %29 : vector<16xf32> to vector<16x1xf32>
    %31 = tpu.reciprocal %30 : vector<16x1xf32> -> vector<16x1xf32>
    %32 = vector.broadcast %31 : vector<16x1xf32> to vector<16x16xf32>
    %33 = arith.mulf %28, %32 : vector<16x16xf32>
    %cst_21 = arith.constant dense<0.000000e+00> : vector<16x8xf32>
    %34 = tpu.matmul %33, %19, %cst_21 {dimension_numbers = #tpu.dot_dimension_numbers<[1], [0], [0], [1], [0, 0, 1, 1], [], []>} : vector<16x16xf32>, vector<16x8xf32>, vector<16x8xf32> -> vector<16x8xf32>
    %c0_22 = arith.constant 0 : index
    %c0_23 = arith.constant 0 : index
    %c0_24 = arith.constant 0 : index
    %c0_25 = arith.constant 0 : index
    %35 = vector.load %arg7[%c0_22, %c0_23, %c0_24, %c0_25] : memref<2x4x8x32xf32, #tpu.memory_space<vmem>>, vector<1x1x8x32xf32>
    %36 = vector.shape_cast %35 : vector<1x1x8x32xf32> to vector<8x32xf32>
    %cst_26 = arith.constant dense<0.000000e+00> : vector<16x32xf32>
    %37 = tpu.matmul %34, %36, %cst_26 {dimension_numbers = #tpu.dot_dimension_numbers<[1], [0], [0], [1], [0, 0, 1, 1], [], []>} : vector<16x8xf32>, vector<8x32xf32>, vector<16x32xf32> -> vector<16x32xf32>
    %38 = arith.addf %16, %37 : vector<16x32xf32>
    %39 = vector.extract_strided_slice %15 {offsets = [0, 8], sizes = [16, 8], strides = [1, 1]} : vector<16x96xf32> to vector<16x8xf32>
    %40 = vector.extract_strided_slice %15 {offsets = [0, 40], sizes = [16, 8], strides = [1, 1]} : vector<16x96xf32> to vector<16x8xf32>
    %41 = vector.extract_strided_slice %15 {offsets = [0, 72], sizes = [16, 8], strides = [1, 1]} : vector<16x96xf32> to vector<16x8xf32>
    "tpu.trace_start"() <{level = 10 : i32, message = "td,sd->ts"}> : () -> ()
    %cst_27 = arith.constant dense<0.000000e+00> : vector<16x16xf32>
    %42 = tpu.matmul %39, %40, %cst_27 {dimension_numbers = #tpu.dot_dimension_numbers<[1], [1], [0], [0], [0, 0, 1, 0], [], []>} : vector<16x8xf32>, vector<16x8xf32>, vector<16x16xf32> -> vector<16x16xf32>
    "tpu.trace_stop"() : () -> ()
    %cst_28 = arith.constant 0.353553385 : f32
    %43 = vector.broadcast %cst_28 : f32 to vector<16x16xf32>
    %44 = arith.mulf %42, %43 : vector<16x16xf32>
    %45 = arith.addf %44, %0 : vector<16x16xf32>
    %cst_29 = arith.constant dense<0xFF800000> : vector<16xf32>
    %46 = vector.multi_reduction <maximumf>, %45, %cst_29 [1] : vector<16x16xf32> to vector<16xf32>
    %47 = vector.shape_cast %46 : vector<16xf32> to vector<16x1xf32>
    %48 = vector.broadcast %47 : vector<16x1xf32> to vector<16x16xf32>
    %49 = arith.subf %45, %48 : vector<16x16xf32>
    %50 = math.exp %49 : vector<16x16xf32>
    %cst_30 = arith.constant dense<0.000000e+00> : vector<16xf32>
    %51 = vector.multi_reduction <add>, %50, %cst_30 [1] : vector<16x16xf32> to vector<16xf32>
    %52 = vector.shape_cast %51 : vector<16xf32> to vector<16x1xf32>
    %53 = tpu.reciprocal %52 : vector<16x1xf32> -> vector<16x1xf32>
    %54 = vector.broadcast %53 : vector<16x1xf32> to vector<16x16xf32>
    %55 = arith.mulf %50, %54 : vector<16x16xf32>
    %cst_31 = arith.constant dense<0.000000e+00> : vector<16x8xf32>
    %56 = tpu.matmul %55, %41, %cst_31 {dimension_numbers = #tpu.dot_dimension_numbers<[1], [0], [0], [1], [0, 0, 1, 1], [], []>} : vector<16x16xf32>, vector<16x8xf32>, vector<16x8xf32> -> vector<16x8xf32>
    %c0_32 = arith.constant 0 : index
    %c1 = arith.constant 1 : index
    %c0_33 = arith.constant 0 : index
    %c0_34 = arith.constant 0 : index
    %57 = vector.load %arg7[%c0_32, %c1, %c0_33, %c0_34] : memref<2x4x8x32xf32, #tpu.memory_space<vmem>>, vector<1x1x8x32xf32>
    %58 = vector.shape_cast %57 : vector<1x1x8x32xf32> to vector<8x32xf32>
    %cst_35 = arith.constant dense<0.000000e+00> : vector<16x32xf32>
    %59 = tpu.matmul %56, %58, %cst_35 {dimension_numbers = #tpu.dot_dimension_numbers<[1], [0], [0], [1], [0, 0, 1, 1], [], []>} : vector<16x8xf32>, vector<8x32xf32>, vector<16x32xf32> -> vector<16x32xf32>
    %60 = arith.addf %38, %59 : vector<16x32xf32>
    %61 = vector.extract_strided_slice %15 {offsets = [0, 16], sizes = [16, 8], strides = [1, 1]} : vector<16x96xf32> to vector<16x8xf32>
    %62 = vector.extract_strided_slice %15 {offsets = [0, 48], sizes = [16, 8], strides = [1, 1]} : vector<16x96xf32> to vector<16x8xf32>
    %63 = vector.extract_strided_slice %15 {offsets = [0, 80], sizes = [16, 8], strides = [1, 1]} : vector<16x96xf32> to vector<16x8xf32>
    "tpu.trace_start"() <{level = 10 : i32, message = "td,sd->ts"}> : () -> ()
    %cst_36 = arith.constant dense<0.000000e+00> : vector<16x16xf32>
    %64 = tpu.matmul %61, %62, %cst_36 {dimension_numbers = #tpu.dot_dimension_numbers<[1], [1], [0], [0], [0, 0, 1, 0], [], []>} : vector<16x8xf32>, vector<16x8xf32>, vector<16x16xf32> -> vector<16x16xf32>
    "tpu.trace_stop"() : () -> ()
    %cst_37 = arith.constant 0.353553385 : f32
    %65 = vector.broadcast %cst_37 : f32 to vector<16x16xf32>
    %66 = arith.mulf %64, %65 : vector<16x16xf32>
    %67 = arith.addf %66, %0 : vector<16x16xf32>
    %cst_38 = arith.constant dense<0xFF800000> : vector<16xf32>
    %68 = vector.multi_reduction <maximumf>, %67, %cst_38 [1] : vector<16x16xf32> to vector<16xf32>
    %69 = vector.shape_cast %68 : vector<16xf32> to vector<16x1xf32>
    %70 = vector.broadcast %69 : vector<16x1xf32> to vector<16x16xf32>
    %71 = arith.subf %67, %70 : vector<16x16xf32>
    %72 = math.exp %71 : vector<16x16xf32>
    %cst_39 = arith.constant dense<0.000000e+00> : vector<16xf32>
    %73 = vector.multi_reduction <add>, %72, %cst_39 [1] : vector<16x16xf32> to vector<16xf32>
    %74 = vector.shape_cast %73 : vector<16xf32> to vector<16x1xf32>
    %75 = tpu.reciprocal %74 : vector<16x1xf32> -> vector<16x1xf32>
    %76 = vector.broadcast %75 : vector<16x1xf32> to vector<16x16xf32>
    %77 = arith.mulf %72, %76 : vector<16x16xf32>
    %cst_40 = arith.constant dense<0.000000e+00> : vector<16x8xf32>
    %78 = tpu.matmul %77, %63, %cst_40 {dimension_numbers = #tpu.dot_dimension_numbers<[1], [0], [0], [1], [0, 0, 1, 1], [], []>} : vector<16x16xf32>, vector<16x8xf32>, vector<16x8xf32> -> vector<16x8xf32>
    %c0_41 = arith.constant 0 : index
    %c2 = arith.constant 2 : index
    %c0_42 = arith.constant 0 : index
    %c0_43 = arith.constant 0 : index
    %79 = vector.load %arg7[%c0_41, %c2, %c0_42, %c0_43] : memref<2x4x8x32xf32, #tpu.memory_space<vmem>>, vector<1x1x8x32xf32>
    %80 = vector.shape_cast %79 : vector<1x1x8x32xf32> to vector<8x32xf32>
    %cst_44 = arith.constant dense<0.000000e+00> : vector<16x32xf32>
    %81 = tpu.matmul %78, %80, %cst_44 {dimension_numbers = #tpu.dot_dimension_numbers<[1], [0], [0], [1], [0, 0, 1, 1], [], []>} : vector<16x8xf32>, vector<8x32xf32>, vector<16x32xf32> -> vector<16x32xf32>
    %82 = arith.addf %60, %81 : vector<16x32xf32>
    %83 = vector.extract_strided_slice %15 {offsets = [0, 24], sizes = [16, 8], strides = [1, 1]} : vector<16x96xf32> to vector<16x8xf32>
    %84 = vector.extract_strided_slice %15 {offsets = [0, 56], sizes = [16, 8], strides = [1, 1]} : vector<16x96xf32> to vector<16x8xf32>
    %85 = vector.extract_strided_slice %15 {offsets = [0, 88], sizes = [16, 8], strides = [1, 1]} : vector<16x96xf32> to vector<16x8xf32>
    "tpu.trace_start"() <{level = 10 : i32, message = "td,sd->ts"}> : () -> ()
    %cst_45 = arith.constant dense<0.000000e+00> : vector<16x16xf32>
    %86 = tpu.matmul %83, %84, %cst_45 {dimension_numbers = #tpu.dot_dimension_numbers<[1], [1], [0], [0], [0, 0, 1, 0], [], []>} : vector<16x8xf32>, vector<16x8xf32>, vector<16x16xf32> -> vector<16x16xf32>
    "tpu.trace_stop"() : () -> ()
    %cst_46 = arith.constant 0.353553385 : f32
    %87 = vector.broadcast %cst_46 : f32 to vector<16x16xf32>
    %88 = arith.mulf %86, %87 : vector<16x16xf32>
    %89 = arith.addf %88, %0 : vector<16x16xf32>
    %cst_47 = arith.constant dense<0xFF800000> : vector<16xf32>
    %90 = vector.multi_reduction <maximumf>, %89, %cst_47 [1] : vector<16x16xf32> to vector<16xf32>
    %91 = vector.shape_cast %90 : vector<16xf32> to vector<16x1xf32>
    %92 = vector.broadcast %91 : vector<16x1xf32> to vector<16x16xf32>
    %93 = arith.subf %89, %92 : vector<16x16xf32>
    %94 = math.exp %93 : vector<16x16xf32>
    %cst_48 = arith.constant dense<0.000000e+00> : vector<16xf32>
    %95 = vector.multi_reduction <add>, %94, %cst_48 [1] : vector<16x16xf32> to vector<16xf32>
    %96 = vector.shape_cast %95 : vector<16xf32> to vector<16x1xf32>
    %97 = tpu.reciprocal %96 : vector<16x1xf32> -> vector<16x1xf32>
    %98 = vector.broadcast %97 : vector<16x1xf32> to vector<16x16xf32>
    %99 = arith.mulf %94, %98 : vector<16x16xf32>
    %cst_49 = arith.constant dense<0.000000e+00> : vector<16x8xf32>
    %100 = tpu.matmul %99, %85, %cst_49 {dimension_numbers = #tpu.dot_dimension_numbers<[1], [0], [0], [1], [0, 0, 1, 1], [], []>} : vector<16x16xf32>, vector<16x8xf32>, vector<16x8xf32> -> vector<16x8xf32>
    %c0_50 = arith.constant 0 : index
    %c3 = arith.constant 3 : index
    %c0_51 = arith.constant 0 : index
    %c0_52 = arith.constant 0 : index
    %101 = vector.load %arg7[%c0_50, %c3, %c0_51, %c0_52] : memref<2x4x8x32xf32, #tpu.memory_space<vmem>>, vector<1x1x8x32xf32>
    %102 = vector.shape_cast %101 : vector<1x1x8x32xf32> to vector<8x32xf32>
    %cst_53 = arith.constant dense<0.000000e+00> : vector<16x32xf32>
    %103 = tpu.matmul %100, %102, %cst_53 {dimension_numbers = #tpu.dot_dimension_numbers<[1], [0], [0], [1], [0, 0, 1, 1], [], []>} : vector<16x8xf32>, vector<8x32xf32>, vector<16x32xf32> -> vector<16x32xf32>
    %104 = arith.addf %82, %103 : vector<16x32xf32>
    %c0_54 = arith.constant 0 : index
    %c0_55 = arith.constant 0 : index
    %c0_56 = arith.constant 0 : index
    %105 = vector.load %arg8[%c0_54, %c0_55, %c0_56] : memref<2x1x32xf32, #tpu.memory_space<vmem>>, vector<1x1x32xf32>
    %106 = vector.shape_cast %105 : vector<1x1x32xf32> to vector<1x32xf32>
    %107 = vector.broadcast %106 : vector<1x32xf32> to vector<16x32xf32>
    %108 = arith.addf %104, %107 : vector<16x32xf32>
    %109 = arith.addf %8, %108 : vector<16x32xf32>
    %c0_57 = arith.constant 0 : index
    %c0_58 = arith.constant 0 : index
    %c0_59 = arith.constant 0 : index
    %110 = vector.load %arg9[%c0_57, %c0_58, %c0_59] : memref<2x1x32xf32, #tpu.memory_space<vmem>>, vector<1x1x32xf32>
    %111 = vector.shape_cast %110 : vector<1x1x32xf32> to vector<1x32xf32>
    %c0_60 = arith.constant 0 : index
    %c0_61 = arith.constant 0 : index
    %c0_62 = arith.constant 0 : index
    %112 = vector.load %arg10[%c0_60, %c0_61, %c0_62] : memref<2x1x32xf32, #tpu.memory_space<vmem>>, vector<1x1x32xf32>
    %113 = vector.shape_cast %112 : vector<1x1x32xf32> to vector<1x32xf32>
    %cst_63 = arith.constant dense<0.000000e+00> : vector<16xf32>
    %114 = vector.multi_reduction <add>, %109, %cst_63 [1] : vector<16x32xf32> to vector<16xf32>
    %115 = vector.shape_cast %114 : vector<16xf32> to vector<16x1xf32>
    %cst_64 = arith.constant 3.200000e+01 : f32
    %116 = vector.broadcast %cst_64 : f32 to vector<16x1xf32>
    %117 = arith.divf %115, %116 : vector<16x1xf32>
    %118 = vector.broadcast %117 : vector<16x1xf32> to vector<16x32xf32>
    %119 = arith.subf %109, %118 : vector<16x32xf32>
    %120 = arith.mulf %119, %119 : vector<16x32xf32>
    %cst_65 = arith.constant dense<0.000000e+00> : vector<16xf32>
    %121 = vector.multi_reduction <add>, %120, %cst_65 [1] : vector<16x32xf32> to vector<16xf32>
    %122 = vector.shape_cast %121 : vector<16xf32> to vector<16x1xf32>
    %cst_66 = arith.constant 3.200000e+01 : f32
    %123 = vector.broadcast %cst_66 : f32 to vector<16x1xf32>
    %124 = arith.divf %122, %123 : vector<16x1xf32>
    %cst_67 = arith.constant 9.99999974E-6 : f32
    %125 = vector.broadcast %cst_67 : f32 to vector<16x1xf32>
    %126 = arith.addf %124, %125 : vector<16x1xf32>
    %127 = math.rsqrt %126 : vector<16x1xf32>
    %128 = vector.broadcast %127 : vector<16x1xf32> to vector<16x32xf32>
    %129 = arith.mulf %119, %128 : vector<16x32xf32>
    %130 = vector.broadcast %111 : vector<1x32xf32> to vector<16x32xf32>
    %131 = arith.mulf %129, %130 : vector<16x32xf32>
    %132 = vector.broadcast %113 : vector<1x32xf32> to vector<16x32xf32>
    %133 = arith.addf %131, %132 : vector<16x32xf32>
    %c0_68 = arith.constant 0 : index
    %c0_69 = arith.constant 0 : index
    %c0_70 = arith.constant 0 : index
    %134 = vector.load %arg11[%c0_68, %c0_69, %c0_70] : memref<2x32x128xf32, #tpu.memory_space<vmem>>, vector<1x32x128xf32>
    %135 = vector.shape_cast %134 : vector<1x32x128xf32> to vector<32x128xf32>
    %cst_71 = arith.constant dense<0.000000e+00> : vector<16x128xf32>
    %136 = tpu.matmul %133, %135, %cst_71 {dimension_numbers = #tpu.dot_dimension_numbers<[1], [0], [0], [1], [0, 0, 1, 1], [], []>} : vector<16x32xf32>, vector<32x128xf32>, vector<16x128xf32> -> vector<16x128xf32>
    %c0_72 = arith.constant 0 : index
    %c0_73 = arith.constant 0 : index
    %c0_74 = arith.constant 0 : index
    %137 = vector.load %arg12[%c0_72, %c0_73, %c0_74] : memref<2x1x128xf32, #tpu.memory_space<vmem>>, vector<1x1x128xf32>
    %138 = vector.shape_cast %137 : vector<1x1x128xf32> to vector<1x128xf32>
    %139 = vector.broadcast %138 : vector<1x128xf32> to vector<16x128xf32>
    %140 = arith.addf %136, %139 : vector<16x128xf32>
    %cst_75 = arith.constant 5.000000e-01 : f32
    %141 = vector.broadcast %cst_75 : f32 to vector<16x128xf32>
    %142 = arith.mulf %141, %140 : vector<16x128xf32>
    %cst_76 = arith.constant 0.707106769 : f32
    %143 = vector.broadcast %cst_76 : f32 to vector<16x128xf32>
    %144 = arith.mulf %140, %143 : vector<16x128xf32>
    %145 = math.erf %144 : vector<16x128xf32>
    %cst_77 = arith.constant 1.000000e+00 : f32
    %146 = vector.broadcast %cst_77 : f32 to vector<16x128xf32>
    %147 = arith.addf %146, %145 : vector<16x128xf32>
    %148 = arith.mulf %142, %147 : vector<16x128xf32>
    %c0_78 = arith.constant 0 : index
    %c0_79 = arith.constant 0 : index
    %c0_80 = arith.constant 0 : index
    %149 = vector.load %arg13[%c0_78, %c0_79, %c0_80] : memref<2x128x32xf32, #tpu.memory_space<vmem>>, vector<1x128x32xf32>
    %150 = vector.shape_cast %149 : vector<1x128x32xf32> to vector<128x32xf32>
    %cst_81 = arith.constant dense<0.000000e+00> : vector<16x32xf32>
    %151 = tpu.matmul %148, %150, %cst_81 {dimension_numbers = #tpu.dot_dimension_numbers<[1], [0], [0], [1], [0, 0, 1, 1], [], []>} : vector<16x128xf32>, vector<128x32xf32>, vector<16x32xf32> -> vector<16x32xf32>
    %c0_82 = arith.constant 0 : index
    %c0_83 = arith.constant 0 : index
    %c0_84 = arith.constant 0 : index
    %152 = vector.load %arg14[%c0_82, %c0_83, %c0_84] : memref<2x1x32xf32, #tpu.memory_space<vmem>>, vector<1x1x32xf32>
    %153 = vector.shape_cast %152 : vector<1x1x32xf32> to vector<1x32xf32>
    %154 = vector.broadcast %153 : vector<1x32xf32> to vector<16x32xf32>
    %155 = arith.addf %151, %154 : vector<16x32xf32>
    %156 = arith.addf %133, %155 : vector<16x32xf32>
    %c0_85 = arith.constant 0 : index
    %c0_86 = arith.constant 0 : index
    %c0_87 = arith.constant 0 : index
    %157 = vector.load %arg15[%c0_85, %c0_86, %c0_87] : memref<2x1x32xf32, #tpu.memory_space<vmem>>, vector<1x1x32xf32>
    %158 = vector.shape_cast %157 : vector<1x1x32xf32> to vector<1x32xf32>
    %c0_88 = arith.constant 0 : index
    %c0_89 = arith.constant 0 : index
    %c0_90 = arith.constant 0 : index
    %159 = vector.load %arg16[%c0_88, %c0_89, %c0_90] : memref<2x1x32xf32, #tpu.memory_space<vmem>>, vector<1x1x32xf32>
    %160 = vector.shape_cast %159 : vector<1x1x32xf32> to vector<1x32xf32>
    %cst_91 = arith.constant dense<0.000000e+00> : vector<16xf32>
    %161 = vector.multi_reduction <add>, %156, %cst_91 [1] : vector<16x32xf32> to vector<16xf32>
    %162 = vector.shape_cast %161 : vector<16xf32> to vector<16x1xf32>
    %cst_92 = arith.constant 3.200000e+01 : f32
    %163 = vector.broadcast %cst_92 : f32 to vector<16x1xf32>
    %164 = arith.divf %162, %163 : vector<16x1xf32>
    %165 = vector.broadcast %164 : vector<16x1xf32> to vector<16x32xf32>
    %166 = arith.subf %156, %165 : vector<16x32xf32>
    %167 = arith.mulf %166, %166 : vector<16x32xf32>
    %cst_93 = arith.constant dense<0.000000e+00> : vector<16xf32>
    %168 = vector.multi_reduction <add>, %167, %cst_93 [1] : vector<16x32xf32> to vector<16xf32>
    %169 = vector.shape_cast %168 : vector<16xf32> to vector<16x1xf32>
    %cst_94 = arith.constant 3.200000e+01 : f32
    %170 = vector.broadcast %cst_94 : f32 to vector<16x1xf32>
    %171 = arith.divf %169, %170 : vector<16x1xf32>
    %cst_95 = arith.constant 9.99999974E-6 : f32
    %172 = vector.broadcast %cst_95 : f32 to vector<16x1xf32>
    %173 = arith.addf %171, %172 : vector<16x1xf32>
    %174 = math.rsqrt %173 : vector<16x1xf32>
    %175 = vector.broadcast %174 : vector<16x1xf32> to vector<16x32xf32>
    %176 = arith.mulf %166, %175 : vector<16x32xf32>
    %177 = vector.broadcast %158 : vector<1x32xf32> to vector<16x32xf32>
    %178 = arith.mulf %176, %177 : vector<16x32xf32>
    %179 = vector.broadcast %160 : vector<1x32xf32> to vector<16x32xf32>
    %180 = arith.addf %178, %179 : vector<16x32xf32>
    %c1_96 = arith.constant 1 : index
    %c0_97 = arith.constant 0 : index
    %c0_98 = arith.constant 0 : index
    %181 = vector.load %arg5[%c1_96, %c0_97, %c0_98] : memref<2x32x96xf32, #tpu.memory_space<vmem>>, vector<1x32x96xf32>
    %182 = vector.shape_cast %181 : vector<1x32x96xf32> to vector<32x96xf32>
    %cst_99 = arith.constant dense<0.000000e+00> : vector<16x96xf32>
    %183 = tpu.matmul %180, %182, %cst_99 {dimension_numbers = #tpu.dot_dimension_numbers<[1], [0], [0], [1], [0, 0, 1, 1], [], []>} : vector<16x32xf32>, vector<32x96xf32>, vector<16x96xf32> -> vector<16x96xf32>
    %c1_100 = arith.constant 1 : index
    %c0_101 = arith.constant 0 : index
    %c0_102 = arith.constant 0 : index
    %184 = vector.load %arg6[%c1_100, %c0_101, %c0_102] : memref<2x1x96xf32, #tpu.memory_space<vmem>>, vector<1x1x96xf32>
    %185 = vector.shape_cast %184 : vector<1x1x96xf32> to vector<1x96xf32>
    %186 = vector.broadcast %185 : vector<1x96xf32> to vector<16x96xf32>
    %187 = arith.addf %183, %186 : vector<16x96xf32>
    %cst_103 = arith.constant 0.000000e+00 : f32
    %188 = vector.broadcast %cst_103 : f32 to vector<16x32xf32>
    %189 = vector.extract_strided_slice %187 {offsets = [0, 0], sizes = [16, 8], strides = [1, 1]} : vector<16x96xf32> to vector<16x8xf32>
    %190 = vector.extract_strided_slice %187 {offsets = [0, 32], sizes = [16, 8], strides = [1, 1]} : vector<16x96xf32> to vector<16x8xf32>
    %191 = vector.extract_strided_slice %187 {offsets = [0, 64], sizes = [16, 8], strides = [1, 1]} : vector<16x96xf32> to vector<16x8xf32>
    "tpu.trace_start"() <{level = 10 : i32, message = "td,sd->ts"}> : () -> ()
    %cst_104 = arith.constant dense<0.000000e+00> : vector<16x16xf32>
    %192 = tpu.matmul %189, %190, %cst_104 {dimension_numbers = #tpu.dot_dimension_numbers<[1], [1], [0], [0], [0, 0, 1, 0], [], []>} : vector<16x8xf32>, vector<16x8xf32>, vector<16x16xf32> -> vector<16x16xf32>
    "tpu.trace_stop"() : () -> ()
    %cst_105 = arith.constant 0.353553385 : f32
    %193 = vector.broadcast %cst_105 : f32 to vector<16x16xf32>
    %194 = arith.mulf %192, %193 : vector<16x16xf32>
    %195 = arith.addf %194, %0 : vector<16x16xf32>
    %cst_106 = arith.constant dense<0xFF800000> : vector<16xf32>
    %196 = vector.multi_reduction <maximumf>, %195, %cst_106 [1] : vector<16x16xf32> to vector<16xf32>
    %197 = vector.shape_cast %196 : vector<16xf32> to vector<16x1xf32>
    %198 = vector.broadcast %197 : vector<16x1xf32> to vector<16x16xf32>
    %199 = arith.subf %195, %198 : vector<16x16xf32>
    %200 = math.exp %199 : vector<16x16xf32>
    %cst_107 = arith.constant dense<0.000000e+00> : vector<16xf32>
    %201 = vector.multi_reduction <add>, %200, %cst_107 [1] : vector<16x16xf32> to vector<16xf32>
    %202 = vector.shape_cast %201 : vector<16xf32> to vector<16x1xf32>
    %203 = tpu.reciprocal %202 : vector<16x1xf32> -> vector<16x1xf32>
    %204 = vector.broadcast %203 : vector<16x1xf32> to vector<16x16xf32>
    %205 = arith.mulf %200, %204 : vector<16x16xf32>
    %cst_108 = arith.constant dense<0.000000e+00> : vector<16x8xf32>
    %206 = tpu.matmul %205, %191, %cst_108 {dimension_numbers = #tpu.dot_dimension_numbers<[1], [0], [0], [1], [0, 0, 1, 1], [], []>} : vector<16x16xf32>, vector<16x8xf32>, vector<16x8xf32> -> vector<16x8xf32>
    %c1_109 = arith.constant 1 : index
    %c0_110 = arith.constant 0 : index
    %c0_111 = arith.constant 0 : index
    %c0_112 = arith.constant 0 : index
    %207 = vector.load %arg7[%c1_109, %c0_110, %c0_111, %c0_112] : memref<2x4x8x32xf32, #tpu.memory_space<vmem>>, vector<1x1x8x32xf32>
    %208 = vector.shape_cast %207 : vector<1x1x8x32xf32> to vector<8x32xf32>
    %cst_113 = arith.constant dense<0.000000e+00> : vector<16x32xf32>
    %209 = tpu.matmul %206, %208, %cst_113 {dimension_numbers = #tpu.dot_dimension_numbers<[1], [0], [0], [1], [0, 0, 1, 1], [], []>} : vector<16x8xf32>, vector<8x32xf32>, vector<16x32xf32> -> vector<16x32xf32>
    %210 = arith.addf %188, %209 : vector<16x32xf32>
    %211 = vector.extract_strided_slice %187 {offsets = [0, 8], sizes = [16, 8], strides = [1, 1]} : vector<16x96xf32> to vector<16x8xf32>
    %212 = vector.extract_strided_slice %187 {offsets = [0, 40], sizes = [16, 8], strides = [1, 1]} : vector<16x96xf32> to vector<16x8xf32>
    %213 = vector.extract_strided_slice %187 {offsets = [0, 72], sizes = [16, 8], strides = [1, 1]} : vector<16x96xf32> to vector<16x8xf32>
    "tpu.trace_start"() <{level = 10 : i32, message = "td,sd->ts"}> : () -> ()
    %cst_114 = arith.constant dense<0.000000e+00> : vector<16x16xf32>
    %214 = tpu.matmul %211, %212, %cst_114 {dimension_numbers = #tpu.dot_dimension_numbers<[1], [1], [0], [0], [0, 0, 1, 0], [], []>} : vector<16x8xf32>, vector<16x8xf32>, vector<16x16xf32> -> vector<16x16xf32>
    "tpu.trace_stop"() : () -> ()
    %cst_115 = arith.constant 0.353553385 : f32
    %215 = vector.broadcast %cst_115 : f32 to vector<16x16xf32>
    %216 = arith.mulf %214, %215 : vector<16x16xf32>
    %217 = arith.addf %216, %0 : vector<16x16xf32>
    %cst_116 = arith.constant dense<0xFF800000> : vector<16xf32>
    %218 = vector.multi_reduction <maximumf>, %217, %cst_116 [1] : vector<16x16xf32> to vector<16xf32>
    %219 = vector.shape_cast %218 : vector<16xf32> to vector<16x1xf32>
    %220 = vector.broadcast %219 : vector<16x1xf32> to vector<16x16xf32>
    %221 = arith.subf %217, %220 : vector<16x16xf32>
    %222 = math.exp %221 : vector<16x16xf32>
    %cst_117 = arith.constant dense<0.000000e+00> : vector<16xf32>
    %223 = vector.multi_reduction <add>, %222, %cst_117 [1] : vector<16x16xf32> to vector<16xf32>
    %224 = vector.shape_cast %223 : vector<16xf32> to vector<16x1xf32>
    %225 = tpu.reciprocal %224 : vector<16x1xf32> -> vector<16x1xf32>
    %226 = vector.broadcast %225 : vector<16x1xf32> to vector<16x16xf32>
    %227 = arith.mulf %222, %226 : vector<16x16xf32>
    %cst_118 = arith.constant dense<0.000000e+00> : vector<16x8xf32>
    %228 = tpu.matmul %227, %213, %cst_118 {dimension_numbers = #tpu.dot_dimension_numbers<[1], [0], [0], [1], [0, 0, 1, 1], [], []>} : vector<16x16xf32>, vector<16x8xf32>, vector<16x8xf32> -> vector<16x8xf32>
    %c1_119 = arith.constant 1 : index
    %c1_120 = arith.constant 1 : index
    %c0_121 = arith.constant 0 : index
    %c0_122 = arith.constant 0 : index
    %229 = vector.load %arg7[%c1_119, %c1_120, %c0_121, %c0_122] : memref<2x4x8x32xf32, #tpu.memory_space<vmem>>, vector<1x1x8x32xf32>
    %230 = vector.shape_cast %229 : vector<1x1x8x32xf32> to vector<8x32xf32>
    %cst_123 = arith.constant dense<0.000000e+00> : vector<16x32xf32>
    %231 = tpu.matmul %228, %230, %cst_123 {dimension_numbers = #tpu.dot_dimension_numbers<[1], [0], [0], [1], [0, 0, 1, 1], [], []>} : vector<16x8xf32>, vector<8x32xf32>, vector<16x32xf32> -> vector<16x32xf32>
    %232 = arith.addf %210, %231 : vector<16x32xf32>
    %233 = vector.extract_strided_slice %187 {offsets = [0, 16], sizes = [16, 8], strides = [1, 1]} : vector<16x96xf32> to vector<16x8xf32>
    %234 = vector.extract_strided_slice %187 {offsets = [0, 48], sizes = [16, 8], strides = [1, 1]} : vector<16x96xf32> to vector<16x8xf32>
    %235 = vector.extract_strided_slice %187 {offsets = [0, 80], sizes = [16, 8], strides = [1, 1]} : vector<16x96xf32> to vector<16x8xf32>
    "tpu.trace_start"() <{level = 10 : i32, message = "td,sd->ts"}> : () -> ()
    %cst_124 = arith.constant dense<0.000000e+00> : vector<16x16xf32>
    %236 = tpu.matmul %233, %234, %cst_124 {dimension_numbers = #tpu.dot_dimension_numbers<[1], [1], [0], [0], [0, 0, 1, 0], [], []>} : vector<16x8xf32>, vector<16x8xf32>, vector<16x16xf32> -> vector<16x16xf32>
    "tpu.trace_stop"() : () -> ()
    %cst_125 = arith.constant 0.353553385 : f32
    %237 = vector.broadcast %cst_125 : f32 to vector<16x16xf32>
    %238 = arith.mulf %236, %237 : vector<16x16xf32>
    %239 = arith.addf %238, %0 : vector<16x16xf32>
    %cst_126 = arith.constant dense<0xFF800000> : vector<16xf32>
    %240 = vector.multi_reduction <maximumf>, %239, %cst_126 [1] : vector<16x16xf32> to vector<16xf32>
    %241 = vector.shape_cast %240 : vector<16xf32> to vector<16x1xf32>
    %242 = vector.broadcast %241 : vector<16x1xf32> to vector<16x16xf32>
    %243 = arith.subf %239, %242 : vector<16x16xf32>
    %244 = math.exp %243 : vector<16x16xf32>
    %cst_127 = arith.constant dense<0.000000e+00> : vector<16xf32>
    %245 = vector.multi_reduction <add>, %244, %cst_127 [1] : vector<16x16xf32> to vector<16xf32>
    %246 = vector.shape_cast %245 : vector<16xf32> to vector<16x1xf32>
    %247 = tpu.reciprocal %246 : vector<16x1xf32> -> vector<16x1xf32>
    %248 = vector.broadcast %247 : vector<16x1xf32> to vector<16x16xf32>
    %249 = arith.mulf %244, %248 : vector<16x16xf32>
    %cst_128 = arith.constant dense<0.000000e+00> : vector<16x8xf32>
    %250 = tpu.matmul %249, %235, %cst_128 {dimension_numbers = #tpu.dot_dimension_numbers<[1], [0], [0], [1], [0, 0, 1, 1], [], []>} : vector<16x16xf32>, vector<16x8xf32>, vector<16x8xf32> -> vector<16x8xf32>
    %c1_129 = arith.constant 1 : index
    %c2_130 = arith.constant 2 : index
    %c0_131 = arith.constant 0 : index
    %c0_132 = arith.constant 0 : index
    %251 = vector.load %arg7[%c1_129, %c2_130, %c0_131, %c0_132] : memref<2x4x8x32xf32, #tpu.memory_space<vmem>>, vector<1x1x8x32xf32>
    %252 = vector.shape_cast %251 : vector<1x1x8x32xf32> to vector<8x32xf32>
    %cst_133 = arith.constant dense<0.000000e+00> : vector<16x32xf32>
    %253 = tpu.matmul %250, %252, %cst_133 {dimension_numbers = #tpu.dot_dimension_numbers<[1], [0], [0], [1], [0, 0, 1, 1], [], []>} : vector<16x8xf32>, vector<8x32xf32>, vector<16x32xf32> -> vector<16x32xf32>
    %254 = arith.addf %232, %253 : vector<16x32xf32>
    %255 = vector.extract_strided_slice %187 {offsets = [0, 24], sizes = [16, 8], strides = [1, 1]} : vector<16x96xf32> to vector<16x8xf32>
    %256 = vector.extract_strided_slice %187 {offsets = [0, 56], sizes = [16, 8], strides = [1, 1]} : vector<16x96xf32> to vector<16x8xf32>
    %257 = vector.extract_strided_slice %187 {offsets = [0, 88], sizes = [16, 8], strides = [1, 1]} : vector<16x96xf32> to vector<16x8xf32>
    "tpu.trace_start"() <{level = 10 : i32, message = "td,sd->ts"}> : () -> ()
    %cst_134 = arith.constant dense<0.000000e+00> : vector<16x16xf32>
    %258 = tpu.matmul %255, %256, %cst_134 {dimension_numbers = #tpu.dot_dimension_numbers<[1], [1], [0], [0], [0, 0, 1, 0], [], []>} : vector<16x8xf32>, vector<16x8xf32>, vector<16x16xf32> -> vector<16x16xf32>
    "tpu.trace_stop"() : () -> ()
    %cst_135 = arith.constant 0.353553385 : f32
    %259 = vector.broadcast %cst_135 : f32 to vector<16x16xf32>
    %260 = arith.mulf %258, %259 : vector<16x16xf32>
    %261 = arith.addf %260, %0 : vector<16x16xf32>
    %cst_136 = arith.constant dense<0xFF800000> : vector<16xf32>
    %262 = vector.multi_reduction <maximumf>, %261, %cst_136 [1] : vector<16x16xf32> to vector<16xf32>
    %263 = vector.shape_cast %262 : vector<16xf32> to vector<16x1xf32>
    %264 = vector.broadcast %263 : vector<16x1xf32> to vector<16x16xf32>
    %265 = arith.subf %261, %264 : vector<16x16xf32>
    %266 = math.exp %265 : vector<16x16xf32>
    %cst_137 = arith.constant dense<0.000000e+00> : vector<16xf32>
    %267 = vector.multi_reduction <add>, %266, %cst_137 [1] : vector<16x16xf32> to vector<16xf32>
    %268 = vector.shape_cast %267 : vector<16xf32> to vector<16x1xf32>
    %269 = tpu.reciprocal %268 : vector<16x1xf32> -> vector<16x1xf32>
    %270 = vector.broadcast %269 : vector<16x1xf32> to vector<16x16xf32>
    %271 = arith.mulf %266, %270 : vector<16x16xf32>
    %cst_138 = arith.constant dense<0.000000e+00> : vector<16x8xf32>
    %272 = tpu.matmul %271, %257, %cst_138 {dimension_numbers = #tpu.dot_dimension_numbers<[1], [0], [0], [1], [0, 0, 1, 1], [], []>} : vector<16x16xf32>, vector<16x8xf32>, vector<16x8xf32> -> vector<16x8xf32>
    %c1_139 = arith.constant 1 : index
    %c3_140 = arith.constant 3 : index
    %c0_141 = arith.constant 0 : index
    %c0_142 = arith.constant 0 : index
    %273 = vector.load %arg7[%c1_139, %c3_140, %c0_141, %c0_142] : memref<2x4x8x32xf32, #tpu.memory_space<vmem>>, vector<1x1x8x32xf32>
    %274 = vector.shape_cast %273 : vector<1x1x8x32xf32> to vector<8x32xf32>
    %cst_143 = arith.constant dense<0.000000e+00> : vector<16x32xf32>
    %275 = tpu.matmul %272, %274, %cst_143 {dimension_numbers = #tpu.dot_dimension_numbers<[1], [0], [0], [1], [0, 0, 1, 1], [], []>} : vector<16x8xf32>, vector<8x32xf32>, vector<16x32xf32> -> vector<16x32xf32>
    %276 = arith.addf %254, %275 : vector<16x32xf32>
    %c1_144 = arith.constant 1 : index
    %c0_145 = arith.constant 0 : index
    %c0_146 = arith.constant 0 : index
    %277 = vector.load %arg8[%c1_144, %c0_145, %c0_146] : memref<2x1x32xf32, #tpu.memory_space<vmem>>, vector<1x1x32xf32>
    %278 = vector.shape_cast %277 : vector<1x1x32xf32> to vector<1x32xf32>
    %279 = vector.broadcast %278 : vector<1x32xf32> to vector<16x32xf32>
    %280 = arith.addf %276, %279 : vector<16x32xf32>
    %281 = arith.addf %180, %280 : vector<16x32xf32>
    %c1_147 = arith.constant 1 : index
    %c0_148 = arith.constant 0 : index
    %c0_149 = arith.constant 0 : index
    %282 = vector.load %arg9[%c1_147, %c0_148, %c0_149] : memref<2x1x32xf32, #tpu.memory_space<vmem>>, vector<1x1x32xf32>
    %283 = vector.shape_cast %282 : vector<1x1x32xf32> to vector<1x32xf32>
    %c1_150 = arith.constant 1 : index
    %c0_151 = arith.constant 0 : index
    %c0_152 = arith.constant 0 : index
    %284 = vector.load %arg10[%c1_150, %c0_151, %c0_152] : memref<2x1x32xf32, #tpu.memory_space<vmem>>, vector<1x1x32xf32>
    %285 = vector.shape_cast %284 : vector<1x1x32xf32> to vector<1x32xf32>
    %cst_153 = arith.constant dense<0.000000e+00> : vector<16xf32>
    %286 = vector.multi_reduction <add>, %281, %cst_153 [1] : vector<16x32xf32> to vector<16xf32>
    %287 = vector.shape_cast %286 : vector<16xf32> to vector<16x1xf32>
    %cst_154 = arith.constant 3.200000e+01 : f32
    %288 = vector.broadcast %cst_154 : f32 to vector<16x1xf32>
    %289 = arith.divf %287, %288 : vector<16x1xf32>
    %290 = vector.broadcast %289 : vector<16x1xf32> to vector<16x32xf32>
    %291 = arith.subf %281, %290 : vector<16x32xf32>
    %292 = arith.mulf %291, %291 : vector<16x32xf32>
    %cst_155 = arith.constant dense<0.000000e+00> : vector<16xf32>
    %293 = vector.multi_reduction <add>, %292, %cst_155 [1] : vector<16x32xf32> to vector<16xf32>
    %294 = vector.shape_cast %293 : vector<16xf32> to vector<16x1xf32>
    %cst_156 = arith.constant 3.200000e+01 : f32
    %295 = vector.broadcast %cst_156 : f32 to vector<16x1xf32>
    %296 = arith.divf %294, %295 : vector<16x1xf32>
    %cst_157 = arith.constant 9.99999974E-6 : f32
    %297 = vector.broadcast %cst_157 : f32 to vector<16x1xf32>
    %298 = arith.addf %296, %297 : vector<16x1xf32>
    %299 = math.rsqrt %298 : vector<16x1xf32>
    %300 = vector.broadcast %299 : vector<16x1xf32> to vector<16x32xf32>
    %301 = arith.mulf %291, %300 : vector<16x32xf32>
    %302 = vector.broadcast %283 : vector<1x32xf32> to vector<16x32xf32>
    %303 = arith.mulf %301, %302 : vector<16x32xf32>
    %304 = vector.broadcast %285 : vector<1x32xf32> to vector<16x32xf32>
    %305 = arith.addf %303, %304 : vector<16x32xf32>
    %c1_158 = arith.constant 1 : index
    %c0_159 = arith.constant 0 : index
    %c0_160 = arith.constant 0 : index
    %306 = vector.load %arg11[%c1_158, %c0_159, %c0_160] : memref<2x32x128xf32, #tpu.memory_space<vmem>>, vector<1x32x128xf32>
    %307 = vector.shape_cast %306 : vector<1x32x128xf32> to vector<32x128xf32>
    %cst_161 = arith.constant dense<0.000000e+00> : vector<16x128xf32>
    %308 = tpu.matmul %305, %307, %cst_161 {dimension_numbers = #tpu.dot_dimension_numbers<[1], [0], [0], [1], [0, 0, 1, 1], [], []>} : vector<16x32xf32>, vector<32x128xf32>, vector<16x128xf32> -> vector<16x128xf32>
    %c1_162 = arith.constant 1 : index
    %c0_163 = arith.constant 0 : index
    %c0_164 = arith.constant 0 : index
    %309 = vector.load %arg12[%c1_162, %c0_163, %c0_164] : memref<2x1x128xf32, #tpu.memory_space<vmem>>, vector<1x1x128xf32>
    %310 = vector.shape_cast %309 : vector<1x1x128xf32> to vector<1x128xf32>
    %311 = vector.broadcast %310 : vector<1x128xf32> to vector<16x128xf32>
    %312 = arith.addf %308, %311 : vector<16x128xf32>
    %cst_165 = arith.constant 5.000000e-01 : f32
    %313 = vector.broadcast %cst_165 : f32 to vector<16x128xf32>
    %314 = arith.mulf %313, %312 : vector<16x128xf32>
    %cst_166 = arith.constant 0.707106769 : f32
    %315 = vector.broadcast %cst_166 : f32 to vector<16x128xf32>
    %316 = arith.mulf %312, %315 : vector<16x128xf32>
    %317 = math.erf %316 : vector<16x128xf32>
    %cst_167 = arith.constant 1.000000e+00 : f32
    %318 = vector.broadcast %cst_167 : f32 to vector<16x128xf32>
    %319 = arith.addf %318, %317 : vector<16x128xf32>
    %320 = arith.mulf %314, %319 : vector<16x128xf32>
    %c1_168 = arith.constant 1 : index
    %c0_169 = arith.constant 0 : index
    %c0_170 = arith.constant 0 : index
    %321 = vector.load %arg13[%c1_168, %c0_169, %c0_170] : memref<2x128x32xf32, #tpu.memory_space<vmem>>, vector<1x128x32xf32>
    %322 = vector.shape_cast %321 : vector<1x128x32xf32> to vector<128x32xf32>
    %cst_171 = arith.constant dense<0.000000e+00> : vector<16x32xf32>
    %323 = tpu.matmul %320, %322, %cst_171 {dimension_numbers = #tpu.dot_dimension_numbers<[1], [0], [0], [1], [0, 0, 1, 1], [], []>} : vector<16x128xf32>, vector<128x32xf32>, vector<16x32xf32> -> vector<16x32xf32>
    %c1_172 = arith.constant 1 : index
    %c0_173 = arith.constant 0 : index
    %c0_174 = arith.constant 0 : index
    %324 = vector.load %arg14[%c1_172, %c0_173, %c0_174] : memref<2x1x32xf32, #tpu.memory_space<vmem>>, vector<1x1x32xf32>
    %325 = vector.shape_cast %324 : vector<1x1x32xf32> to vector<1x32xf32>
    %326 = vector.broadcast %325 : vector<1x32xf32> to vector<16x32xf32>
    %327 = arith.addf %323, %326 : vector<16x32xf32>
    %328 = arith.addf %305, %327 : vector<16x32xf32>
    %c1_175 = arith.constant 1 : index
    %c0_176 = arith.constant 0 : index
    %c0_177 = arith.constant 0 : index
    %329 = vector.load %arg15[%c1_175, %c0_176, %c0_177] : memref<2x1x32xf32, #tpu.memory_space<vmem>>, vector<1x1x32xf32>
    %330 = vector.shape_cast %329 : vector<1x1x32xf32> to vector<1x32xf32>
    %c1_178 = arith.constant 1 : index
    %c0_179 = arith.constant 0 : index
    %c0_180 = arith.constant 0 : index
    %331 = vector.load %arg16[%c1_178, %c0_179, %c0_180] : memref<2x1x32xf32, #tpu.memory_space<vmem>>, vector<1x1x32xf32>
    %332 = vector.shape_cast %331 : vector<1x1x32xf32> to vector<1x32xf32>
    %cst_181 = arith.constant dense<0.000000e+00> : vector<16xf32>
    %333 = vector.multi_reduction <add>, %328, %cst_181 [1] : vector<16x32xf32> to vector<16xf32>
    %334 = vector.shape_cast %333 : vector<16xf32> to vector<16x1xf32>
    %cst_182 = arith.constant 3.200000e+01 : f32
    %335 = vector.broadcast %cst_182 : f32 to vector<16x1xf32>
    %336 = arith.divf %334, %335 : vector<16x1xf32>
    %337 = vector.broadcast %336 : vector<16x1xf32> to vector<16x32xf32>
    %338 = arith.subf %328, %337 : vector<16x32xf32>
    %339 = arith.mulf %338, %338 : vector<16x32xf32>
    %cst_183 = arith.constant dense<0.000000e+00> : vector<16xf32>
    %340 = vector.multi_reduction <add>, %339, %cst_183 [1] : vector<16x32xf32> to vector<16xf32>
    %341 = vector.shape_cast %340 : vector<16xf32> to vector<16x1xf32>
    %cst_184 = arith.constant 3.200000e+01 : f32
    %342 = vector.broadcast %cst_184 : f32 to vector<16x1xf32>
    %343 = arith.divf %341, %342 : vector<16x1xf32>
    %cst_185 = arith.constant 9.99999974E-6 : f32
    %344 = vector.broadcast %cst_185 : f32 to vector<16x1xf32>
    %345 = arith.addf %343, %344 : vector<16x1xf32>
    %346 = math.rsqrt %345 : vector<16x1xf32>
    %347 = vector.broadcast %346 : vector<16x1xf32> to vector<16x32xf32>
    %348 = arith.mulf %338, %347 : vector<16x32xf32>
    %349 = vector.broadcast %330 : vector<1x32xf32> to vector<16x32xf32>
    %350 = arith.mulf %348, %349 : vector<16x32xf32>
    %351 = vector.broadcast %332 : vector<1x32xf32> to vector<16x32xf32>
    %352 = arith.addf %350, %351 : vector<16x32xf32>
    %c0_186 = arith.constant 0 : index
    %c0_187 = arith.constant 0 : index
    %353 = vector.load %arg17[%c0_186, %c0_187] : memref<1x32xf32, #tpu.memory_space<vmem>>, vector<1x32xf32>
    %c0_188 = arith.constant 0 : index
    %c0_189 = arith.constant 0 : index
    %354 = vector.load %arg18[%c0_188, %c0_189] : memref<1x32xf32, #tpu.memory_space<vmem>>, vector<1x32xf32>
    %cst_190 = arith.constant dense<0.000000e+00> : vector<16xf32>
    %355 = vector.multi_reduction <add>, %352, %cst_190 [1] : vector<16x32xf32> to vector<16xf32>
    %356 = vector.shape_cast %355 : vector<16xf32> to vector<16x1xf32>
    %cst_191 = arith.constant 3.200000e+01 : f32
    %357 = vector.broadcast %cst_191 : f32 to vector<16x1xf32>
    %358 = arith.divf %356, %357 : vector<16x1xf32>
    %359 = vector.broadcast %358 : vector<16x1xf32> to vector<16x32xf32>
    %360 = arith.subf %352, %359 : vector<16x32xf32>
    %361 = arith.mulf %360, %360 : vector<16x32xf32>
    %cst_192 = arith.constant dense<0.000000e+00> : vector<16xf32>
    %362 = vector.multi_reduction <add>, %361, %cst_192 [1] : vector<16x32xf32> to vector<16xf32>
    %363 = vector.shape_cast %362 : vector<16xf32> to vector<16x1xf32>
    %cst_193 = arith.constant 3.200000e+01 : f32
    %364 = vector.broadcast %cst_193 : f32 to vector<16x1xf32>
    %365 = arith.divf %363, %364 : vector<16x1xf32>
    %cst_194 = arith.constant 9.99999974E-6 : f32
    %366 = vector.broadcast %cst_194 : f32 to vector<16x1xf32>
    %367 = arith.addf %365, %366 : vector<16x1xf32>
    %368 = math.rsqrt %367 : vector<16x1xf32>
    %369 = vector.broadcast %368 : vector<16x1xf32> to vector<16x32xf32>
    %370 = arith.mulf %360, %369 : vector<16x32xf32>
    %371 = vector.broadcast %353 : vector<1x32xf32> to vector<16x32xf32>
    %372 = arith.mulf %370, %371 : vector<16x32xf32>
    %373 = vector.broadcast %354 : vector<1x32xf32> to vector<16x32xf32>
    %374 = arith.addf %372, %373 : vector<16x32xf32>
    %c0_195 = arith.constant 0 : index
    %c0_196 = arith.constant 0 : index
    %375 = vector.load %arg19[%c0_195, %c0_196] : memref<16x32xf32, #tpu.memory_space<vmem>>, vector<16x32xf32>
    tpu.vector_store %arg19[%c0_195, %c0_196], %374 {strides = array<i32>} : memref<16x32xf32, #tpu.memory_space<vmem>>, vector<16x32xf32>,
    return
  }
}

</mosaic_0001>

<llo_original>
// kernel: tpu_custom_call.1
$region0: #{tpu_custom_call.1}
  #allocation0 [shape = 'u32[]', space=smem, size = 0x4, offset = 0x4, fixed_abs, tag = 'smem constant byte address 0x4 - core index']
  #allocation1 [shape = 'u32[144,128]{1,0:T(1,128)}', space=vmem, size = 0x12000, scoped, tag = 'internal scratch']
  %s0 = inlined_call_operand.vmem [shape: f32[16,8], index: 0, kind: input, shape index: {}]
  %s1 = inlined_call_operand.vmem [shape: f32[16,16], index: 1, kind: input, shape index: {}]
  %s2 = inlined_call_operand.vmem [shape: f32[8,32], index: 2, kind: input, shape index: {}]
  %s3 = inlined_call_operand.vmem [shape: f32[1,32], index: 3, kind: input, shape index: {}]
  %s4 = inlined_call_operand.vmem [shape: f32[16,32], index: 4, kind: input, shape index: {}]
  %s5 = inlined_call_operand.vmem [shape: f32[2,32,96], index: 5, kind: input, shape index: {}]
  %s6 = inlined_call_operand.vmem [shape: f32[2,1,96], index: 6, kind: input, shape index: {}]
  %s7 = inlined_call_operand.vmem [shape: f32[2,4,8,32], index: 7, kind: input, shape index: {}]
  %s8 = inlined_call_operand.vmem [shape: f32[2,1,32], index: 8, kind: input, shape index: {}]
  %s9 = inlined_call_operand.vmem [shape: f32[2,1,32], index: 9, kind: input, shape index: {}]
  %s10 = inlined_call_operand.vmem [shape: f32[2,1,32], index: 10, kind: input, shape index: {}]
  %s11 = inlined_call_operand.vmem [shape: f32[2,32,128], index: 11, kind: input, shape index: {}]
  %s12 = inlined_call_operand.vmem [shape: f32[2,1,128], index: 12, kind: input, shape index: {}]
  %s13 = inlined_call_operand.vmem [shape: f32[2,128,32], index: 13, kind: input, shape index: {}]
  %s14 = inlined_call_operand.vmem [shape: f32[2,1,32], index: 14, kind: input, shape index: {}]
  %s15 = inlined_call_operand.vmem [shape: f32[2,1,32], index: 15, kind: input, shape index: {}]
  %s16 = inlined_call_operand.vmem [shape: f32[2,1,32], index: 16, kind: input, shape index: {}]
  %s17 = inlined_call_operand.vmem [shape: f32[1,32], index: 17, kind: input, shape index: {}]
  %s18 = inlined_call_operand.vmem [shape: f32[1,32], index: 18, kind: input, shape index: {}]
  %s19 = inlined_call_operand.hbm [shape: f32[16,32], index: 19, kind: output, shape index: {}]
  %s20 = sld [smem:[#allocation0]]
  $region86: #{tpu_custom_call.1} parent=0
    _
  %s22 = ssub.s32 1, %s20
  %s23 = scalar_select 0, %s22, %s20
  $region1: #{tpu_custom_call.1} parent=0
    #allocation2 [shape = 'u8[8192]{0}', space=vmem, size = 0x2000, scoped, tag = 'output window, operand 0, single buffered']
    #allocation3 [shape = 's32[1]{0}', space=sflag, size = 0x4, scoped, tag = 'scoped memory for tpu_custom_call.1']
    %24 = vsyncpa [#allocation3], 0
    // Predicated region
    $region2: #{tpu_custom_call.1} parent=1 // pred_check
      _
    $region3: #{tpu_custom_call.1} parent=1 // pred_check_branch
      %26 = sbr.rel (0) target = $region5
    $region4: #{tpu_custom_call.1} parent=1 // pred_region
      _
    $region5: #{tpu_custom_call.1} parent=1 // pred_fallthru
      _
    // Predicated region
    $region6: #{tpu_custom_call.1} parent=1 // pred_check
      _
    $region7: #{tpu_custom_call.1} parent=1 // pred_check_branch
      %28 = sbr.rel (0) target = $region9
    $region8: #{tpu_custom_call.1} parent=1 // pred_region
      _
    $region9: #{tpu_custom_call.1} parent=1 // pred_fallthru
      _
    // Predicated region
    $region10: #{tpu_custom_call.1} parent=1 // pred_check
      _
    $region11: #{tpu_custom_call.1} parent=1 // pred_check_branch
      %30 = sbr.rel (0) target = $region13
    $region12: #{tpu_custom_call.1} parent=1 // pred_region
      _
    $region13: #{tpu_custom_call.1} parent=1 // pred_fallthru
      _
    // Predicated region
    $region14: #{tpu_custom_call.1} parent=1 // pred_check
      _
    $region15: #{tpu_custom_call.1} parent=1 // pred_check_branch
      %32 = sbr.rel (0) target = $region17
    $region16: #{tpu_custom_call.1} parent=1 // pred_region
      _
    $region17: #{tpu_custom_call.1} parent=1 // pred_fallthru
      _
    // Predicated region
    $region18: #{tpu_custom_call.1} parent=1 // pred_check
      _
    $region19: #{tpu_custom_call.1} parent=1 // pred_check_branch
      %34 = sbr.rel (0) target = $region21
    $region20: #{tpu_custom_call.1} parent=1 // pred_region
      _
    $region21: #{tpu_custom_call.1} parent=1 // pred_fallthru
      _
    // Predicated region
    $region22: #{tpu_custom_call.1} parent=1 // pred_check
      _
    $region23: #{tpu_custom_call.1} parent=1 // pred_check_branch
      %36 = sbr.rel (0) target = $region25
    $region24: #{tpu_custom_call.1} parent=1 // pred_region
      _
    $region25: #{tpu_custom_call.1} parent=1 // pred_fallthru
      _
    // Predicated region
    $region26: #{tpu_custom_call.1} parent=1 // pred_check
      _
    $region27: #{tpu_custom_call.1} parent=1 // pred_check_branch
      %38 = sbr.rel (0) target = $region29
    $region28: #{tpu_custom_call.1} parent=1 // pred_region
      _
    $region29: #{tpu_custom_call.1} parent=1 // pred_fallthru
      _
    // Predicated region
    $region30: #{tpu_custom_call.1} parent=1 // pred_check
      _
    $region31: #{tpu_custom_call.1} parent=1 // pred_check_branch
      %40 = sbr.rel (0) target = $region33
    $region32: #{tpu_custom_call.1} parent=1 // pred_region
      _
    $region33: #{tpu_custom_call.1} parent=1 // pred_fallthru
      _
    // Predicated region
    $region34: #{tpu_custom_call.1} parent=1 // pred_check
      _
    $region35: #{tpu_custom_call.1} parent=1 // pred_check_branch
      %42 = sbr.rel (0) target = $region37
    $region36: #{tpu_custom_call.1} parent=1 // pred_region
      _
    $region37: #{tpu_custom_call.1} parent=1 // pred_fallthru
      _
    // Predicated region
    $region38: #{tpu_custom_call.1} parent=1 // pred_check
      _
    $region39: #{tpu_custom_call.1} parent=1 // pred_check_branch
      %44 = sbr.rel (0) target = $region41
    $region40: #{tpu_custom_call.1} parent=1 // pred_region
      _
    $region41: #{tpu_custom_call.1} parent=1 // pred_fallthru
      _
    // Predicated region
    $region42: #{tpu_custom_call.1} parent=1 // pred_check
      _
    $region43: #{tpu_custom_call.1} parent=1 // pred_check_branch
      %46 = sbr.rel (0) target = $region45
    $region44: #{tpu_custom_call.1} parent=1 // pred_region
      _
    $region45: #{tpu_custom_call.1} parent=1 // pred_fallthru
      _
    // Predicated region
    $region46: #{tpu_custom_call.1} parent=1 // pred_check
      _
    $region47: #{tpu_custom_call.1} parent=1 // pred_check_branch
      %48 = sbr.rel (0) target = $region49
    $region48: #{tpu_custom_call.1} parent=1 // pred_region
      _
    $region49: #{tpu_custom_call.1} parent=1 // pred_fallthru
      _
    // Predicated region
    $region50: #{tpu_custom_call.1} parent=1 // pred_check
      _
    $region51: #{tpu_custom_call.1} parent=1 // pred_check_branch
      %50 = sbr.rel (0) target = $region53
    $region52: #{tpu_custom_call.1} parent=1 // pred_region
      _
    $region53: #{tpu_custom_call.1} parent=1 // pred_fallthru
      _
    // Predicated region
    $region54: #{tpu_custom_call.1} parent=1 // pred_check
      _
    $region55: #{tpu_custom_call.1} parent=1 // pred_check_branch
      %52 = sbr.rel (0) target = $region57
    $region56: #{tpu_custom_call.1} parent=1 // pred_region
      _
    $region57: #{tpu_custom_call.1} parent=1 // pred_fallthru
      _
    // Predicated region
    $region58: #{tpu_custom_call.1} parent=1 // pred_check
      _
    $region59: #{tpu_custom_call.1} parent=1 // pred_check_branch
      %54 = sbr.rel (0) target = $region61
    $region60: #{tpu_custom_call.1} parent=1 // pred_region
      _
    $region61: #{tpu_custom_call.1} parent=1 // pred_fallthru
      _
    // Predicated region
    $region62: #{tpu_custom_call.1} parent=1 // pred_check
      _
    $region63: #{tpu_custom_call.1} parent=1 // pred_check_branch
      %56 = sbr.rel (0) target = $region65
    $region64: #{tpu_custom_call.1} parent=1 // pred_region
      _
    $region65: #{tpu_custom_call.1} parent=1 // pred_fallthru
      _
    // Predicated region
    $region66: #{tpu_custom_call.1} parent=1 // pred_check
      _
    $region67: #{tpu_custom_call.1} parent=1 // pred_check_branch
      %58 = sbr.rel (0) target = $region69
    $region68: #{tpu_custom_call.1} parent=1 // pred_region
      _
    $region69: #{tpu_custom_call.1} parent=1 // pred_fallthru
      _
    // Predicated region
    $region70: #{tpu_custom_call.1} parent=1 // pred_check
      _
    $region71: #{tpu_custom_call.1} parent=1 // pred_check_branch
      %60 = sbr.rel (0) target = $region73
    $region72: #{tpu_custom_call.1} parent=1 // pred_region
      _
    $region73: #{tpu_custom_call.1} parent=1 // pred_fallthru
      _
    // Predicated region
    $region74: #{tpu_custom_call.1} parent=1 // pred_check
      _
    $region75: #{tpu_custom_call.1} parent=1 // pred_check_branch
      %62 = sbr.rel (0) target = $region77
    $region76: #{tpu_custom_call.1} parent=1 // pred_region
      _
    $region77: #{tpu_custom_call.1} parent=1 // pred_fallthru
      _
    %v63 = vld [vmem:[%s1] sm:$0xff]
    %v64 = vld [vmem:[%s1 + $0x8] sm:$0xff]
    %v65 = vld [vmem:[%s0] sm:$0xff]
    %v66 = vld [vmem:[%s0 + $0x8] sm:$0xff]
    %v67 = vld [vmem:[%s2] sm:$0xff]
    %v68 = vld [vmem:[%s3] sm:$0x1]
    %v70 = vlaneseq
    %v71 = vshrl.u32 %v70, 7
    %v72 = vsub.s32 0, %v71
    %v73 = vrot.slane %v68, %v72
    %vm75 = vcmask 64512
    %v77 = vsel %vm75, %v65, 0
    %v80 = vsel %vm75, %v66, 0
    %82 = vmatprep.subr.mxu0 0.0
    %83 = vmatpush1.msra.mxu0 %v67
    %84 = vmatprep.subr.mxu0 0.0
    %85 = vmatpush1.msra.mxu0 0.0
    %86 = vmatprep.subr.mxu0 0.0
    %87 = vmatpush1.msra.mxu0 0.0
    %88 = vmatprep.subr.mxu0 0.0
    %89 = vmatpush1.msra.mxu0 0.0
    %90 = vmatprep.subr.mxu0 0.0
    %91 = vmatpush1.msra.mxu0 0.0
    %92 = vmatprep.subr.mxu0 0.0
    %93 = vmatpush1.msra.mxu0 0.0
    %94 = vmatprep.subr.mxu0 0.0
    %95 = vmatpush1.msra.mxu0 0.0
    %96 = vmatprep.subr.mxu0 0.0
    %97 = vmatpush1.msra.mxu0 0.0
    %98 = vmatprep.subr.mxu0 0.0
    %99 = vmatpush1.msra.mxu0 0.0
    %100 = vmatprep.subr.mxu0 0.0
    %101 = vmatpush1.msra.mxu0 0.0
    %102 = vmatprep.subr.mxu0 0.0
    %103 = vmatpush1.msra.mxu0 0.0
    %104 = vmatprep.subr.mxu0 0.0
    %105 = vmatpush1.msra.mxu0 0.0
    %106 = vmatprep.subr.mxu0 0.0
    %107 = vmatpush1.msra.mxu0 0.0
    %108 = vmatprep.subr.mxu0 0.0
    %109 = vmatpush1.msra.mxu0 0.0
    %110 = vmatprep.subr.mxu0 0.0
    %111 = vmatpush1.msra.mxu0 0.0
    %112 = vmatprep.subr.mxu0 0.0
    %113 = vmatpush1.msra.mxu0 0.0
    %114 = vmatprep.subr.mxu0 0.0
    %115 = vmatpush1.msra.mxu0 0.0
    %116 = vmatprep.subr.mxu0 0.0
    %117 = vmatpush1.msra.mxu0 0.0
    %118 = vmatprep.subr.mxu0 0.0
    %119 = vmatpush1.msra.mxu0 0.0
    %120 = vmatprep.subr.mxu0 0.0
    %121 = vmatpush1.msra.mxu0 0.0
    %122 = vmatprep.subr.mxu0 0.0
    %123 = vmatpush1.msra.mxu0 0.0
    %124 = vmatprep.subr.mxu0 0.0
    %125 = vmatpush1.msra.mxu0 0.0
    %126 = vmatprep.subr.mxu0 0.0
    %127 = vmatpush1.msra.mxu0 0.0
    %128 = vmatprep.subr.mxu0 0.0
    %129 = vmatpush1.msra.mxu0 0.0
    %130 = vmatprep.subr.mxu0 0.0
    %131 = vmatpush1.msra.mxu0 0.0
    %132 = vmatprep.subr.mxu0 0.0
    %133 = vmatpush1.msra.mxu0 0.0
    %134 = vmatprep.subr.mxu0 0.0
    %135 = vmatpush1.msra.mxu0 0.0
    %136 = vmatprep.subr.mxu0 0.0
    %137 = vmatpush1.msra.mxu0 0.0
    %138 = vmatprep.subr.mxu0 0.0
    %139 = vmatpush1.msra.mxu0 0.0
    %140 = vmatprep.subr.mxu0 0.0
    %141 = vmatpush1.msra.mxu0 0.0
    %142 = vmatprep.subr.mxu0 0.0
    %143 = vmatpush1.msra.mxu0 0.0
    %144 = vmatprep.subr.mxu0 0.0
    %145 = vmatpush1.msra.mxu0 0.0
    %146 = vmatprep.mubr.f32.mxu0 0.0
    %147 = vmatmul.mubr.f32.gmra.mrb[0].mxu0 %v77
    %v148 = vpop.f32.mrb[0].mxu0
    %v149 = vadd.f32 %v73, %v148
    %v150 = vpop.f32.mrb[0].mxu0
    %151 = vmatprep.mubr.f32.mxu0 0.0
    %152 = vmatmul.mubr.f32.gmra.mrb[0].mxu0 %v80
    %v153 = vpop.f32.mrb[0].mxu0
    %v154 = vadd.f32 %v73, %v153
    %v155 = vpop.f32.mrb[0].mxu0
    %156 = vdwg.mxu0
    %v157 = vld [vmem:[%s4] sm:$0xff]
    %v158 = vld [vmem:[%s4 + $0x8] sm:$0xff]
    %v159 = vadd.f32 %v149, %v157
    %v160 = vadd.f32 %v154, %v158
    %v161 = vld [vmem:[%s5] sm:$0xff]
    %v162 = vld [vmem:[%s5 + $0x8] sm:$0xff]
    %v163 = vld [vmem:[%s5 + $0x10] sm:$0xff]
    %v164 = vld [vmem:[%s5 + $0x18] sm:$0xff]
    %v165 = vld [vmem:[%s6] sm:$0x1]
    %v167 = vlaneseq
    %v168 = vshrl.u32 %v167, 7
    %v169 = vsub.s32 0, %v168
    %v170 = vrot.slane %v165, %v169
    %vm172 = vcmask 261120
    %v174 = vsel %vm172, %v159, 0
    %v177 = vsel %vm172, %v160, 0
    %179 = vmatprep.subr.mxu0 0.0
    %180 = vmatpush1.msra.mxu0 %v161
    %181 = vmatprep.subr.mxu0 0.0
    %182 = vmatpush1.msra.mxu0 %v162
    %183 = vmatprep.subr.mxu0 0.0
    %184 = vmatpush1.msra.mxu0 %v163
    %185 = vmatprep.subr.mxu0 0.0
    %186 = vmatpush1.msra.mxu0 %v164
    %187 = vmatprep.subr.mxu0 0.0
    %188 = vmatpush1.msra.mxu0 0.0
    %189 = vmatprep.subr.mxu0 0.0
    %190 = vmatpush1.msra.mxu0 0.0
    %191 = vmatprep.subr.mxu0 0.0
    %192 = vmatpush1.msra.mxu0 0.0
    %193 = vmatprep.subr.mxu0 0.0
    %194 = vmatpush1.msra.mxu0 0.0
    %195 = vmatprep.subr.mxu0 0.0
    %196 = vmatpush1.msra.mxu0 0.0
    %197 = vmatprep.subr.mxu0 0.0
    %198 = vmatpush1.msra.mxu0 0.0
    %199 = vmatprep.subr.mxu0 0.0
    %200 = vmatpush1.msra.mxu0 0.0
    %201 = vmatprep.subr.mxu0 0.0
    %202 = vmatpush1.msra.mxu0 0.0
    %203 = vmatprep.subr.mxu0 0.0
    %204 = vmatpush1.msra.mxu0 0.0
    %205 = vmatprep.subr.mxu0 0.0
    %206 = vmatpush1.msra.mxu0 0.0
    %207 = vmatprep.subr.mxu0 0.0
    %208 = vmatpush1.msra.mxu0 0.0
    %209 = vmatprep.subr.mxu0 0.0
    %210 = vmatpush1.msra.mxu0 0.0
    %211 = vmatprep.subr.mxu0 0.0
    %212 = vmatpush1.msra.mxu0 0.0
    %213 = vmatprep.subr.mxu0 0.0
    %214 = vmatpush1.msra.mxu0 0.0
    %215 = vmatprep.subr.mxu0 0.0
    %216 = vmatpush1.msra.mxu0 0.0
    %217 = vmatprep.subr.mxu0 0.0
    %218 = vmatpush1.msra.mxu0 0.0
    %219 = vmatprep.subr.mxu0 0.0
    %220 = vmatpush1.msra.mxu0 0.0
    %221 = vmatprep.subr.mxu0 0.0
    %222 = vmatpush1.msra.mxu0 0.0
    %223 = vmatprep.subr.mxu0 0.0
    %224 = vmatpush1.msra.mxu0 0.0
    %225 = vmatprep.subr.mxu0 0.0
    %226 = vmatpush1.msra.mxu0 0.0
    %227 = vmatprep.subr.mxu0 0.0
    %228 = vmatpush1.msra.mxu0 0.0
    %229 = vmatprep.subr.mxu0 0.0
    %230 = vmatpush1.msra.mxu0 0.0
    %231 = vmatprep.subr.mxu0 0.0
    %232 = vmatpush1.msra.mxu0 0.0
    %233 = vmatprep.subr.mxu0 0.0
    %234 = vmatpush1.msra.mxu0 0.0
    %235 = vmatprep.subr.mxu0 0.0
    %236 = vmatpush1.msra.mxu0 0.0
    %237 = vmatprep.subr.mxu0 0.0
    %238 = vmatpush1.msra.mxu0 0.0
    %239 = vmatprep.subr.mxu0 0.0
    %240 = vmatpush1.msra.mxu0 0.0
    %241 = vmatprep.subr.mxu0 0.0
    %242 = vmatpush1.msra.mxu0 0.0
    %243 = vmatprep.mubr.f32.mxu0 0.0
    %244 = vmatmul.mubr.f32.gmra.mrb[0].mxu0 %v174
    %v245 = vpop.f32.mrb[0].mxu0
    %v246 = vadd.f32 %v170, %v245
    %v247 = vpop.f32.mrb[0].mxu0
    %248 = vmatprep.mubr.f32.mxu0 0.0
    %249 = vmatmul.mubr.f32.gmra.mrb[0].mxu0 %v177
    %v250 = vpop.f32.mrb[0].mxu0
    %v251 = vadd.f32 %v170, %v250
    %v252 = vpop.f32.mrb[0].mxu0
    %253 = vdwg.mxu0
    %256 = vrot.lane.b32.xlu0 %v246, 96
    %v257 = vpop.permute.xlu0 %256
    %258 = vrot.lane.b32.xlu0 %v251, 96
    %v259 = vpop.permute.xlu0 %258
    %v260 = vsel %vm75, %v246, 0
    %v262 = vsel %vm75, %v251, 0
    %v264 = vsel %vm75, %v257, 0
    %v266 = vsel %vm75, %v259, 0
    %268 = vmatprep.subr.mxu0 0.0
    %269 = vmatpush1.xpose.msra.mxu0 %v264
    %270 = vmatprep.subr.mxu0 0.0
    %271 = vmatpush1.xpose.msra.mxu0 %v266
    %272 = vmatprep.subr.mxu0 0.0
    %273 = vmatpush1.xpose.msra.mxu0 0.0
    %274 = vmatprep.subr.mxu0 0.0
    %275 = vmatpush1.xpose.msra.mxu0 0.0
    %276 = vmatprep.subr.mxu0 0.0
    %277 = vmatpush1.xpose.msra.mxu0 0.0
    %278 = vmatprep.subr.mxu0 0.0
    %279 = vmatpush1.xpose.msra.mxu0 0.0
    %280 = vmatprep.subr.mxu0 0.0
    %281 = vmatpush1.xpose.msra.mxu0 0.0
    %282 = vmatprep.subr.mxu0 0.0
    %283 = vmatpush1.xpose.msra.mxu0 0.0
    %284 = vmatprep.subr.mxu0 0.0
    %285 = vmatpush1.xpose.msra.mxu0 0.0
    %286 = vmatprep.subr.mxu0 0.0
    %287 = vmatpush1.xpose.msra.mxu0 0.0
    %288 = vmatprep.subr.mxu0 0.0
    %289 = vmatpush1.xpose.msra.mxu0 0.0
    %290 = vmatprep.subr.mxu0 0.0
    %291 = vmatpush1.xpose.msra.mxu0 0.0
    %292 = vmatprep.subr.mxu0 0.0
    %293 = vmatpush1.xpose.msra.mxu0 0.0
    %294 = vmatprep.subr.mxu0 0.0
    %295 = vmatpush1.xpose.msra.mxu0 0.0
    %296 = vmatprep.subr.mxu0 0.0
    %297 = vmatpush1.xpose.msra.mxu0 0.0
    %298 = vmatprep.subr.mxu0 0.0
    %299 = vmatpush1.xpose.msra.mxu0 0.0
    %300 = vmatprep.subr.mxu0 0.0
    %301 = vmatpush1.xpose.msra.mxu0 0.0
    %302 = vmatprep.subr.mxu0 0.0
    %303 = vmatpush1.xpose.msra.mxu0 0.0
    %304 = vmatprep.subr.mxu0 0.0
    %305 = vmatpush1.xpose.msra.mxu0 0.0
    %306 = vmatprep.subr.mxu0 0.0
    %307 = vmatpush1.xpose.msra.mxu0 0.0
    %308 = vmatprep.subr.mxu0 0.0
    %309 = vmatpush1.xpose.msra.mxu0 0.0
    %310 = vmatprep.subr.mxu0 0.0
    %311 = vmatpush1.xpose.msra.mxu0 0.0
    %312 = vmatprep.subr.mxu0 0.0
    %313 = vmatpush1.xpose.msra.mxu0 0.0
    %314 = vmatprep.subr.mxu0 0.0
    %315 = vmatpush1.xpose.msra.mxu0 0.0
    %316 = vmatprep.subr.mxu0 0.0
    %317 = vmatpush1.xpose.msra.mxu0 0.0
    %318 = vmatprep.subr.mxu0 0.0
    %319 = vmatpush1.xpose.msra.mxu0 0.0
    %320 = vmatprep.subr.mxu0 0.0
    %321 = vmatpush1.xpose.msra.mxu0 0.0
    %322 = vmatprep.subr.mxu0 0.0
    %323 = vmatpush1.xpose.msra.mxu0 0.0
    %324 = vmatprep.subr.mxu0 0.0
    %325 = vmatpush1.xpose.msra.mxu0 0.0
    %326 = vmatprep.subr.mxu0 0.0
    %327 = vmatpush1.xpose.msra.mxu0 0.0
    %328 = vmatprep.subr.mxu0 0.0
    %329 = vmatpush1.xpose.msra.mxu0 0.0
    %330 = vmatprep.subr.mxu0 0.0
    %331 = vmatpush1.xpose.msra.mxu0 0.0
    %332 = vmatprep.mubr.f32.mxu0 0.0
    %333 = vmatmul.mubr.f32.gmra.mrb[0].mxu0 %v260
    %v334 = vpop.f32.mrb[0].mxu0
    %v335 = vadd.f32 0.0, %v334
    %v336 = vpop.f32.mrb[0].mxu0
    %337 = vmatprep.mubr.f32.mxu0 0.0
    %338 = vmatmul.mubr.f32.gmra.mrb[0].mxu0 %v262
    %v339 = vpop.f32.mrb[0].mxu0
    %v340 = vadd.f32 0.0, %v339
    %v341 = vpop.f32.mrb[0].mxu0
    %342 = vdwg.mxu0
    %v343 = vmul.f32 %v335, 0.35355338
    %v344 = vmul.f32 %v340, 0.35355338
    %v345 = vadd.f32 %v343, %v63
    %v346 = vadd.f32 %v344, %v64
    %vm347 = vcmask 130048
    %v348 = vsel %vm347, %v345, -inf
    %349 = vmax.xlane.f32.xlu0 %v348
    %v350 = vpop.xlane.xlu0 %349
    %v351 = vsel %vm347, %v346, -inf
    %352 = vmax.xlane.f32.xlu0 %v351
    %v353 = vpop.xlane.xlu0 %352
    %v354 = vsub.f32 %v345, %v350
    %v355 = vsub.f32 %v346, %v353
    %v356 = vmul.f32 %v354, 1.442695
    %v357 = vpow.pop %v356
    %v358 = vmul.f32 %v355, 1.442695
    %v359 = vpow.pop %v358
    %v360 = vsel %vm347, %v357, 0.0
    %361 = vadd.xlane.f32.xlu0 %v360
    %v362 = vpop.xlane.xlu0 %361
    %v363 = vsel %vm347, %v359, 0.0
    %364 = vadd.xlane.f32.xlu0 %v363
    %v365 = vpop.xlane.xlu0 %364
    %v366 = vrcp.pop %v362
    %v367 = vrcp.pop %v365
    %v368 = vmul.f32 %v357, %v366
    %v369 = vmul.f32 %v359, %v367
    %370 = vrot.lane.b32.xlu0 %v246, 64
    %v371 = vpop.permute.xlu0 %370
    %372 = vrot.lane.b32.xlu0 %v251, 64
    %v373 = vpop.permute.xlu0 %372
    %v377 = vsel %vm347, %v368, 0
    %v380 = vsel %vm347, %v369, 0
    %382 = vmatprep.subr.mxu0 0.0
    %383 = vmatpush1.msra.mxu0 %v371
    %384 = vmatprep.subr.mxu0 0.0
    %385 = vmatpush1.msra.mxu0 %v373
    %386 = vmatprep.subr.mxu0 0.0
    %387 = vmatpush1.msra.mxu0 0.0
    %388 = vmatprep.subr.mxu0 0.0
    %389 = vmatpush1.msra.mxu0 0.0
    %390 = vmatprep.subr.mxu0 0.0
    %391 = vmatpush1.msra.mxu0 0.0
    %392 = vmatprep.subr.mxu0 0.0
    %393 = vmatpush1.msra.mxu0 0.0
    %394 = vmatprep.subr.mxu0 0.0
    %395 = vmatpush1.msra.mxu0 0.0
    %396 = vmatprep.subr.mxu0 0.0
    %397 = vmatpush1.msra.mxu0 0.0
    %398 = vmatprep.subr.mxu0 0.0
    %399 = vmatpush1.msra.mxu0 0.0
    %400 = vmatprep.subr.mxu0 0.0
    %401 = vmatpush1.msra.mxu0 0.0
    %402 = vmatprep.subr.mxu0 0.0
    %403 = vmatpush1.msra.mxu0 0.0
    %404 = vmatprep.subr.mxu0 0.0
    %405 = vmatpush1.msra.mxu0 0.0
    %406 = vmatprep.subr.mxu0 0.0
    %407 = vmatpush1.msra.mxu0 0.0
    %408 = vmatprep.subr.mxu0 0.0
    %409 = vmatpush1.msra.mxu0 0.0
    %410 = vmatprep.subr.mxu0 0.0
    %411 = vmatpush1.msra.mxu0 0.0
    %412 = vmatprep.subr.mxu0 0.0
    %413 = vmatpush1.msra.mxu0 0.0
    %414 = vmatprep.subr.mxu0 0.0
    %415 = vmatpush1.msra.mxu0 0.0
    %416 = vmatprep.subr.mxu0 0.0
    %417 = vmatpush1.msra.mxu0 0.0
    %418 = vmatprep.subr.mxu0 0.0
    %419 = vmatpush1.msra.mxu0 0.0
    %420 = vmatprep.subr.mxu0 0.0
    %421 = vmatpush1.msra.mxu0 0.0
    %422 = vmatprep.subr.mxu0 0.0
    %423 = vmatpush1.msra.mxu0 0.0
    %424 = vmatprep.subr.mxu0 0.0
    %425 = vmatpush1.msra.mxu0 0.0
    %426 = vmatprep.subr.mxu0 0.0
    %427 = vmatpush1.msra.mxu0 0.0
    %428 = vmatprep.subr.mxu0 0.0
    %429 = vmatpush1.msra.mxu0 0.0
    %430 = vmatprep.subr.mxu0 0.0
    %431 = vmatpush1.msra.mxu0 0.0
    %432 = vmatprep.subr.mxu0 0.0
    %433 = vmatpush1.msra.mxu0 0.0
    %434 = vmatprep.subr.mxu0 0.0
    %435 = vmatpush1.msra.mxu0 0.0
    %436 = vmatprep.subr.mxu0 0.0
    %437 = vmatpush1.msra.mxu0 0.0
    %438 = vmatprep.subr.mxu0 0.0
    %439 = vmatpush1.msra.mxu0 0.0
    %440 = vmatprep.subr.mxu0 0.0
    %441 = vmatpush1.msra.mxu0 0.0
    %442 = vmatprep.subr.mxu0 0.0
    %443 = vmatpush1.msra.mxu0 0.0
    %444 = vmatprep.subr.mxu0 0.0
    %445 = vmatpush1.msra.mxu0 0.0
    %446 = vmatprep.mubr.f32.mxu0 0.0
    %447 = vmatmul.mubr.f32.gmra.mrb[0].mxu0 %v377
    %v448 = vpop.f32.mrb[0].mxu0
    %v449 = vadd.f32 0.0, %v448
    %v450 = vpop.f32.mrb[0].mxu0
    %451 = vmatprep.mubr.f32.mxu0 0.0
    %452 = vmatmul.mubr.f32.gmra.mrb[0].mxu0 %v380
    %v453 = vpop.f32.mrb[0].mxu0
    %v454 = vadd.f32 0.0, %v453
    %v455 = vpop.f32.mrb[0].mxu0
    %456 = vdwg.mxu0
    %v457 = vld [vmem:[%s7] sm:$0xff]
    %458 = vrot.lane.b32.xlu0 %v246, 120
    %v459 = vpop.permute.xlu0 %458
    %460 = vrot.lane.b32.xlu0 %v251, 120
    %v461 = vpop.permute.xlu0 %460
    %462 = vrot.lane.b32.xlu0 %v246, 88
    %v463 = vpop.permute.xlu0 %462
    %464 = vrot.lane.b32.xlu0 %v251, 88
    %v465 = vpop.permute.xlu0 %464
    %v466 = vsel %vm75, %v459, 0
    %v468 = vsel %vm75, %v461, 0
    %v470 = vsel %vm75, %v463, 0
    %v472 = vsel %vm75, %v465, 0
    %474 = vmatprep.subr.mxu0 0.0
    %475 = vmatpush1.xpose.msra.mxu0 %v470
    %476 = vmatprep.subr.mxu0 0.0
    %477 = vmatpush1.xpose.msra.mxu0 %v472
    %478 = vmatprep.subr.mxu0 0.0
    %479 = vmatpush1.xpose.msra.mxu0 0.0
    %480 = vmatprep.subr.mxu0 0.0
    %481 = vmatpush1.xpose.msra.mxu0 0.0
    %482 = vmatprep.subr.mxu0 0.0
    %483 = vmatpush1.xpose.msra.mxu0 0.0
    %484 = vmatprep.subr.mxu0 0.0
    %485 = vmatpush1.xpose.msra.mxu0 0.0
    %486 = vmatprep.subr.mxu0 0.0
    %487 = vmatpush1.xpose.msra.mxu0 0.0
    %488 = vmatprep.subr.mxu0 0.0
    %489 = vmatpush1.xpose.msra.mxu0 0.0
    %490 = vmatprep.subr.mxu0 0.0
    %491 = vmatpush1.xpose.msra.mxu0 0.0
    %492 = vmatprep.subr.mxu0 0.0
    %493 = vmatpush1.xpose.msra.mxu0 0.0
    %494 = vmatprep.subr.mxu0 0.0
    %495 = vmatpush1.xpose.msra.mxu0 0.0
    %496 = vmatprep.subr.mxu0 0.0
    %497 = vmatpush1.xpose.msra.mxu0 0.0
    %498 = vmatprep.subr.mxu0 0.0
    %499 = vmatpush1.xpose.msra.mxu0 0.0
    %500 = vmatprep.subr.mxu0 0.0
    %501 = vmatpush1.xpose.msra.mxu0 0.0
    %502 = vmatprep.subr.mxu0 0.0
    %503 = vmatpush1.xpose.msra.mxu0 0.0
    %504 = vmatprep.subr.mxu0 0.0
    %505 = vmatpush1.xpose.msra.mxu0 0.0
    %506 = vmatprep.subr.mxu0 0.0
    %507 = vmatpush1.xpose.msra.mxu0 0.0
    %508 = vmatprep.subr.mxu0 0.0
    %509 = vmatpush1.xpose.msra.mxu0 0.0
    %510 = vmatprep.subr.mxu0 0.0
    %511 = vmatpush1.xpose.msra.mxu0 0.0
    %512 = vmatprep.subr.mxu0 0.0
    %513 = vmatpush1.xpose.msra.mxu0 0.0
    %514 = vmatprep.subr.mxu0 0.0
    %515 = vmatpush1.xpose.msra.mxu0 0.0
    %516 = vmatprep.subr.mxu0 0.0
    %517 = vmatpush1.xpose.msra.mxu0 0.0
    %518 = vmatprep.subr.mxu0 0.0
    %519 = vmatpush1.xpose.msra.mxu0 0.0
    %520 = vmatprep.subr.mxu0 0.0
    %521 = vmatpush1.xpose.msra.mxu0 0.0
    %522 = vmatprep.subr.mxu0 0.0
    %523 = vmatpush1.xpose.msra.mxu0 0.0
    %524 = vmatprep.subr.mxu0 0.0
    %525 = vmatpush1.xpose.msra.mxu0 0.0
    %526 = vmatprep.subr.mxu0 0.0
    %527 = vmatpush1.xpose.msra.mxu0 0.0
    %528 = vmatprep.subr.mxu0 0.0
    %529 = vmatpush1.xpose.msra.mxu0 0.0
    %530 = vmatprep.subr.mxu0 0.0
    %531 = vmatpush1.xpose.msra.mxu0 0.0
    %532 = vmatprep.subr.mxu0 0.0
    %533 = vmatpush1.xpose.msra.mxu0 0.0
    %534 = vmatprep.subr.mxu0 0.0
    %535 = vmatpush1.xpose.msra.mxu0 0.0
    %536 = vmatprep.subr.mxu0 0.0
    %537 = vmatpush1.xpose.msra.mxu0 0.0
    %538 = vmatprep.mubr.f32.mxu0 0.0
    %539 = vmatmul.mubr.f32.gmra.mrb[0].mxu0 %v466
    %v540 = vpop.f32.mrb[0].mxu0
    %v541 = vadd.f32 0.0, %v540
    %v542 = vpop.f32.mrb[0].mxu0
    %543 = vmatprep.mubr.f32.mxu0 0.0
    %544 = vmatmul.mubr.f32.gmra.mrb[0].mxu0 %v468
    %v545 = vpop.f32.mrb[0].mxu0
    %v546 = vadd.f32 0.0, %v545
    %v547 = vpop.f32.mrb[0].mxu0
    %548 = vdwg.mxu0
    %v549 = vmul.f32 %v541, 0.35355338
    %v550 = vmul.f32 %v546, 0.35355338
    %v551 = vadd.f32 %v549, %v63
    %v552 = vadd.f32 %v550, %v64
    %v553 = vsel %vm347, %v551, -inf
    %554 = vmax.xlane.f32.xlu0 %v553
    %v555 = vpop.xlane.xlu0 %554
    %v556 = vsel %vm347, %v552, -inf
    %557 = vmax.xlane.f32.xlu0 %v556
    %v558 = vpop.xlane.xlu0 %557
    %v559 = vsub.f32 %v551, %v555
    %v560 = vsub.f32 %v552, %v558
    %v561 = vmul.f32 %v559, 1.442695
    %v562 = vpow.pop %v561
    %v563 = vmul.f32 %v560, 1.442695
    %v564 = vpow.pop %v563
    %v565 = vsel %vm347, %v562, 0.0
    %566 = vadd.xlane.f32.xlu0 %v565
    %v567 = vpop.xlane.xlu0 %566
    %v568 = vsel %vm347, %v564, 0.0
    %569 = vadd.xlane.f32.xlu0 %v568
    %v570 = vpop.xlane.xlu0 %569
    %v571 = vrcp.pop %v567
    %v572 = vrcp.pop %v570
    %v573 = vmul.f32 %v562, %v571
    %v574 = vmul.f32 %v564, %v572
    %575 = vrot.lane.b32.xlu0 %v246, 56
    %v576 = vpop.permute.xlu0 %575
    %577 = vrot.lane.b32.xlu0 %v251, 56
    %v578 = vpop.permute.xlu0 %577
    %v582 = vsel %vm347, %v573, 0
    %v585 = vsel %vm347, %v574, 0
    %587 = vmatprep.subr.mxu0 0.0
    %588 = vmatpush1.msra.mxu0 %v576
    %589 = vmatprep.subr.mxu0 0.0
    %590 = vmatpush1.msra.mxu0 %v578
    %591 = vmatprep.subr.mxu0 0.0
    %592 = vmatpush1.msra.mxu0 0.0
    %593 = vmatprep.subr.mxu0 0.0
    %594 = vmatpush1.msra.mxu0 0.0
    %595 = vmatprep.subr.mxu0 0.0
    %596 = vmatpush1.msra.mxu0 0.0
    %597 = vmatprep.subr.mxu0 0.0
    %598 = vmatpush1.msra.mxu0 0.0
    %599 = vmatprep.subr.mxu0 0.0
    %600 = vmatpush1.msra.mxu0 0.0
    %601 = vmatprep.subr.mxu0 0.0
    %602 = vmatpush1.msra.mxu0 0.0
    %603 = vmatprep.subr.mxu0 0.0
    %604 = vmatpush1.msra.mxu0 0.0
    %605 = vmatprep.subr.mxu0 0.0
    %606 = vmatpush1.msra.mxu0 0.0
    %607 = vmatprep.subr.mxu0 0.0
    %608 = vmatpush1.msra.mxu0 0.0
    %609 = vmatprep.subr.mxu0 0.0
    %610 = vmatpush1.msra.mxu0 0.0
    %611 = vmatprep.subr.mxu0 0.0
    %612 = vmatpush1.msra.mxu0 0.0
    %613 = vmatprep.subr.mxu0 0.0
    %614 = vmatpush1.msra.mxu0 0.0
    %615 = vmatprep.subr.mxu0 0.0
    %616 = vmatpush1.msra.mxu0 0.0
    %617 = vmatprep.subr.mxu0 0.0
    %618 = vmatpush1.msra.mxu0 0.0
    %619 = vmatprep.subr.mxu0 0.0
    %620 = vmatpush1.msra.mxu0 0.0
    %621 = vmatprep.subr.mxu0 0.0
    %622 = vmatpush1.msra.mxu0 0.0
    %623 = vmatprep.subr.mxu0 0.0
    %624 = vmatpush1.msra.mxu0 0.0
    %625 = vmatprep.subr.mxu0 0.0
    %626 = vmatpush1.msra.mxu0 0.0
    %627 = vmatprep.subr.mxu0 0.0
    %628 = vmatpush1.msra.mxu0 0.0
    %629 = vmatprep.subr.mxu0 0.0
    %630 = vmatpush1.msra.mxu0 0.0
    %631 = vmatprep.subr.mxu0 0.0
    %632 = vmatpush1.msra.mxu0 0.0
    %633 = vmatprep.subr.mxu0 0.0
    %634 = vmatpush1.msra.mxu0 0.0
    %635 = vmatprep.subr.mxu0 0.0
    %636 = vmatpush1.msra.mxu0 0.0
    %637 = vmatprep.subr.mxu0 0.0
    %638 = vmatpush1.msra.mxu0 0.0
    %639 = vmatprep.subr.mxu0 0.0
    %640 = vmatpush1.msra.mxu0 0.0
    %641 = vmatprep.subr.mxu0 0.0
    %642 = vmatpush1.msra.mxu0 0.0
    %643 = vmatprep.subr.mxu0 0.0
    %644 = vmatpush1.msra.mxu0 0.0
    %645 = vmatprep.subr.mxu0 0.0
    %646 = vmatpush1.msra.mxu0 0.0
    %647 = vmatprep.subr.mxu0 0.0
    %648 = vmatpush1.msra.mxu0 0.0
    %649 = vmatprep.subr.mxu0 0.0
    %650 = vmatpush1.msra.mxu0 0.0
    %651 = vmatprep.mubr.f32.mxu0 0.0
    %652 = vmatmul.mubr.f32.gmra.mrb[0].mxu0 %v582
    %v653 = vpop.f32.mrb[0].mxu0
    %v654 = vadd.f32 0.0, %v653
    %v655 = vpop.f32.mrb[0].mxu0
    %656 = vmatprep.mubr.f32.mxu0 0.0
    %657 = vmatmul.mubr.f32.gmra.mrb[0].mxu0 %v585
    %v658 = vpop.f32.mrb[0].mxu0
    %v659 = vadd.f32 0.0, %v658
    %v660 = vpop.f32.mrb[0].mxu0
    %661 = vdwg.mxu0
    %s662 = scalar_lea.vmem %s7, 8
    %v663 = vld [vmem:[%s662] sm:$0xff]
    %v665 = vsel %vm75, %v654, 0
    %v668 = vsel %vm75, %v659, 0
    %670 = vmatprep.subr.mxu0 0.0
    %671 = vmatpush1.msra.mxu0 %v663
    %672 = vmatprep.subr.mxu0 0.0
    %673 = vmatpush1.msra.mxu0 0.0
    %674 = vmatprep.subr.mxu0 0.0
    %675 = vmatpush1.msra.mxu0 0.0
    %676 = vmatprep.subr.mxu0 0.0
    %677 = vmatpush1.msra.mxu0 0.0
    %678 = vmatprep.subr.mxu0 0.0
    %679 = vmatpush1.msra.mxu0 0.0
    %680 = vmatprep.subr.mxu0 0.0
    %681 = vmatpush1.msra.mxu0 0.0
    %682 = vmatprep.subr.mxu0 0.0
    %683 = vmatpush1.msra.mxu0 0.0
    %684 = vmatprep.subr.mxu0 0.0
    %685 = vmatpush1.msra.mxu0 0.0
    %686 = vmatprep.subr.mxu0 0.0
    %687 = vmatpush1.msra.mxu0 0.0
    %688 = vmatprep.subr.mxu0 0.0
    %689 = vmatpush1.msra.mxu0 0.0
    %690 = vmatprep.subr.mxu0 0.0
    %691 = vmatpush1.msra.mxu0 0.0
    %692 = vmatprep.subr.mxu0 0.0
    %693 = vmatpush1.msra.mxu0 0.0
    %694 = vmatprep.subr.mxu0 0.0
    %695 = vmatpush1.msra.mxu0 0.0
    %696 = vmatprep.subr.mxu0 0.0
    %697 = vmatpush1.msra.mxu0 0.0
    %698 = vmatprep.subr.mxu0 0.0
    %699 = vmatpush1.msra.mxu0 0.0
    %700 = vmatprep.subr.mxu0 0.0
    %701 = vmatpush1.msra.mxu0 0.0
    %702 = vmatprep.subr.mxu0 0.0
    %703 = vmatpush1.msra.mxu0 0.0
    %704 = vmatprep.subr.mxu0 0.0
    %705 = vmatpush1.msra.mxu0 0.0
    %706 = vmatprep.subr.mxu0 0.0
    %707 = vmatpush1.msra.mxu0 0.0
    %708 = vmatprep.subr.mxu0 0.0
    %709 = vmatpush1.msra.mxu0 0.0
    %710 = vmatprep.subr.mxu0 0.0
    %711 = vmatpush1.msra.mxu0 0.0
    %712 = vmatprep.subr.mxu0 0.0
    %713 = vmatpush1.msra.mxu0 0.0
    %714 = vmatprep.subr.mxu0 0.0
    %715 = vmatpush1.msra.mxu0 0.0
    %716 = vmatprep.subr.mxu0 0.0
    %717 = vmatpush1.msra.mxu0 0.0
    %718 = vmatprep.subr.mxu0 0.0
    %719 = vmatpush1.msra.mxu0 0.0
    %720 = vmatprep.subr.mxu0 0.0
    %721 = vmatpush1.msra.mxu0 0.0
    %722 = vmatprep.subr.mxu0 0.0
    %723 = vmatpush1.msra.mxu0 0.0
    %724 = vmatprep.subr.mxu0 0.0
    %725 = vmatpush1.msra.mxu0 0.0
    %726 = vmatprep.subr.mxu0 0.0
    %727 = vmatpush1.msra.mxu0 0.0
    %728 = vmatprep.subr.mxu0 0.0
    %729 = vmatpush1.msra.mxu0 0.0
    %730 = vmatprep.subr.mxu0 0.0
    %731 = vmatpush1.msra.mxu0 0.0
    %732 = vmatprep.subr.mxu0 0.0
    %733 = vmatpush1.msra.mxu0 0.0
    %734 = vmatprep.mubr.f32.mxu0 0.0
    %735 = vmatmul.mubr.f32.gmra.mrb[0].mxu0 %v665
    %v736 = vpop.f32.mrb[0].mxu0
    %v737 = vadd.f32 0.0, %v736
    %v738 = vpop.f32.mrb[0].mxu0
    %739 = vmatprep.mubr.f32.mxu0 0.0
    %740 = vmatmul.mubr.f32.gmra.mrb[0].mxu0 %v668
    %v741 = vpop.f32.mrb[0].mxu0
    %v742 = vadd.f32 0.0, %v741
    %v743 = vpop.f32.mrb[0].mxu0
    %744 = vdwg.mxu0
    %v746 = vsel %vm75, %v449, 0
    %v749 = vsel %vm75, %v454, 0
    %751 = vmatprep.subr.mxu0 0.0
    %752 = vmatpush1.msra.mxu0 %v457
    %753 = vmatprep.subr.mxu0 0.0
    %754 = vmatpush1.msra.mxu0 0.0
    %755 = vmatprep.subr.mxu0 0.0
    %756 = vmatpush1.msra.mxu0 0.0
    %757 = vmatprep.subr.mxu0 0.0
    %758 = vmatpush1.msra.mxu0 0.0
    %759 = vmatprep.subr.mxu0 0.0
    %760 = vmatpush1.msra.mxu0 0.0
    %761 = vmatprep.subr.mxu0 0.0
    %762 = vmatpush1.msra.mxu0 0.0
    %763 = vmatprep.subr.mxu0 0.0
    %764 = vmatpush1.msra.mxu0 0.0
    %765 = vmatprep.subr.mxu0 0.0
    %766 = vmatpush1.msra.mxu0 0.0
    %767 = vmatprep.subr.mxu0 0.0
    %768 = vmatpush1.msra.mxu0 0.0
    %769 = vmatprep.subr.mxu0 0.0
    %770 = vmatpush1.msra.mxu0 0.0
    %771 = vmatprep.subr.mxu0 0.0
    %772 = vmatpush1.msra.mxu0 0.0
    %773 = vmatprep.subr.mxu0 0.0
    %774 = vmatpush1.msra.mxu0 0.0
    %775 = vmatprep.subr.mxu0 0.0
    %776 = vmatpush1.msra.mxu0 0.0
    %777 = vmatprep.subr.mxu0 0.0
    %778 = vmatpush1.msra.mxu0 0.0
    %779 = vmatprep.subr.mxu0 0.0
    %780 = vmatpush1.msra.mxu0 0.0
    %781 = vmatprep.subr.mxu0 0.0
    %782 = vmatpush1.msra.mxu0 0.0
    %783 = vmatprep.subr.mxu0 0.0
    %784 = vmatpush1.msra.mxu0 0.0
    %785 = vmatprep.subr.mxu0 0.0
    %786 = vmatpush1.msra.mxu0 0.0
    %787 = vmatprep.subr.mxu0 0.0
    %788 = vmatpush1.msra.mxu0 0.0
    %789 = vmatprep.subr.mxu0 0.0
    %790 = vmatpush1.msra.mxu0 0.0
    %791 = vmatprep.subr.mxu0 0.0
    %792 = vmatpush1.msra.mxu0 0.0
    %793 = vmatprep.subr.mxu0 0.0
    %794 = vmatpush1.msra.mxu0 0.0
    %795 = vmatprep.subr.mxu0 0.0
    %796 = vmatpush1.msra.mxu0 0.0
    %797 = vmatprep.subr.mxu0 0.0
    %798 = vmatpush1.msra.mxu0 0.0
    %799 = vmatprep.subr.mxu0 0.0
    %800 = vmatpush1.msra.mxu0 0.0
    %801 = vmatprep.subr.mxu0 0.0
    %802 = vmatpush1.msra.mxu0 0.0
    %803 = vmatprep.subr.mxu0 0.0
    %804 = vmatpush1.msra.mxu0 0.0
    %805 = vmatprep.subr.mxu0 0.0
    %806 = vmatpush1.msra.mxu0 0.0
    %807 = vmatprep.subr.mxu0 0.0
    %808 = vmatpush1.msra.mxu0 0.0
    %809 = vmatprep.subr.mxu0 0.0
    %810 = vmatpush1.msra.mxu0 0.0
    %811 = vmatprep.subr.mxu0 0.0
    %812 = vmatpush1.msra.mxu0 0.0
    %813 = vmatprep.subr.mxu0 0.0
    %814 = vmatpush1.msra.mxu0 0.0
    %815 = vmatprep.mubr.f32.mxu0 0.0
    %816 = vmatmul.mubr.f32.gmra.mrb[0].mxu0 %v746
    %v817 = vpop.f32.mrb[0].mxu0
    %v818 = vadd.f32 %v737, %v817
    %v819 = vpop.f32.mrb[0].mxu0
    %820 = vmatprep.mubr.f32.mxu0 0.0
    %821 = vmatmul.mubr.f32.gmra.mrb[0].mxu0 %v749
    %v822 = vpop.f32.mrb[0].mxu0
    %v823 = vadd.f32 %v742, %v822
    %v824 = vpop.f32.mrb[0].mxu0
    %825 = vdwg.mxu0
    %826 = vrot.lane.b32.xlu0 %v246, 112
    %v827 = vpop.permute.xlu0 %826
    %828 = vrot.lane.b32.xlu0 %v251, 112
    %v829 = vpop.permute.xlu0 %828
    %830 = vrot.lane.b32.xlu0 %v246, 80
    %v831 = vpop.permute.xlu0 %830
    %832 = vrot.lane.b32.xlu0 %v251, 80
    %v833 = vpop.permute.xlu0 %832
    %v834 = vsel %vm75, %v827, 0
    %v836 = vsel %vm75, %v829, 0
    %v838 = vsel %vm75, %v831, 0
    %v840 = vsel %vm75, %v833, 0
    %842 = vmatprep.subr.mxu0 0.0
    %843 = vmatpush1.xpose.msra.mxu0 %v838
    %844 = vmatprep.subr.mxu0 0.0
    %845 = vmatpush1.xpose.msra.mxu0 %v840
    %846 = vmatprep.subr.mxu0 0.0
    %847 = vmatpush1.xpose.msra.mxu0 0.0
    %848 = vmatprep.subr.mxu0 0.0
    %849 = vmatpush1.xpose.msra.mxu0 0.0
    %850 = vmatprep.subr.mxu0 0.0
    %851 = vmatpush1.xpose.msra.mxu0 0.0
    %852 = vmatprep.subr.mxu0 0.0
    %853 = vmatpush1.xpose.msra.mxu0 0.0
    %854 = vmatprep.subr.mxu0 0.0
    %855 = vmatpush1.xpose.msra.mxu0 0.0
    %856 = vmatprep.subr.mxu0 0.0
    %857 = vmatpush1.xpose.msra.mxu0 0.0
    %858 = vmatprep.subr.mxu0 0.0
    %859 = vmatpush1.xpose.msra.mxu0 0.0
    %860 = vmatprep.subr.mxu0 0.0
    %861 = vmatpush1.xpose.msra.mxu0 0.0
    %862 = vmatprep.subr.mxu0 0.0
    %863 = vmatpush1.xpose.msra.mxu0 0.0
    %864 = vmatprep.subr.mxu0 0.0
    %865 = vmatpush1.xpose.msra.mxu0 0.0
    %866 = vmatprep.subr.mxu0 0.0
    %867 = vmatpush1.xpose.msra.mxu0 0.0
    %868 = vmatprep.subr.mxu0 0.0
    %869 = vmatpush1.xpose.msra.mxu0 0.0
    %870 = vmatprep.subr.mxu0 0.0
    %871 = vmatpush1.xpose.msra.mxu0 0.0
    %872 = vmatprep.subr.mxu0 0.0
    %873 = vmatpush1.xpose.msra.mxu0 0.0
    %874 = vmatprep.subr.mxu0 0.0
    %875 = vmatpush1.xpose.msra.mxu0 0.0
    %876 = vmatprep.subr.mxu0 0.0
    %877 = vmatpush1.xpose.msra.mxu0 0.0
    %878 = vmatprep.subr.mxu0 0.0
    %879 = vmatpush1.xpose.msra.mxu0 0.0
    %880 = vmatprep.subr.mxu0 0.0
    %881 = vmatpush1.xpose.msra.mxu0 0.0
    %882 = vmatprep.subr.mxu0 0.0
    %883 = vmatpush1.xpose.msra.mxu0 0.0
    %884 = vmatprep.subr.mxu0 0.0
    %885 = vmatpush1.xpose.msra.mxu0 0.0
    %886 = vmatprep.subr.mxu0 0.0
    %887 = vmatpush1.xpose.msra.mxu0 0.0
    %888 = vmatprep.subr.mxu0 0.0
    %889 = vmatpush1.xpose.msra.mxu0 0.0
    %890 = vmatprep.subr.mxu0 0.0
    %891 = vmatpush1.xpose.msra.mxu0 0.0
    %892 = vmatprep.subr.mxu0 0.0
    %893 = vmatpush1.xpose.msra.mxu0 0.0
    %894 = vmatprep.subr.mxu0 0.0
    %895 = vmatpush1.xpose.msra.mxu0 0.0
    %896 = vmatprep.subr.mxu0 0.0
    %897 = vmatpush1.xpose.msra.mxu0 0.0
    %898 = vmatprep.subr.mxu0 0.0
    %899 = vmatpush1.xpose.msra.mxu0 0.0
    %900 = vmatprep.subr.mxu0 0.0
    %901 = vmatpush1.xpose.msra.mxu0 0.0
    %902 = vmatprep.subr.mxu0 0.0
    %903 = vmatpush1.xpose.msra.mxu0 0.0
    %904 = vmatprep.subr.mxu0 0.0
    %905 = vmatpush1.xpose.msra.mxu0 0.0
    %906 = vmatprep.mubr.f32.mxu0 0.0
    %907 = vmatmul.mubr.f32.gmra.mrb[0].mxu0 %v834
    %v908 = vpop.f32.mrb[0].mxu0
    %v909 = vadd.f32 0.0, %v908
    %v910 = vpop.f32.mrb[0].mxu0
    %911 = vmatprep.mubr.f32.mxu0 0.0
    %912 = vmatmul.mubr.f32.gmra.mrb[0].mxu0 %v836
    %v913 = vpop.f32.mrb[0].mxu0
    %v914 = vadd.f32 0.0, %v913
    %v915 = vpop.f32.mrb[0].mxu0
    %916 = vdwg.mxu0
    %v917 = vmul.f32 %v909, 0.35355338
    %v918 = vmul.f32 %v914, 0.35355338
    %v919 = vadd.f32 %v917, %v63
    %v920 = vadd.f32 %v918, %v64
    %v921 = vsel %vm347, %v919, -inf
    %922 = vmax.xlane.f32.xlu0 %v921
    %v923 = vpop.xlane.xlu0 %922
    %v924 = vsel %vm347, %v920, -inf
    %925 = vmax.xlane.f32.xlu0 %v924
    %v926 = vpop.xlane.xlu0 %925
    %v927 = vsub.f32 %v919, %v923
    %v928 = vsub.f32 %v920, %v926
    %v929 = vmul.f32 %v927, 1.442695
    %v930 = vpow.pop %v929
    %v931 = vmul.f32 %v928, 1.442695
    %v932 = vpow.pop %v931
    %v933 = vsel %vm347, %v930, 0.0
    %934 = vadd.xlane.f32.xlu0 %v933
    %v935 = vpop.xlane.xlu0 %934
    %v936 = vsel %vm347, %v932, 0.0
    %937 = vadd.xlane.f32.xlu0 %v936
    %v938 = vpop.xlane.xlu0 %937
    %v939 = vrcp.pop %v935
    %v940 = vrcp.pop %v938
    %v941 = vmul.f32 %v930, %v939
    %v942 = vmul.f32 %v932, %v940
    %943 = vrot.lane.b32.xlu0 %v246, 48
    %v944 = vpop.permute.xlu0 %943
    %945 = vrot.lane.b32.xlu0 %v251, 48
    %v946 = vpop.permute.xlu0 %945
    %v950 = vsel %vm347, %v941, 0
    %v953 = vsel %vm347, %v942, 0
    %955 = vmatprep.subr.mxu0 0.0
    %956 = vmatpush1.msra.mxu0 %v944
    %957 = vmatprep.subr.mxu0 0.0
    %958 = vmatpush1.msra.mxu0 %v946
    %959 = vmatprep.subr.mxu0 0.0
    %960 = vmatpush1.msra.mxu0 0.0
    %961 = vmatprep.subr.mxu0 0.0
    %962 = vmatpush1.msra.mxu0 0.0
    %963 = vmatprep.subr.mxu0 0.0
    %964 = vmatpush1.msra.mxu0 0.0
    %965 = vmatprep.subr.mxu0 0.0
    %966 = vmatpush1.msra.mxu0 0.0
    %967 = vmatprep.subr.mxu0 0.0
    %968 = vmatpush1.msra.mxu0 0.0
    %969 = vmatprep.subr.mxu0 0.0
    %970 = vmatpush1.msra.mxu0 0.0
    %971 = vmatprep.subr.mxu0 0.0
    %972 = vmatpush1.msra.mxu0 0.0
    %973 = vmatprep.subr.mxu0 0.0
    %974 = vmatpush1.msra.mxu0 0.0
    %975 = vmatprep.subr.mxu0 0.0
    %976 = vmatpush1.msra.mxu0 0.0
    %977 = vmatprep.subr.mxu0 0.0
    %978 = vmatpush1.msra.mxu0 0.0
    %979 = vmatprep.subr.mxu0 0.0
    %980 = vmatpush1.msra.mxu0 0.0
    %981 = vmatprep.subr.mxu0 0.0
    %982 = vmatpush1.msra.mxu0 0.0
    %983 = vmatprep.subr.mxu0 0.0
    %984 = vmatpush1.msra.mxu0 0.0
    %985 = vmatprep.subr.mxu0 0.0
    %986 = vmatpush1.msra.mxu0 0.0
    %987 = vmatprep.subr.mxu0 0.0
    %988 = vmatpush1.msra.mxu0 0.0
    %989 = vmatprep.subr.mxu0 0.0
    %990 = vmatpush1.msra.mxu0 0.0
    %991 = vmatprep.subr.mxu0 0.0
    %992 = vmatpush1.msra.mxu0 0.0
    %993 = vmatprep.subr.mxu0 0.0
    %994 = vmatpush1.msra.mxu0 0.0
    %995 = vmatprep.subr.mxu0 0.0
    %996 = vmatpush1.msra.mxu0 0.0
    %997 = vmatprep.subr.mxu0 0.0
    %998 = vmatpush1.msra.mxu0 0.0
    %999 = vmatprep.subr.mxu0 0.0
    %1000 = vmatpush1.msra.mxu0 0.0
    %1001 = vmatprep.subr.mxu0 0.0
    %1002 = vmatpush1.msra.mxu0 0.0
    %1003 = vmatprep.subr.mxu0 0.0
    %1004 = vmatpush1.msra.mxu0 0.0
    %1005 = vmatprep.subr.mxu0 0.0
    %1006 = vmatpush1.msra.mxu0 0.0
    %1007 = vmatprep.subr.mxu0 0.0
    %1008 = vmatpush1.msra.mxu0 0.0
    %1009 = vmatprep.subr.mxu0 0.0
    %1010 = vmatpush1.msra.mxu0 0.0
    %1011 = vmatprep.subr.mxu0 0.0
    %1012 = vmatpush1.msra.mxu0 0.0
    %1013 = vmatprep.subr.mxu0 0.0
    %1014 = vmatpush1.msra.mxu0 0.0
    %1015 = vmatprep.subr.mxu0 0.0
    %1016 = vmatpush1.msra.mxu0 0.0
    %1017 = vmatprep.subr.mxu0 0.0
    %1018 = vmatpush1.msra.mxu0 0.0
    %1019 = vmatprep.mubr.f32.mxu0 0.0
    %1020 = vmatmul.mubr.f32.gmra.mrb[0].mxu0 %v950
    %v1021 = vpop.f32.mrb[0].mxu0
    %v1022 = vadd.f32 0.0, %v1021
    %v1023 = vpop.f32.mrb[0].mxu0
    %1024 = vmatprep.mubr.f32.mxu0 0.0
    %1025 = vmatmul.mubr.f32.gmra.mrb[0].mxu0 %v953
    %v1026 = vpop.f32.mrb[0].mxu0
    %v1027 = vadd.f32 0.0, %v1026
    %v1028 = vpop.f32.mrb[0].mxu0
    %1029 = vdwg.mxu0
    %s1030 = scalar_lea.vmem %s7, 16
    %v1031 = vld [vmem:[%s1030] sm:$0xff]
    %v1033 = vsel %vm75, %v1022, 0
    %v1036 = vsel %vm75, %v1027, 0
    %1038 = vmatprep.subr.mxu0 0.0
    %1039 = vmatpush1.msra.mxu0 %v1031
    %1040 = vmatprep.subr.mxu0 0.0
    %1041 = vmatpush1.msra.mxu0 0.0
    %1042 = vmatprep.subr.mxu0 0.0
    %1043 = vmatpush1.msra.mxu0 0.0
    %1044 = vmatprep.subr.mxu0 0.0
    %1045 = vmatpush1.msra.mxu0 0.0
    %1046 = vmatprep.subr.mxu0 0.0
    %1047 = vmatpush1.msra.mxu0 0.0
    %1048 = vmatprep.subr.mxu0 0.0
    %1049 = vmatpush1.msra.mxu0 0.0
    %1050 = vmatprep.subr.mxu0 0.0
    %1051 = vmatpush1.msra.mxu0 0.0
    %1052 = vmatprep.subr.mxu0 0.0
    %1053 = vmatpush1.msra.mxu0 0.0
    %1054 = vmatprep.subr.mxu0 0.0
    %1055 = vmatpush1.msra.mxu0 0.0
    %1056 = vmatprep.subr.mxu0 0.0
    %1057 = vmatpush1.msra.mxu0 0.0
    %1058 = vmatprep.subr.mxu0 0.0
    %1059 = vmatpush1.msra.mxu0 0.0
    %1060 = vmatprep.subr.mxu0 0.0
    %1061 = vmatpush1.msra.mxu0 0.0
    %1062 = vmatprep.subr.mxu0 0.0
    %1063 = vmatpush1.msra.mxu0 0.0
    %1064 = vmatprep.subr.mxu0 0.0
    %1065 = vmatpush1.msra.mxu0 0.0
    %1066 = vmatprep.subr.mxu0 0.0
    %1067 = vmatpush1.msra.mxu0 0.0
    %1068 = vmatprep.subr.mxu0 0.0
    %1069 = vmatpush1.msra.mxu0 0.0
    %1070 = vmatprep.subr.mxu0 0.0
    %1071 = vmatpush1.msra.mxu0 0.0
    %1072 = vmatprep.subr.mxu0 0.0
    %1073 = vmatpush1.msra.mxu0 0.0
    %1074 = vmatprep.subr.mxu0 0.0
    %1075 = vmatpush1.msra.mxu0 0.0
    %1076 = vmatprep.subr.mxu0 0.0
    %1077 = vmatpush1.msra.mxu0 0.0
    %1078 = vmatprep.subr.mxu0 0.0
    %1079 = vmatpush1.msra.mxu0 0.0
    %1080 = vmatprep.subr.mxu0 0.0
    %1081 = vmatpush1.msra.mxu0 0.0
    %1082 = vmatprep.subr.mxu0 0.0
    %1083 = vmatpush1.msra.mxu0 0.0
    %1084 = vmatprep.subr.mxu0 0.0
    %1085 = vmatpush1.msra.mxu0 0.0
    %1086 = vmatprep.subr.mxu0 0.0
    %1087 = vmatpush1.msra.mxu0 0.0
    %1088 = vmatprep.subr.mxu0 0.0
    %1089 = vmatpush1.msra.mxu0 0.0
    %1090 = vmatprep.subr.mxu0 0.0
    %1091 = vmatpush1.msra.mxu0 0.0
    %1092 = vmatprep.subr.mxu0 0.0
    %1093 = vmatpush1.msra.mxu0 0.0
    %1094 = vmatprep.subr.mxu0 0.0
    %1095 = vmatpush1.msra.mxu0 0.0
    %1096 = vmatprep.subr.mxu0 0.0
    %1097 = vmatpush1.msra.mxu0 0.0
    %1098 = vmatprep.subr.mxu0 0.0
    %1099 = vmatpush1.msra.mxu0 0.0
    %1100 = vmatprep.subr.mxu0 0.0
    %1101 = vmatpush1.msra.mxu0 0.0
    %1102 = vmatprep.mubr.f32.mxu0 0.0
    %1103 = vmatmul.mubr.f32.gmra.mrb[0].mxu0 %v1033
    %v1104 = vpop.f32.mrb[0].mxu0
    %v1105 = vadd.f32 0.0, %v1104
    %v1106 = vpop.f32.mrb[0].mxu0
    %1107 = vmatprep.mubr.f32.mxu0 0.0
    %1108 = vmatmul.mubr.f32.gmra.mrb[0].mxu0 %v1036
    %v1109 = vpop.f32.mrb[0].mxu0
    %v1110 = vadd.f32 0.0, %v1109
    %v1111 = vpop.f32.mrb[0].mxu0
    %1112 = vdwg.mxu0
    %v1113 = vadd.f32 %v818, %v1105
    %v1114 = vadd.f32 %v823, %v1110
    %1115 = vrot.lane.b32.xlu0 %v246, 104
    %v1116 = vpop.permute.xlu0 %1115
    %1117 = vrot.lane.b32.xlu0 %v251, 104
    %v1118 = vpop.permute.xlu0 %1117
    %1119 = vrot.lane.b32.xlu0 %v246, 72
    %v1120 = vpop.permute.xlu0 %1119
    %1121 = vrot.lane.b32.xlu0 %v251, 72
    %v1122 = vpop.permute.xlu0 %1121
    %v1123 = vsel %vm75, %v1116, 0
    %v1125 = vsel %vm75, %v1118, 0
    %v1127 = vsel %vm75, %v1120, 0
    %v1129 = vsel %vm75, %v1122, 0
    %1131 = vmatprep.subr.mxu0 0.0
    %1132 = vmatpush1.xpose.msra.mxu0 %v1127
    %1133 = vmatprep.subr.mxu0 0.0
    %1134 = vmatpush1.xpose.msra.mxu0 %v1129
    %1135 = vmatprep.subr.mxu0 0.0
    %1136 = vmatpush1.xpose.msra.mxu0 0.0
    %1137 = vmatprep.subr.mxu0 0.0
    %1138 = vmatpush1.xpose.msra.mxu0 0.0
    %1139 = vmatprep.subr.mxu0 0.0
    %1140 = vmatpush1.xpose.msra.mxu0 0.0
    %1141 = vmatprep.subr.mxu0 0.0
    %1142 = vmatpush1.xpose.msra.mxu0 0.0
    %1143 = vmatprep.subr.mxu0 0.0
    %1144 = vmatpush1.xpose.msra.mxu0 0.0
    %1145 = vmatprep.subr.mxu0 0.0
    %1146 = vmatpush1.xpose.msra.mxu0 0.0
    %1147 = vmatprep.subr.mxu0 0.0
    %1148 = vmatpush1.xpose.msra.mxu0 0.0
    %1149 = vmatprep.subr.mxu0 0.0
    %1150 = vmatpush1.xpose.msra.mxu0 0.0
    %1151 = vmatprep.subr.mxu0 0.0
    %1152 = vmatpush1.xpose.msra.mxu0 0.0
    %1153 = vmatprep.subr.mxu0 0.0
    %1154 = vmatpush1.xpose.msra.mxu0 0.0
    %1155 = vmatprep.subr.mxu0 0.0
    %1156 = vmatpush1.xpose.msra.mxu0 0.0
    %1157 = vmatprep.subr.mxu0 0.0
    %1158 = vmatpush1.xpose.msra.mxu0 0.0
    %1159 = vmatprep.subr.mxu0 0.0
    %1160 = vmatpush1.xpose.msra.mxu0 0.0
    %1161 = vmatprep.subr.mxu0 0.0
    %1162 = vmatpush1.xpose.msra.mxu0 0.0
    %1163 = vmatprep.subr.mxu0 0.0
    %1164 = vmatpush1.xpose.msra.mxu0 0.0
    %1165 = vmatprep.subr.mxu0 0.0
    %1166 = vmatpush1.xpose.msra.mxu0 0.0
    %1167 = vmatprep.subr.mxu0 0.0
    %1168 = vmatpush1.xpose.msra.mxu0 0.0
    %1169 = vmatprep.subr.mxu0 0.0
    %1170 = vmatpush1.xpose.msra.mxu0 0.0
    %1171 = vmatprep.subr.mxu0 0.0
    %1172 = vmatpush1.xpose.msra.mxu0 0.0
    %1173 = vmatprep.subr.mxu0 0.0
    %1174 = vmatpush1.xpose.msra.mxu0 0.0
    %1175 = vmatprep.subr.mxu0 0.0
    %1176 = vmatpush1.xpose.msra.mxu0 0.0
    %1177 = vmatprep.subr.mxu0 0.0
    %1178 = vmatpush1.xpose.msra.mxu0 0.0
    %1179 = vmatprep.subr.mxu0 0.0
    %1180 = vmatpush1.xpose.msra.mxu0 0.0
    %1181 = vmatprep.subr.mxu0 0.0
    %1182 = vmatpush1.xpose.msra.mxu0 0.0
    %1183 = vmatprep.subr.mxu0 0.0
    %1184 = vmatpush1.xpose.msra.mxu0 0.0
    %1185 = vmatprep.subr.mxu0 0.0
    %1186 = vmatpush1.xpose.msra.mxu0 0.0
    %1187 = vmatprep.subr.mxu0 0.0
    %1188 = vmatpush1.xpose.msra.mxu0 0.0
    %1189 = vmatprep.subr.mxu0 0.0
    %1190 = vmatpush1.xpose.msra.mxu0 0.0
    %1191 = vmatprep.subr.mxu0 0.0
    %1192 = vmatpush1.xpose.msra.mxu0 0.0
    %1193 = vmatprep.subr.mxu0 0.0
    %1194 = vmatpush1.xpose.msra.mxu0 0.0
    %1195 = vmatprep.mubr.f32.mxu0 0.0
    %1196 = vmatmul.mubr.f32.gmra.mrb[0].mxu0 %v1123
    %v1197 = vpop.f32.mrb[0].mxu0
    %v1198 = vadd.f32 0.0, %v1197
    %v1199 = vpop.f32.mrb[0].mxu0
    %1200 = vmatprep.mubr.f32.mxu0 0.0
    %1201 = vmatmul.mubr.f32.gmra.mrb[0].mxu0 %v1125
    %v1202 = vpop.f32.mrb[0].mxu0
    %v1203 = vadd.f32 0.0, %v1202
    %v1204 = vpop.f32.mrb[0].mxu0
    %1205 = vdwg.mxu0
    %v1206 = vmul.f32 %v1198, 0.35355338
    %v1207 = vmul.f32 %v1203, 0.35355338
    %v1208 = vadd.f32 %v1206, %v63
    %v1209 = vadd.f32 %v1207, %v64
    %v1210 = vsel %vm347, %v1208, -inf
    %1211 = vmax.xlane.f32.xlu0 %v1210
    %v1212 = vpop.xlane.xlu0 %1211
    %v1213 = vsel %vm347, %v1209, -inf
    %1214 = vmax.xlane.f32.xlu0 %v1213
    %v1215 = vpop.xlane.xlu0 %1214
    %v1216 = vsub.f32 %v1208, %v1212
    %v1217 = vsub.f32 %v1209, %v1215
    %v1218 = vmul.f32 %v1216, 1.442695
    %v1219 = vpow.pop %v1218
    %v1220 = vmul.f32 %v1217, 1.442695
    %v1221 = vpow.pop %v1220
    %v1222 = vsel %vm347, %v1219, 0.0
    %1223 = vadd.xlane.f32.xlu0 %v1222
    %v1224 = vpop.xlane.xlu0 %1223
    %v1225 = vsel %vm347, %v1221, 0.0
    %1226 = vadd.xlane.f32.xlu0 %v1225
    %v1227 = vpop.xlane.xlu0 %1226
    %v1228 = vrcp.pop %v1224
    %v1229 = vrcp.pop %v1227
    %v1230 = vmul.f32 %v1219, %v1228
    %v1231 = vmul.f32 %v1221, %v1229
    %1232 = vrot.lane.b32.xlu0 %v246, 40
    %v1233 = vpop.permute.xlu0 %1232
    %1234 = vrot.lane.b32.xlu0 %v251, 40
    %v1235 = vpop.permute.xlu0 %1234
    %v1239 = vsel %vm347, %v1230, 0
    %v1242 = vsel %vm347, %v1231, 0
    %1244 = vmatprep.subr.mxu0 0.0
    %1245 = vmatpush1.msra.mxu0 %v1233
    %1246 = vmatprep.subr.mxu0 0.0
    %1247 = vmatpush1.msra.mxu0 %v1235
    %1248 = vmatprep.subr.mxu0 0.0
    %1249 = vmatpush1.msra.mxu0 0.0
    %1250 = vmatprep.subr.mxu0 0.0
    %1251 = vmatpush1.msra.mxu0 0.0
    %1252 = vmatprep.subr.mxu0 0.0
    %1253 = vmatpush1.msra.mxu0 0.0
    %1254 = vmatprep.subr.mxu0 0.0
    %1255 = vmatpush1.msra.mxu0 0.0
    %1256 = vmatprep.subr.mxu0 0.0
    %1257 = vmatpush1.msra.mxu0 0.0
    %1258 = vmatprep.subr.mxu0 0.0
    %1259 = vmatpush1.msra.mxu0 0.0
    %1260 = vmatprep.subr.mxu0 0.0
    %1261 = vmatpush1.msra.mxu0 0.0
    %1262 = vmatprep.subr.mxu0 0.0
    %1263 = vmatpush1.msra.mxu0 0.0
    %1264 = vmatprep.subr.mxu0 0.0
    %1265 = vmatpush1.msra.mxu0 0.0
    %1266 = vmatprep.subr.mxu0 0.0
    %1267 = vmatpush1.msra.mxu0 0.0
    %1268 = vmatprep.subr.mxu0 0.0
    %1269 = vmatpush1.msra.mxu0 0.0
    %1270 = vmatprep.subr.mxu0 0.0
    %1271 = vmatpush1.msra.mxu0 0.0
    %1272 = vmatprep.subr.mxu0 0.0
    %1273 = vmatpush1.msra.mxu0 0.0
    %1274 = vmatprep.subr.mxu0 0.0
    %1275 = vmatpush1.msra.mxu0 0.0
    %1276 = vmatprep.subr.mxu0 0.0
    %1277 = vmatpush1.msra.mxu0 0.0
    %1278 = vmatprep.subr.mxu0 0.0
    %1279 = vmatpush1.msra.mxu0 0.0
    %1280 = vmatprep.subr.mxu0 0.0
    %1281 = vmatpush1.msra.mxu0 0.0
    %1282 = vmatprep.subr.mxu0 0.0
    %1283 = vmatpush1.msra.mxu0 0.0
    %1284 = vmatprep.subr.mxu0 0.0
    %1285 = vmatpush1.msra.mxu0 0.0
    %1286 = vmatprep.subr.mxu0 0.0
    %1287 = vmatpush1.msra.mxu0 0.0
    %1288 = vmatprep.subr.mxu0 0.0
    %1289 = vmatpush1.msra.mxu0 0.0
    %1290 = vmatprep.subr.mxu0 0.0
    %1291 = vmatpush1.msra.mxu0 0.0
    %1292 = vmatprep.subr.mxu0 0.0
    %1293 = vmatpush1.msra.mxu0 0.0
    %1294 = vmatprep.subr.mxu0 0.0
    %1295 = vmatpush1.msra.mxu0 0.0
    %1296 = vmatprep.subr.mxu0 0.0
    %1297 = vmatpush1.msra.mxu0 0.0
    %1298 = vmatprep.subr.mxu0 0.0
    %1299 = vmatpush1.msra.mxu0 0.0
    %1300 = vmatprep.subr.mxu0 0.0
    %1301 = vmatpush1.msra.mxu0 0.0
    %1302 = vmatprep.subr.mxu0 0.0
    %1303 = vmatpush1.msra.mxu0 0.0
    %1304 = vmatprep.subr.mxu0 0.0
    %1305 = vmatpush1.msra.mxu0 0.0
    %1306 = vmatprep.subr.mxu0 0.0
    %1307 = vmatpush1.msra.mxu0 0.0
    %1308 = vmatprep.mubr.f32.mxu0 0.0
    %1309 = vmatmul.mubr.f32.gmra.mrb[0].mxu0 %v1239
    %v1310 = vpop.f32.mrb[0].mxu0
    %v1311 = vadd.f32 0.0, %v1310
    %v1312 = vpop.f32.mrb[0].mxu0
    %1313 = vmatprep.mubr.f32.mxu0 0.0
    %1314 = vmatmul.mubr.f32.gmra.mrb[0].mxu0 %v1242
    %v1315 = vpop.f32.mrb[0].mxu0
    %v1316 = vadd.f32 0.0, %v1315
    %v1317 = vpop.f32.mrb[0].mxu0
    %1318 = vdwg.mxu0
    %s1319 = scalar_lea.vmem %s7, 24
    %v1320 = vld [vmem:[%s1319] sm:$0xff]
    %v1322 = vsel %vm75, %v1311, 0
    %v1325 = vsel %vm75, %v1316, 0
    %1327 = vmatprep.subr.mxu0 0.0
    %1328 = vmatpush1.msra.mxu0 %v1320
    %1329 = vmatprep.subr.mxu0 0.0
    %1330 = vmatpush1.msra.mxu0 0.0
    %1331 = vmatprep.subr.mxu0 0.0
    %1332 = vmatpush1.msra.mxu0 0.0
    %1333 = vmatprep.subr.mxu0 0.0
    %1334 = vmatpush1.msra.mxu0 0.0
    %1335 = vmatprep.subr.mxu0 0.0
    %1336 = vmatpush1.msra.mxu0 0.0
    %1337 = vmatprep.subr.mxu0 0.0
    %1338 = vmatpush1.msra.mxu0 0.0
    %1339 = vmatprep.subr.mxu0 0.0
    %1340 = vmatpush1.msra.mxu0 0.0
    %1341 = vmatprep.subr.mxu0 0.0
    %1342 = vmatpush1.msra.mxu0 0.0
    %1343 = vmatprep.subr.mxu0 0.0
    %1344 = vmatpush1.msra.mxu0 0.0
    %1345 = vmatprep.subr.mxu0 0.0
    %1346 = vmatpush1.msra.mxu0 0.0
    %1347 = vmatprep.subr.mxu0 0.0
    %1348 = vmatpush1.msra.mxu0 0.0
    %1349 = vmatprep.subr.mxu0 0.0
    %1350 = vmatpush1.msra.mxu0 0.0
    %1351 = vmatprep.subr.mxu0 0.0
    %1352 = vmatpush1.msra.mxu0 0.0
    %1353 = vmatprep.subr.mxu0 0.0
    %1354 = vmatpush1.msra.mxu0 0.0
    %1355 = vmatprep.subr.mxu0 0.0
    %1356 = vmatpush1.msra.mxu0 0.0
    %1357 = vmatprep.subr.mxu0 0.0
    %1358 = vmatpush1.msra.mxu0 0.0
    %1359 = vmatprep.subr.mxu0 0.0
    %1360 = vmatpush1.msra.mxu0 0.0
    %1361 = vmatprep.subr.mxu0 0.0
    %1362 = vmatpush1.msra.mxu0 0.0
    %1363 = vmatprep.subr.mxu0 0.0
    %1364 = vmatpush1.msra.mxu0 0.0
    %1365 = vmatprep.subr.mxu0 0.0
    %1366 = vmatpush1.msra.mxu0 0.0
    %1367 = vmatprep.subr.mxu0 0.0
    %1368 = vmatpush1.msra.mxu0 0.0
    %1369 = vmatprep.subr.mxu0 0.0
    %1370 = vmatpush1.msra.mxu0 0.0
    %1371 = vmatprep.subr.mxu0 0.0
    %1372 = vmatpush1.msra.mxu0 0.0
    %1373 = vmatprep.subr.mxu0 0.0
    %1374 = vmatpush1.msra.mxu0 0.0
    %1375 = vmatprep.subr.mxu0 0.0
    %1376 = vmatpush1.msra.mxu0 0.0
    %1377 = vmatprep.subr.mxu0 0.0
    %1378 = vmatpush1.msra.mxu0 0.0
    %1379 = vmatprep.subr.mxu0 0.0
    %1380 = vmatpush1.msra.mxu0 0.0
    %1381 = vmatprep.subr.mxu0 0.0
    %1382 = vmatpush1.msra.mxu0 0.0
    %1383 = vmatprep.subr.mxu0 0.0
    %1384 = vmatpush1.msra.mxu0 0.0
    %1385 = vmatprep.subr.mxu0 0.0
    %1386 = vmatpush1.msra.mxu0 0.0
    %1387 = vmatprep.subr.mxu0 0.0
    %1388 = vmatpush1.msra.mxu0 0.0
    %1389 = vmatprep.subr.mxu0 0.0
    %1390 = vmatpush1.msra.mxu0 0.0
    %1391 = vmatprep.mubr.f32.mxu0 0.0
    %1392 = vmatmul.mubr.f32.gmra.mrb[0].mxu0 %v1322
    %v1393 = vpop.f32.mrb[0].mxu0
    %v1394 = vadd.f32 0.0, %v1393
    %v1395 = vpop.f32.mrb[0].mxu0
    %1396 = vmatprep.mubr.f32.mxu0 0.0
    %1397 = vmatmul.mubr.f32.gmra.mrb[0].mxu0 %v1325
    %v1398 = vpop.f32.mrb[0].mxu0
    %v1399 = vadd.f32 0.0, %v1398
    %v1400 = vpop.f32.mrb[0].mxu0
    %1401 = vdwg.mxu0
    %v1402 = vadd.f32 %v1113, %v1394
    %v1403 = vadd.f32 %v1114, %v1399
    %v1404 = vld [vmem:[%s8] sm:$0x1]
    %v1406 = vlaneseq
    %v1407 = vshrl.u32 %v1406, 7
    %v1408 = vsub.s32 0, %v1407
    %v1409 = vrot.slane %v1404, %v1408
    %v1411 = vadd.f32 %v1402, %v1409
    %v1412 = vadd.f32 %v1403, %v1409
    %v1413 = vadd.f32 %v159, %v1411
    %v1414 = vadd.f32 %v160, %v1412
    %v1415 = vld [vmem:[%s9] sm:$0x1]
    %v1416 = vld [vmem:[%s10] sm:$0x1]
    %v1417 = vsel %vm172, %v1413, 0.0
    %1418 = vadd.xlane.f32.xlu0 %v1417
    %v1419 = vpop.xlane.xlu0 %1418
    %v1420 = vsel %vm172, %v1414, 0.0
    %1421 = vadd.xlane.f32.xlu0 %v1420
    %v1422 = vpop.xlane.xlu0 %1421
    %v1423 = vrcp.pop 32.0
    %v1424 = vmul.f32 %v1419, %v1423
    %v1425 = vmul.f32 %v1422, %v1423
    %v1426 = vsub.f32 %v1413, %v1424
    %v1427 = vsub.f32 %v1414, %v1425
    %v1428 = vmul.f32 %v1426, %v1426
    %v1429 = vmul.f32 %v1427, %v1427
    %v1430 = vsel %vm172, %v1428, 0.0
    %1431 = vadd.xlane.f32.xlu0 %v1430
    %v1432 = vpop.xlane.xlu0 %1431
    %v1433 = vsel %vm172, %v1429, 0.0
    %1434 = vadd.xlane.f32.xlu0 %v1433
    %v1435 = vpop.xlane.xlu0 %1434
    %v1436 = vmul.f32 %v1432, %v1423
    %v1437 = vmul.f32 %v1435, %v1423
    %v1438 = vadd.f32 %v1436, 1e-05
    %v1439 = vadd.f32 %v1437, 1e-05
    %v1440 = vrsqrt.pop %v1438
    %v1441 = vrsqrt.pop %v1439
    %v1442 = vmul.f32 %v1426, %v1440
    %v1443 = vmul.f32 %v1427, %v1441
    %v1445 = vlaneseq
    %v1446 = vshrl.u32 %v1445, 7
    %v1447 = vsub.s32 0, %v1446
    %v1448 = vrot.slane %v1415, %v1447
    %v1450 = vmul.f32 %v1442, %v1448
    %v1451 = vmul.f32 %v1443, %v1448
    %v1453 = vlaneseq
    %v1454 = vshrl.u32 %v1453, 7
    %v1455 = vsub.s32 0, %v1454
    %v1456 = vrot.slane %v1416, %v1455
    %v1458 = vadd.f32 %v1450, %v1456
    %v1459 = vadd.f32 %v1451, %v1456
    %v1460 = vld [vmem:[%s11] sm:$0xff]
    %v1461 = vld [vmem:[%s11 + $0x8] sm:$0xff]
    %v1462 = vld [vmem:[%s11 + $0x10] sm:$0xff]
    %v1463 = vld [vmem:[%s11 + $0x18] sm:$0xff]
    %v1464 = vld [vmem:[%s12] sm:$0x1]
    %v1466 = vlaneseq
    %v1467 = vshrl.u32 %v1466, 7
    %v1468 = vsub.s32 0, %v1467
    %v1469 = vrot.slane %v1464, %v1468
    %v1472 = vsel %vm172, %v1458, 0
    %v1475 = vsel %vm172, %v1459, 0
    %1477 = vmatprep.subr.mxu0 0.0
    %1478 = vmatpush1.msra.mxu0 %v1460
    %1479 = vmatprep.subr.mxu0 0.0
    %1480 = vmatpush1.msra.mxu0 %v1461
    %1481 = vmatprep.subr.mxu0 0.0
    %1482 = vmatpush1.msra.mxu0 %v1462
    %1483 = vmatprep.subr.mxu0 0.0
    %1484 = vmatpush1.msra.mxu0 %v1463
    %1485 = vmatprep.subr.mxu0 0.0
    %1486 = vmatpush1.msra.mxu0 0.0
    %1487 = vmatprep.subr.mxu0 0.0
    %1488 = vmatpush1.msra.mxu0 0.0
    %1489 = vmatprep.subr.mxu0 0.0
    %1490 = vmatpush1.msra.mxu0 0.0
    %1491 = vmatprep.subr.mxu0 0.0
    %1492 = vmatpush1.msra.mxu0 0.0
    %1493 = vmatprep.subr.mxu0 0.0
    %1494 = vmatpush1.msra.mxu0 0.0
    %1495 = vmatprep.subr.mxu0 0.0
    %1496 = vmatpush1.msra.mxu0 0.0
    %1497 = vmatprep.subr.mxu0 0.0
    %1498 = vmatpush1.msra.mxu0 0.0
    %1499 = vmatprep.subr.mxu0 0.0
    %1500 = vmatpush1.msra.mxu0 0.0
    %1501 = vmatprep.subr.mxu0 0.0
    %1502 = vmatpush1.msra.mxu0 0.0
    %1503 = vmatprep.subr.mxu0 0.0
    %1504 = vmatpush1.msra.mxu0 0.0
    %1505 = vmatprep.subr.mxu0 0.0
    %1506 = vmatpush1.msra.mxu0 0.0
    %1507 = vmatprep.subr.mxu0 0.0
    %1508 = vmatpush1.msra.mxu0 0.0
    %1509 = vmatprep.subr.mxu0 0.0
    %1510 = vmatpush1.msra.mxu0 0.0
    %1511 = vmatprep.subr.mxu0 0.0
    %1512 = vmatpush1.msra.mxu0 0.0
    %1513 = vmatprep.subr.mxu0 0.0
    %1514 = vmatpush1.msra.mxu0 0.0
    %1515 = vmatprep.subr.mxu0 0.0
    %1516 = vmatpush1.msra.mxu0 0.0
    %1517 = vmatprep.subr.mxu0 0.0
    %1518 = vmatpush1.msra.mxu0 0.0
    %1519 = vmatprep.subr.mxu0 0.0
    %1520 = vmatpush1.msra.mxu0 0.0
    %1521 = vmatprep.subr.mxu0 0.0
    %1522 = vmatpush1.msra.mxu0 0.0
    %1523 = vmatprep.subr.mxu0 0.0
    %1524 = vmatpush1.msra.mxu0 0.0
    %1525 = vmatprep.subr.mxu0 0.0
    %1526 = vmatpush1.msra.mxu0 0.0
    %1527 = vmatprep.subr.mxu0 0.0
    %1528 = vmatpush1.msra.mxu0 0.0
    %1529 = vmatprep.subr.mxu0 0.0
    %1530 = vmatpush1.msra.mxu0 0.0
    %1531 = vmatprep.subr.mxu0 0.0
    %1532 = vmatpush1.msra.mxu0 0.0
    %1533 = vmatprep.subr.mxu0 0.0
    %1534 = vmatpush1.msra.mxu0 0.0
    %1535 = vmatprep.subr.mxu0 0.0
    %1536 = vmatpush1.msra.mxu0 0.0
    %1537 = vmatprep.subr.mxu0 0.0
    %1538 = vmatpush1.msra.mxu0 0.0
    %1539 = vmatprep.subr.mxu0 0.0
    %1540 = vmatpush1.msra.mxu0 0.0
    %1541 = vmatprep.mubr.f32.mxu0 0.0
    %1542 = vmatmul.mubr.f32.gmra.mrb[0].mxu0 %v1472
    %v1543 = vpop.f32.mrb[0].mxu0
    %v1544 = vadd.f32 %v1469, %v1543
    %v1545 = vpop.f32.mrb[0].mxu0
    %1546 = vmatprep.mubr.f32.mxu0 0.0
    %1547 = vmatmul.mubr.f32.gmra.mrb[0].mxu0 %v1475
    %v1548 = vpop.f32.mrb[0].mxu0
    %v1549 = vadd.f32 %v1469, %v1548
    %v1550 = vpop.f32.mrb[0].mxu0
    %1551 = vdwg.mxu0
    %v1552 = vmul.f32 %v1544, 0.5
    %v1553 = vmul.f32 %v1549, 0.5
    %v1554 = vmul.f32 %v1544, 0.70710677
    %v1555 = vmul.f32 %v1549, 0.70710677
    %v1556 = verf.f32.pop %v1554
    %v1557 = verf.f32.pop %v1555
    %v1558 = vadd.f32 %v1556, 1.0
    %v1559 = vadd.f32 %v1557, 1.0
    %v1560 = vmul.f32 %v1552, %v1558
    %v1561 = vmul.f32 %v1553, %v1559
    %v1562 = vld [vmem:[%s13] sm:$0xff]
    %v1563 = vld [vmem:[%s13 + $0x8] sm:$0xff]
    %v1564 = vld [vmem:[%s13 + $0x10] sm:$0xff]
    %v1565 = vld [vmem:[%s13 + $0x18] sm:$0xff]
    %v1566 = vld [vmem:[%s13 + $0x20] sm:$0xff]
    %v1567 = vld [vmem:[%s13 + $0x28] sm:$0xff]
    %v1568 = vld [vmem:[%s13 + $0x30] sm:$0xff]
    %v1569 = vld [vmem:[%s13 + $0x38] sm:$0xff]
    %v1570 = vld [vmem:[%s13 + $0x40] sm:$0xff]
    %v1571 = vld [vmem:[%s13 + $0x48] sm:$0xff]
    %v1572 = vld [vmem:[%s13 + $0x50] sm:$0xff]
    %v1573 = vld [vmem:[%s13 + $0x58] sm:$0xff]
    %v1574 = vld [vmem:[%s13 + $0x60] sm:$0xff]
    %v1575 = vld [vmem:[%s13 + $0x68] sm:$0xff]
    %v1576 = vld [vmem:[%s13 + $0x70] sm:$0xff]
    %v1577 = vld [vmem:[%s13 + $0x78] sm:$0xff]
    %v1578 = vld [vmem:[%s14] sm:$0x1]
    %v1580 = vlaneseq
    %v1581 = vshrl.u32 %v1580, 7
    %v1582 = vsub.s32 0, %v1581
    %v1583 = vrot.slane %v1578, %v1582
    %1585 = vmatprep.subr.mxu0 0.0
    %1586 = vmatpush1.msra.mxu0 %v1562
    %1587 = vmatprep.subr.mxu0 0.0
    %1588 = vmatpush1.msra.mxu0 %v1563
    %1589 = vmatprep.subr.mxu0 0.0
    %1590 = vmatpush1.msra.mxu0 %v1564
    %1591 = vmatprep.subr.mxu0 0.0
    %1592 = vmatpush1.msra.mxu0 %v1565
    %1593 = vmatprep.subr.mxu0 0.0
    %1594 = vmatpush1.msra.mxu0 %v1566
    %1595 = vmatprep.subr.mxu0 0.0
    %1596 = vmatpush1.msra.mxu0 %v1567
    %1597 = vmatprep.subr.mxu0 0.0
    %1598 = vmatpush1.msra.mxu0 %v1568
    %1599 = vmatprep.subr.mxu0 0.0
    %1600 = vmatpush1.msra.mxu0 %v1569
    %1601 = vmatprep.subr.mxu0 0.0
    %1602 = vmatpush1.msra.mxu0 %v1570
    %1603 = vmatprep.subr.mxu0 0.0
    %1604 = vmatpush1.msra.mxu0 %v1571
    %1605 = vmatprep.subr.mxu0 0.0
    %1606 = vmatpush1.msra.mxu0 %v1572
    %1607 = vmatprep.subr.mxu0 0.0
    %1608 = vmatpush1.msra.mxu0 %v1573
    %1609 = vmatprep.subr.mxu0 0.0
    %1610 = vmatpush1.msra.mxu0 %v1574
    %1611 = vmatprep.subr.mxu0 0.0
    %1612 = vmatpush1.msra.mxu0 %v1575
    %1613 = vmatprep.subr.mxu0 0.0
    %1614 = vmatpush1.msra.mxu0 %v1576
    %1615 = vmatprep.subr.mxu0 0.0
    %1616 = vmatpush1.msra.mxu0 %v1577
    %1617 = vmatprep.subr.mxu0 0.0
    %1618 = vmatpush1.msra.mxu0 0.0
    %1619 = vmatprep.subr.mxu0 0.0
    %1620 = vmatpush1.msra.mxu0 0.0
    %1621 = vmatprep.subr.mxu0 0.0
    %1622 = vmatpush1.msra.mxu0 0.0
    %1623 = vmatprep.subr.mxu0 0.0
    %1624 = vmatpush1.msra.mxu0 0.0
    %1625 = vmatprep.subr.mxu0 0.0
    %1626 = vmatpush1.msra.mxu0 0.0
    %1627 = vmatprep.subr.mxu0 0.0
    %1628 = vmatpush1.msra.mxu0 0.0
    %1629 = vmatprep.subr.mxu0 0.0
    %1630 = vmatpush1.msra.mxu0 0.0
    %1631 = vmatprep.subr.mxu0 0.0
    %1632 = vmatpush1.msra.mxu0 0.0
    %1633 = vmatprep.subr.mxu0 0.0
    %1634 = vmatpush1.msra.mxu0 0.0
    %1635 = vmatprep.subr.mxu0 0.0
    %1636 = vmatpush1.msra.mxu0 0.0
    %1637 = vmatprep.subr.mxu0 0.0
    %1638 = vmatpush1.msra.mxu0 0.0
    %1639 = vmatprep.subr.mxu0 0.0
    %1640 = vmatpush1.msra.mxu0 0.0
    %1641 = vmatprep.subr.mxu0 0.0
    %1642 = vmatpush1.msra.mxu0 0.0
    %1643 = vmatprep.subr.mxu0 0.0
    %1644 = vmatpush1.msra.mxu0 0.0
    %1645 = vmatprep.subr.mxu0 0.0
    %1646 = vmatpush1.msra.mxu0 0.0
    %1647 = vmatprep.subr.mxu0 0.0
    %1648 = vmatpush1.msra.mxu0 0.0
    %1649 = vmatprep.mubr.f32.mxu0 0.0
    %1650 = vmatmul.mubr.f32.gmra.mrb[0].mxu0 %v1560
    %v1651 = vpop.f32.mrb[0].mxu0
    %v1652 = vadd.f32 %v1583, %v1651
    %v1653 = vpop.f32.mrb[0].mxu0
    %1654 = vmatprep.mubr.f32.mxu0 0.0
    %1655 = vmatmul.mubr.f32.gmra.mrb[0].mxu0 %v1561
    %v1656 = vpop.f32.mrb[0].mxu0
    %v1657 = vadd.f32 %v1583, %v1656
    %v1658 = vpop.f32.mrb[0].mxu0
    %1659 = vdwg.mxu0
    %v1660 = vadd.f32 %v1458, %v1652
    %v1661 = vadd.f32 %v1459, %v1657
    %v1662 = vld [vmem:[%s15] sm:$0x1]
    %v1663 = vld [vmem:[%s16] sm:$0x1]
    %v1664 = vsel %vm172, %v1660, 0.0
    %1665 = vadd.xlane.f32.xlu0 %v1664
    %v1666 = vpop.xlane.xlu0 %1665
    %v1667 = vsel %vm172, %v1661, 0.0
    %1668 = vadd.xlane.f32.xlu0 %v1667
    %v1669 = vpop.xlane.xlu0 %1668
    %v1670 = vmul.f32 %v1666, %v1423
    %v1671 = vmul.f32 %v1669, %v1423
    %v1672 = vsub.f32 %v1660, %v1670
    %v1673 = vsub.f32 %v1661, %v1671
    %v1674 = vmul.f32 %v1672, %v1672
    %v1675 = vmul.f32 %v1673, %v1673
    %v1676 = vsel %vm172, %v1674, 0.0
    %1677 = vadd.xlane.f32.xlu0 %v1676
    %v1678 = vpop.xlane.xlu0 %1677
    %v1679 = vsel %vm172, %v1675, 0.0
    %1680 = vadd.xlane.f32.xlu0 %v1679
    %v1681 = vpop.xlane.xlu0 %1680
    %v1682 = vmul.f32 %v1678, %v1423
    %v1683 = vmul.f32 %v1681, %v1423
    %v1684 = vadd.f32 %v1682, 1e-05
    %v1685 = vadd.f32 %v1683, 1e-05
    %v1686 = vrsqrt.pop %v1684
    %v1687 = vrsqrt.pop %v1685
    %v1688 = vmul.f32 %v1672, %v1686
    %v1689 = vmul.f32 %v1673, %v1687
    %v1691 = vlaneseq
    %v1692 = vshrl.u32 %v1691, 7
    %v1693 = vsub.s32 0, %v1692
    %v1694 = vrot.slane %v1662, %v1693
    %v1696 = vmul.f32 %v1688, %v1694
    %v1697 = vmul.f32 %v1689, %v1694
    %v1699 = vlaneseq
    %v1700 = vshrl.u32 %v1699, 7
    %v1701 = vsub.s32 0, %v1700
    %v1702 = vrot.slane %v1663, %v1701
    %v1704 = vadd.f32 %v1696, %v1702
    %v1705 = vadd.f32 %v1697, %v1702
    %s1706 = scalar_lea.vmem %s5, 32
    %v1707 = vld [vmem:[%s1706] sm:$0xff]
    %v1708 = vld [vmem:[%s1706 + $0x8] sm:$0xff]
    %v1709 = vld [vmem:[%s1706 + $0x10] sm:$0xff]
    %v1710 = vld [vmem:[%s1706 + $0x18] sm:$0xff]
    %s1711 = scalar_lea.vmem %s6, 1
    %v1712 = vld [vmem:[%s1711] sm:$0x1]
    %v1714 = vlaneseq
    %v1715 = vshrl.u32 %v1714, 7
    %v1716 = vsub.s32 0, %v1715
    %v1717 = vrot.slane %v1712, %v1716
    %v1720 = vsel %vm172, %v1704, 0
    %v1723 = vsel %vm172, %v1705, 0
    %1725 = vmatprep.subr.mxu0 0.0
    %1726 = vmatpush1.msra.mxu0 %v1707
    %1727 = vmatprep.subr.mxu0 0.0
    %1728 = vmatpush1.msra.mxu0 %v1708
    %1729 = vmatprep.subr.mxu0 0.0
    %1730 = vmatpush1.msra.mxu0 %v1709
    %1731 = vmatprep.subr.mxu0 0.0
    %1732 = vmatpush1.msra.mxu0 %v1710
    %1733 = vmatprep.subr.mxu0 0.0
    %1734 = vmatpush1.msra.mxu0 0.0
    %1735 = vmatprep.subr.mxu0 0.0
    %1736 = vmatpush1.msra.mxu0 0.0
    %1737 = vmatprep.subr.mxu0 0.0
    %1738 = vmatpush1.msra.mxu0 0.0
    %1739 = vmatprep.subr.mxu0 0.0
    %1740 = vmatpush1.msra.mxu0 0.0
    %1741 = vmatprep.subr.mxu0 0.0
    %1742 = vmatpush1.msra.mxu0 0.0
    %1743 = vmatprep.subr.mxu0 0.0
    %1744 = vmatpush1.msra.mxu0 0.0
    %1745 = vmatprep.subr.mxu0 0.0
    %1746 = vmatpush1.msra.mxu0 0.0
    %1747 = vmatprep.subr.mxu0 0.0
    %1748 = vmatpush1.msra.mxu0 0.0
    %1749 = vmatprep.subr.mxu0 0.0
    %1750 = vmatpush1.msra.mxu0 0.0
    %1751 = vmatprep.subr.mxu0 0.0
    %1752 = vmatpush1.msra.mxu0 0.0
    %1753 = vmatprep.subr.mxu0 0.0
    %1754 = vmatpush1.msra.mxu0 0.0
    %1755 = vmatprep.subr.mxu0 0.0
    %1756 = vmatpush1.msra.mxu0 0.0
    %1757 = vmatprep.subr.mxu0 0.0
    %1758 = vmatpush1.msra.mxu0 0.0
    %1759 = vmatprep.subr.mxu0 0.0
    %1760 = vmatpush1.msra.mxu0 0.0
    %1761 = vmatprep.subr.mxu0 0.0
    %1762 = vmatpush1.msra.mxu0 0.0
    %1763 = vmatprep.subr.mxu0 0.0
    %1764 = vmatpush1.msra.mxu0 0.0
    %1765 = vmatprep.subr.mxu0 0.0
    %1766 = vmatpush1.msra.mxu0 0.0
    %1767 = vmatprep.subr.mxu0 0.0
    %1768 = vmatpush1.msra.mxu0 0.0
    %1769 = vmatprep.subr.mxu0 0.0
    %1770 = vmatpush1.msra.mxu0 0.0
    %1771 = vmatprep.subr.mxu0 0.0
    %1772 = vmatpush1.msra.mxu0 0.0
    %1773 = vmatprep.subr.mxu0 0.0
    %1774 = vmatpush1.msra.mxu0 0.0
    %1775 = vmatprep.subr.mxu0 0.0
    %1776 = vmatpush1.msra.mxu0 0.0
    %1777 = vmatprep.subr.mxu0 0.0
    %1778 = vmatpush1.msra.mxu0 0.0
    %1779 = vmatprep.subr.mxu0 0.0
    %1780 = vmatpush1.msra.mxu0 0.0
    %1781 = vmatprep.subr.mxu0 0.0
    %1782 = vmatpush1.msra.mxu0 0.0
    %1783 = vmatprep.subr.mxu0 0.0
    %1784 = vmatpush1.msra.mxu0 0.0
    %1785 = vmatprep.subr.mxu0 0.0
    %1786 = vmatpush1.msra.mxu0 0.0
    %1787 = vmatprep.subr.mxu0 0.0
    %1788 = vmatpush1.msra.mxu0 0.0
    %1789 = vmatprep.mubr.f32.mxu0 0.0
    %1790 = vmatmul.mubr.f32.gmra.mrb[0].mxu0 %v1720
    %v1791 = vpop.f32.mrb[0].mxu0
    %v1792 = vadd.f32 %v1717, %v1791
    %v1793 = vpop.f32.mrb[0].mxu0
    %1794 = vmatprep.mubr.f32.mxu0 0.0
    %1795 = vmatmul.mubr.f32.gmra.mrb[0].mxu0 %v1723
    %v1796 = vpop.f32.mrb[0].mxu0
    %v1797 = vadd.f32 %v1717, %v1796
    %v1798 = vpop.f32.mrb[0].mxu0
    %1799 = vdwg.mxu0
    %1802 = vrot.lane.b32.xlu0 %v1792, 96
    %v1803 = vpop.permute.xlu0 %1802
    %1804 = vrot.lane.b32.xlu0 %v1797, 96
    %v1805 = vpop.permute.xlu0 %1804
    %v1806 = vsel %vm75, %v1792, 0
    %v1808 = vsel %vm75, %v1797, 0
    %v1810 = vsel %vm75, %v1803, 0
    %v1812 = vsel %vm75, %v1805, 0
    %1814 = vmatprep.subr.mxu0 0.0
    %1815 = vmatpush1.xpose.msra.mxu0 %v1810
    %1816 = vmatprep.subr.mxu0 0.0
    %1817 = vmatpush1.xpose.msra.mxu0 %v1812
    %1818 = vmatprep.subr.mxu0 0.0
    %1819 = vmatpush1.xpose.msra.mxu0 0.0
    %1820 = vmatprep.subr.mxu0 0.0
    %1821 = vmatpush1.xpose.msra.mxu0 0.0
    %1822 = vmatprep.subr.mxu0 0.0
    %1823 = vmatpush1.xpose.msra.mxu0 0.0
    %1824 = vmatprep.subr.mxu0 0.0
    %1825 = vmatpush1.xpose.msra.mxu0 0.0
    %1826 = vmatprep.subr.mxu0 0.0
    %1827 = vmatpush1.xpose.msra.mxu0 0.0
    %1828 = vmatprep.subr.mxu0 0.0
    %1829 = vmatpush1.xpose.msra.mxu0 0.0
    %1830 = vmatprep.subr.mxu0 0.0
    %1831 = vmatpush1.xpose.msra.mxu0 0.0
    %1832 = vmatprep.subr.mxu0 0.0
    %1833 = vmatpush1.xpose.msra.mxu0 0.0
    %1834 = vmatprep.subr.mxu0 0.0
    %1835 = vmatpush1.xpose.msra.mxu0 0.0
    %1836 = vmatprep.subr.mxu0 0.0
    %1837 = vmatpush1.xpose.msra.mxu0 0.0
    %1838 = vmatprep.subr.mxu0 0.0
    %1839 = vmatpush1.xpose.msra.mxu0 0.0
    %1840 = vmatprep.subr.mxu0 0.0
    %1841 = vmatpush1.xpose.msra.mxu0 0.0
    %1842 = vmatprep.subr.mxu0 0.0
    %1843 = vmatpush1.xpose.msra.mxu0 0.0
    %1844 = vmatprep.subr.mxu0 0.0
    %1845 = vmatpush1.xpose.msra.mxu0 0.0
    %1846 = vmatprep.subr.mxu0 0.0
    %1847 = vmatpush1.xpose.msra.mxu0 0.0
    %1848 = vmatprep.subr.mxu0 0.0
    %1849 = vmatpush1.xpose.msra.mxu0 0.0
    %1850 = vmatprep.subr.mxu0 0.0
    %1851 = vmatpush1.xpose.msra.mxu0 0.0
    %1852 = vmatprep.subr.mxu0 0.0
    %1853 = vmatpush1.xpose.msra.mxu0 0.0
    %1854 = vmatprep.subr.mxu0 0.0
    %1855 = vmatpush1.xpose.msra.mxu0 0.0
    %1856 = vmatprep.subr.mxu0 0.0
    %1857 = vmatpush1.xpose.msra.mxu0 0.0
    %1858 = vmatprep.subr.mxu0 0.0
    %1859 = vmatpush1.xpose.msra.mxu0 0.0
    %1860 = vmatprep.subr.mxu0 0.0
    %1861 = vmatpush1.xpose.msra.mxu0 0.0
    %1862 = vmatprep.subr.mxu0 0.0
    %1863 = vmatpush1.xpose.msra.mxu0 0.0
    %1864 = vmatprep.subr.mxu0 0.0
    %1865 = vmatpush1.xpose.msra.mxu0 0.0
    %1866 = vmatprep.subr.mxu0 0.0
    %1867 = vmatpush1.xpose.msra.mxu0 0.0
    %1868 = vmatprep.subr.mxu0 0.0
    %1869 = vmatpush1.xpose.msra.mxu0 0.0
    %1870 = vmatprep.subr.mxu0 0.0
    %1871 = vmatpush1.xpose.msra.mxu0 0.0
    %1872 = vmatprep.subr.mxu0 0.0
    %1873 = vmatpush1.xpose.msra.mxu0 0.0
    %1874 = vmatprep.subr.mxu0 0.0
    %1875 = vmatpush1.xpose.msra.mxu0 0.0
    %1876 = vmatprep.subr.mxu0 0.0
    %1877 = vmatpush1.xpose.msra.mxu0 0.0
    %1878 = vmatprep.mubr.f32.mxu0 0.0
    %1879 = vmatmul.mubr.f32.gmra.mrb[0].mxu0 %v1806
    %v1880 = vpop.f32.mrb[0].mxu0
    %v1881 = vadd.f32 0.0, %v1880
    %v1882 = vpop.f32.mrb[0].mxu0
    %1883 = vmatprep.mubr.f32.mxu0 0.0
    %1884 = vmatmul.mubr.f32.gmra.mrb[0].mxu0 %v1808
    %v1885 = vpop.f32.mrb[0].mxu0
    %v1886 = vadd.f32 0.0, %v1885
    %v1887 = vpop.f32.mrb[0].mxu0
    %1888 = vdwg.mxu0
    %v1889 = vmul.f32 %v1881, 0.35355338
    %v1890 = vmul.f32 %v1886, 0.35355338
    %v1891 = vadd.f32 %v1889, %v63
    %v1892 = vadd.f32 %v1890, %v64
    %v1893 = vsel %vm347, %v1891, -inf
    %1894 = vmax.xlane.f32.xlu0 %v1893
    %v1895 = vpop.xlane.xlu0 %1894
    %v1896 = vsel %vm347, %v1892, -inf
    %1897 = vmax.xlane.f32.xlu0 %v1896
    %v1898 = vpop.xlane.xlu0 %1897
    %v1899 = vsub.f32 %v1891, %v1895
    %v1900 = vsub.f32 %v1892, %v1898
    %v1901 = vmul.f32 %v1899, 1.442695
    %v1902 = vpow.pop %v1901
    %v1903 = vmul.f32 %v1900, 1.442695
    %v1904 = vpow.pop %v1903
    %v1905 = vsel %vm347, %v1902, 0.0
    %1906 = vadd.xlane.f32.xlu0 %v1905
    %v1907 = vpop.xlane.xlu0 %1906
    %v1908 = vsel %vm347, %v1904, 0.0
    %1909 = vadd.xlane.f32.xlu0 %v1908
    %v1910 = vpop.xlane.xlu0 %1909
    %v1911 = vrcp.pop %v1907
    %v1912 = vrcp.pop %v1910
    %v1913 = vmul.f32 %v1902, %v1911
    %v1914 = vmul.f32 %v1904, %v1912
    %1915 = vrot.lane.b32.xlu0 %v1792, 64
    %v1916 = vpop.permute.xlu0 %1915
    %1917 = vrot.lane.b32.xlu0 %v1797, 64
    %v1918 = vpop.permute.xlu0 %1917
    %v1922 = vsel %vm347, %v1913, 0
    %v1925 = vsel %vm347, %v1914, 0
    %1927 = vmatprep.subr.mxu0 0.0
    %1928 = vmatpush1.msra.mxu0 %v1916
    %1929 = vmatprep.subr.mxu0 0.0
    %1930 = vmatpush1.msra.mxu0 %v1918
    %1931 = vmatprep.subr.mxu0 0.0
    %1932 = vmatpush1.msra.mxu0 0.0
    %1933 = vmatprep.subr.mxu0 0.0
    %1934 = vmatpush1.msra.mxu0 0.0
    %1935 = vmatprep.subr.mxu0 0.0
    %1936 = vmatpush1.msra.mxu0 0.0
    %1937 = vmatprep.subr.mxu0 0.0
    %1938 = vmatpush1.msra.mxu0 0.0
    %1939 = vmatprep.subr.mxu0 0.0
    %1940 = vmatpush1.msra.mxu0 0.0
    %1941 = vmatprep.subr.mxu0 0.0
    %1942 = vmatpush1.msra.mxu0 0.0
    %1943 = vmatprep.subr.mxu0 0.0
    %1944 = vmatpush1.msra.mxu0 0.0
    %1945 = vmatprep.subr.mxu0 0.0
    %1946 = vmatpush1.msra.mxu0 0.0
    %1947 = vmatprep.subr.mxu0 0.0
    %1948 = vmatpush1.msra.mxu0 0.0
    %1949 = vmatprep.subr.mxu0 0.0
    %1950 = vmatpush1.msra.mxu0 0.0
    %1951 = vmatprep.subr.mxu0 0.0
    %1952 = vmatpush1.msra.mxu0 0.0
    %1953 = vmatprep.subr.mxu0 0.0
    %1954 = vmatpush1.msra.mxu0 0.0
    %1955 = vmatprep.subr.mxu0 0.0
    %1956 = vmatpush1.msra.mxu0 0.0
    %1957 = vmatprep.subr.mxu0 0.0
    %1958 = vmatpush1.msra.mxu0 0.0
    %1959 = vmatprep.subr.mxu0 0.0
    %1960 = vmatpush1.msra.mxu0 0.0
    %1961 = vmatprep.subr.mxu0 0.0
    %1962 = vmatpush1.msra.mxu0 0.0
    %1963 = vmatprep.subr.mxu0 0.0
    %1964 = vmatpush1.msra.mxu0 0.0
    %1965 = vmatprep.subr.mxu0 0.0
    %1966 = vmatpush1.msra.mxu0 0.0
    %1967 = vmatprep.subr.mxu0 0.0
    %1968 = vmatpush1.msra.mxu0 0.0
    %1969 = vmatprep.subr.mxu0 0.0
    %1970 = vmatpush1.msra.mxu0 0.0
    %1971 = vmatprep.subr.mxu0 0.0
    %1972 = vmatpush1.msra.mxu0 0.0
    %1973 = vmatprep.subr.mxu0 0.0
    %1974 = vmatpush1.msra.mxu0 0.0
    %1975 = vmatprep.subr.mxu0 0.0
    %1976 = vmatpush1.msra.mxu0 0.0
    %1977 = vmatprep.subr.mxu0 0.0
    %1978 = vmatpush1.msra.mxu0 0.0
    %1979 = vmatprep.subr.mxu0 0.0
    %1980 = vmatpush1.msra.mxu0 0.0
    %1981 = vmatprep.subr.mxu0 0.0
    %1982 = vmatpush1.msra.mxu0 0.0
    %1983 = vmatprep.subr.mxu0 0.0
    %1984 = vmatpush1.msra.mxu0 0.0
    %1985 = vmatprep.subr.mxu0 0.0
    %1986 = vmatpush1.msra.mxu0 0.0
    %1987 = vmatprep.subr.mxu0 0.0
    %1988 = vmatpush1.msra.mxu0 0.0
    %1989 = vmatprep.subr.mxu0 0.0
    %1990 = vmatpush1.msra.mxu0 0.0
    %1991 = vmatprep.mubr.f32.mxu0 0.0
    %1992 = vmatmul.mubr.f32.gmra.mrb[0].mxu0 %v1922
    %v1993 = vpop.f32.mrb[0].mxu0
    %v1994 = vadd.f32 0.0, %v1993
    %v1995 = vpop.f32.mrb[0].mxu0
    %1996 = vmatprep.mubr.f32.mxu0 0.0
    %1997 = vmatmul.mubr.f32.gmra.mrb[0].mxu0 %v1925
    %v1998 = vpop.f32.mrb[0].mxu0
    %v1999 = vadd.f32 0.0, %v1998
    %v2000 = vpop.f32.mrb[0].mxu0
    %2001 = vdwg.mxu0
    %s2002 = scalar_lea.vmem %s7, 32
    %v2003 = vld [vmem:[%s2002] sm:$0xff]
    %2004 = vrot.lane.b32.xlu0 %v1792, 120
    %v2005 = vpop.permute.xlu0 %2004
    %2006 = vrot.lane.b32.xlu0 %v1797, 120
    %v2007 = vpop.permute.xlu0 %2006
    %2008 = vrot.lane.b32.xlu0 %v1792, 88
    %v2009 = vpop.permute.xlu0 %2008
    %2010 = vrot.lane.b32.xlu0 %v1797, 88
    %v2011 = vpop.permute.xlu0 %2010
    %v2012 = vsel %vm75, %v2005, 0
    %v2014 = vsel %vm75, %v2007, 0
    %v2016 = vsel %vm75, %v2009, 0
    %v2018 = vsel %vm75, %v2011, 0
    %2020 = vmatprep.subr.mxu0 0.0
    %2021 = vmatpush1.xpose.msra.mxu0 %v2016
    %2022 = vmatprep.subr.mxu0 0.0
    %2023 = vmatpush1.xpose.msra.mxu0 %v2018
    %2024 = vmatprep.subr.mxu0 0.0
    %2025 = vmatpush1.xpose.msra.mxu0 0.0
    %2026 = vmatprep.subr.mxu0 0.0
    %2027 = vmatpush1.xpose.msra.mxu0 0.0
    %2028 = vmatprep.subr.mxu0 0.0
    %2029 = vmatpush1.xpose.msra.mxu0 0.0
    %2030 = vmatprep.subr.mxu0 0.0
    %2031 = vmatpush1.xpose.msra.mxu0 0.0
    %2032 = vmatprep.subr.mxu0 0.0
    %2033 = vmatpush1.xpose.msra.mxu0 0.0
    %2034 = vmatprep.subr.mxu0 0.0
    %2035 = vmatpush1.xpose.msra.mxu0 0.0
    %2036 = vmatprep.subr.mxu0 0.0
    %2037 = vmatpush1.xpose.msra.mxu0 0.0
    %2038 = vmatprep.subr.mxu0 0.0
    %2039 = vmatpush1.xpose.msra.mxu0 0.0
    %2040 = vmatprep.subr.mxu0 0.0
    %2041 = vmatpush1.xpose.msra.mxu0 0.0
    %2042 = vmatprep.subr.mxu0 0.0
    %2043 = vmatpush1.xpose.msra.mxu0 0.0
    %2044 = vmatprep.subr.mxu0 0.0
    %2045 = vmatpush1.xpose.msra.mxu0 0.0
    %2046 = vmatprep.subr.mxu0 0.0
    %2047 = vmatpush1.xpose.msra.mxu0 0.0
    %2048 = vmatprep.subr.mxu0 0.0
    %2049 = vmatpush1.xpose.msra.mxu0 0.0
    %2050 = vmatprep.subr.mxu0 0.0
    %2051 = vmatpush1.xpose.msra.mxu0 0.0
    %2052 = vmatprep.subr.mxu0 0.0
    %2053 = vmatpush1.xpose.msra.mxu0 0.0
    %2054 = vmatprep.subr.mxu0 0.0
    %2055 = vmatpush1.xpose.msra.mxu0 0.0
    %2056 = vmatprep.subr.mxu0 0.0
    %2057 = vmatpush1.xpose.msra.mxu0 0.0
    %2058 = vmatprep.subr.mxu0 0.0
    %2059 = vmatpush1.xpose.msra.mxu0 0.0
    %2060 = vmatprep.subr.mxu0 0.0
    %2061 = vmatpush1.xpose.msra.mxu0 0.0
    %2062 = vmatprep.subr.mxu0 0.0
    %2063 = vmatpush1.xpose.msra.mxu0 0.0
    %2064 = vmatprep.subr.mxu0 0.0
    %2065 = vmatpush1.xpose.msra.mxu0 0.0
    %2066 = vmatprep.subr.mxu0 0.0
    %2067 = vmatpush1.xpose.msra.mxu0 0.0
    %2068 = vmatprep.subr.mxu0 0.0
    %2069 = vmatpush1.xpose.msra.mxu0 0.0
    %2070 = vmatprep.subr.mxu0 0.0
    %2071 = vmatpush1.xpose.msra.mxu0 0.0
    %2072 = vmatprep.subr.mxu0 0.0
    %2073 = vmatpush1.xpose.msra.mxu0 0.0
    %2074 = vmatprep.subr.mxu0 0.0
    %2075 = vmatpush1.xpose.msra.mxu0 0.0
    %2076 = vmatprep.subr.mxu0 0.0
    %2077 = vmatpush1.xpose.msra.mxu0 0.0
    %2078 = vmatprep.subr.mxu0 0.0
    %2079 = vmatpush1.xpose.msra.mxu0 0.0
    %2080 = vmatprep.subr.mxu0 0.0
    %2081 = vmatpush1.xpose.msra.mxu0 0.0
    %2082 = vmatprep.subr.mxu0 0.0
    %2083 = vmatpush1.xpose.msra.mxu0 0.0
    %2084 = vmatprep.mubr.f32.mxu0 0.0
    %2085 = vmatmul.mubr.f32.gmra.mrb[0].mxu0 %v2012
    %v2086 = vpop.f32.mrb[0].mxu0
    %v2087 = vadd.f32 0.0, %v2086
    %v2088 = vpop.f32.mrb[0].mxu0
    %2089 = vmatprep.mubr.f32.mxu0 0.0
    %2090 = vmatmul.mubr.f32.gmra.mrb[0].mxu0 %v2014
    %v2091 = vpop.f32.mrb[0].mxu0
    %v2092 = vadd.f32 0.0, %v2091
    %v2093 = vpop.f32.mrb[0].mxu0
    %2094 = vdwg.mxu0
    %v2095 = vmul.f32 %v2087, 0.35355338
    %v2096 = vmul.f32 %v2092, 0.35355338
    %v2097 = vadd.f32 %v2095, %v63
    %v2098 = vadd.f32 %v2096, %v64
    %v2099 = vsel %vm347, %v2097, -inf
    %2100 = vmax.xlane.f32.xlu0 %v2099
    %v2101 = vpop.xlane.xlu0 %2100
    %v2102 = vsel %vm347, %v2098, -inf
    %2103 = vmax.xlane.f32.xlu0 %v2102
    %v2104 = vpop.xlane.xlu0 %2103
    %v2105 = vsub.f32 %v2097, %v2101
    %v2106 = vsub.f32 %v2098, %v2104
    %v2107 = vmul.f32 %v2105, 1.442695
    %v2108 = vpow.pop %v2107
    %v2109 = vmul.f32 %v2106, 1.442695
    %v2110 = vpow.pop %v2109
    %v2111 = vsel %vm347, %v2108, 0.0
    %2112 = vadd.xlane.f32.xlu0 %v2111
    %v2113 = vpop.xlane.xlu0 %2112
    %v2114 = vsel %vm347, %v2110, 0.0
    %2115 = vadd.xlane.f32.xlu0 %v2114
    %v2116 = vpop.xlane.xlu0 %2115
    %v2117 = vrcp.pop %v2113
    %v2118 = vrcp.pop %v2116
    %v2119 = vmul.f32 %v2108, %v2117
    %v2120 = vmul.f32 %v2110, %v2118
    %2121 = vrot.lane.b32.xlu0 %v1792, 56
    %v2122 = vpop.permute.xlu0 %2121
    %2123 = vrot.lane.b32.xlu0 %v1797, 56
    %v2124 = vpop.permute.xlu0 %2123
    %v2128 = vsel %vm347, %v2119, 0
    %v2131 = vsel %vm347, %v2120, 0
    %2133 = vmatprep.subr.mxu0 0.0
    %2134 = vmatpush1.msra.mxu0 %v2122
    %2135 = vmatprep.subr.mxu0 0.0
    %2136 = vmatpush1.msra.mxu0 %v2124
    %2137 = vmatprep.subr.mxu0 0.0
    %2138 = vmatpush1.msra.mxu0 0.0
    %2139 = vmatprep.subr.mxu0 0.0
    %2140 = vmatpush1.msra.mxu0 0.0
    %2141 = vmatprep.subr.mxu0 0.0
    %2142 = vmatpush1.msra.mxu0 0.0
    %2143 = vmatprep.subr.mxu0 0.0
    %2144 = vmatpush1.msra.mxu0 0.0
    %2145 = vmatprep.subr.mxu0 0.0
    %2146 = vmatpush1.msra.mxu0 0.0
    %2147 = vmatprep.subr.mxu0 0.0
    %2148 = vmatpush1.msra.mxu0 0.0
    %2149 = vmatprep.subr.mxu0 0.0
    %2150 = vmatpush1.msra.mxu0 0.0
    %2151 = vmatprep.subr.mxu0 0.0
    %2152 = vmatpush1.msra.mxu0 0.0
    %2153 = vmatprep.subr.mxu0 0.0
    %2154 = vmatpush1.msra.mxu0 0.0
    %2155 = vmatprep.subr.mxu0 0.0
    %2156 = vmatpush1.msra.mxu0 0.0
    %2157 = vmatprep.subr.mxu0 0.0
    %2158 = vmatpush1.msra.mxu0 0.0
    %2159 = vmatprep.subr.mxu0 0.0
    %2160 = vmatpush1.msra.mxu0 0.0
    %2161 = vmatprep.subr.mxu0 0.0
    %2162 = vmatpush1.msra.mxu0 0.0
    %2163 = vmatprep.subr.mxu0 0.0
    %2164 = vmatpush1.msra.mxu0 0.0
    %2165 = vmatprep.subr.mxu0 0.0
    %2166 = vmatpush1.msra.mxu0 0.0
    %2167 = vmatprep.subr.mxu0 0.0
    %2168 = vmatpush1.msra.mxu0 0.0
    %2169 = vmatprep.subr.mxu0 0.0
    %2170 = vmatpush1.msra.mxu0 0.0
    %2171 = vmatprep.subr.mxu0 0.0
    %2172 = vmatpush1.msra.mxu0 0.0
    %2173 = vmatprep.subr.mxu0 0.0
    %2174 = vmatpush1.msra.mxu0 0.0
    %2175 = vmatprep.subr.mxu0 0.0
    %2176 = vmatpush1.msra.mxu0 0.0
    %2177 = vmatprep.subr.mxu0 0.0
    %2178 = vmatpush1.msra.mxu0 0.0
    %2179 = vmatprep.subr.mxu0 0.0
    %2180 = vmatpush1.msra.mxu0 0.0
    %2181 = vmatprep.subr.mxu0 0.0
    %2182 = vmatpush1.msra.mxu0 0.0
    %2183 = vmatprep.subr.mxu0 0.0
    %2184 = vmatpush1.msra.mxu0 0.0
    %2185 = vmatprep.subr.mxu0 0.0
    %2186 = vmatpush1.msra.mxu0 0.0
    %2187 = vmatprep.subr.mxu0 0.0
    %2188 = vmatpush1.msra.mxu0 0.0
    %2189 = vmatprep.subr.mxu0 0.0
    %2190 = vmatpush1.msra.mxu0 0.0
    %2191 = vmatprep.subr.mxu0 0.0
    %2192 = vmatpush1.msra.mxu0 0.0
    %2193 = vmatprep.subr.mxu0 0.0
    %2194 = vmatpush1.msra.mxu0 0.0
    %2195 = vmatprep.subr.mxu0 0.0
    %2196 = vmatpush1.msra.mxu0 0.0
    %2197 = vmatprep.mubr.f32.mxu0 0.0
    %2198 = vmatmul.mubr.f32.gmra.mrb[0].mxu0 %v2128
    %v2199 = vpop.f32.mrb[0].mxu0
    %v2200 = vadd.f32 0.0, %v2199
    %v2201 = vpop.f32.mrb[0].mxu0
    %2202 = vmatprep.mubr.f32.mxu0 0.0
    %2203 = vmatmul.mubr.f32.gmra.mrb[0].mxu0 %v2131
    %v2204 = vpop.f32.mrb[0].mxu0
    %v2205 = vadd.f32 0.0, %v2204
    %v2206 = vpop.f32.mrb[0].mxu0
    %2207 = vdwg.mxu0
    %s2208 = scalar_lea.vmem %s7, 40
    %v2209 = vld [vmem:[%s2208] sm:$0xff]
    %v2211 = vsel %vm75, %v2200, 0
    %v2214 = vsel %vm75, %v2205, 0
    %2216 = vmatprep.subr.mxu0 0.0
    %2217 = vmatpush1.msra.mxu0 %v2209
    %2218 = vmatprep.subr.mxu0 0.0
    %2219 = vmatpush1.msra.mxu0 0.0
    %2220 = vmatprep.subr.mxu0 0.0
    %2221 = vmatpush1.msra.mxu0 0.0
    %2222 = vmatprep.subr.mxu0 0.0
    %2223 = vmatpush1.msra.mxu0 0.0
    %2224 = vmatprep.subr.mxu0 0.0
    %2225 = vmatpush1.msra.mxu0 0.0
    %2226 = vmatprep.subr.mxu0 0.0
    %2227 = vmatpush1.msra.mxu0 0.0
    %2228 = vmatprep.subr.mxu0 0.0
    %2229 = vmatpush1.msra.mxu0 0.0
    %2230 = vmatprep.subr.mxu0 0.0
    %2231 = vmatpush1.msra.mxu0 0.0
    %2232 = vmatprep.subr.mxu0 0.0
    %2233 = vmatpush1.msra.mxu0 0.0
    %2234 = vmatprep.subr.mxu0 0.0
    %2235 = vmatpush1.msra.mxu0 0.0
    %2236 = vmatprep.subr.mxu0 0.0
    %2237 = vmatpush1.msra.mxu0 0.0
    %2238 = vmatprep.subr.mxu0 0.0
    %2239 = vmatpush1.msra.mxu0 0.0
    %2240 = vmatprep.subr.mxu0 0.0
    %2241 = vmatpush1.msra.mxu0 0.0
    %2242 = vmatprep.subr.mxu0 0.0
    %2243 = vmatpush1.msra.mxu0 0.0
    %2244 = vmatprep.subr.mxu0 0.0
    %2245 = vmatpush1.msra.mxu0 0.0
    %2246 = vmatprep.subr.mxu0 0.0
    %2247 = vmatpush1.msra.mxu0 0.0
    %2248 = vmatprep.subr.mxu0 0.0
    %2249 = vmatpush1.msra.mxu0 0.0
    %2250 = vmatprep.subr.mxu0 0.0
    %2251 = vmatpush1.msra.mxu0 0.0
    %2252 = vmatprep.subr.mxu0 0.0
    %2253 = vmatpush1.msra.mxu0 0.0
    %2254 = vmatprep.subr.mxu0 0.0
    %2255 = vmatpush1.msra.mxu0 0.0
    %2256 = vmatprep.subr.mxu0 0.0
    %2257 = vmatpush1.msra.mxu0 0.0
    %2258 = vmatprep.subr.mxu0 0.0
    %2259 = vmatpush1.msra.mxu0 0.0
    %2260 = vmatprep.subr.mxu0 0.0
    %2261 = vmatpush1.msra.mxu0 0.0
    %2262 = vmatprep.subr.mxu0 0.0
    %2263 = vmatpush1.msra.mxu0 0.0
    %2264 = vmatprep.subr.mxu0 0.0
    %2265 = vmatpush1.msra.mxu0 0.0
    %2266 = vmatprep.subr.mxu0 0.0
    %2267 = vmatpush1.msra.mxu0 0.0
    %2268 = vmatprep.subr.mxu0 0.0
    %2269 = vmatpush1.msra.mxu0 0.0
    %2270 = vmatprep.subr.mxu0 0.0
    %2271 = vmatpush1.msra.mxu0 0.0
    %2272 = vmatprep.subr.mxu0 0.0
    %2273 = vmatpush1.msra.mxu0 0.0
    %2274 = vmatprep.subr.mxu0 0.0
    %2275 = vmatpush1.msra.mxu0 0.0
    %2276 = vmatprep.subr.mxu0 0.0
    %2277 = vmatpush1.msra.mxu0 0.0
    %2278 = vmatprep.subr.mxu0 0.0
    %2279 = vmatpush1.msra.mxu0 0.0
    %2280 = vmatprep.mubr.f32.mxu0 0.0
    %2281 = vmatmul.mubr.f32.gmra.mrb[0].mxu0 %v2211
    %v2282 = vpop.f32.mrb[0].mxu0
    %v2283 = vadd.f32 0.0, %v2282
    %v2284 = vpop.f32.mrb[0].mxu0
    %2285 = vmatprep.mubr.f32.mxu0 0.0
    %2286 = vmatmul.mubr.f32.gmra.mrb[0].mxu0 %v2214
    %v2287 = vpop.f32.mrb[0].mxu0
    %v2288 = vadd.f32 0.0, %v2287
    %v2289 = vpop.f32.mrb[0].mxu0
    %2290 = vdwg.mxu0
    %v2292 = vsel %vm75, %v1994, 0
    %v2295 = vsel %vm75, %v1999, 0
    %2297 = vmatprep.subr.mxu0 0.0
    %2298 = vmatpush1.msra.mxu0 %v2003
    %2299 = vmatprep.subr.mxu0 0.0
    %2300 = vmatpush1.msra.mxu0 0.0
    %2301 = vmatprep.subr.mxu0 0.0
    %2302 = vmatpush1.msra.mxu0 0.0
    %2303 = vmatprep.subr.mxu0 0.0
    %2304 = vmatpush1.msra.mxu0 0.0
    %2305 = vmatprep.subr.mxu0 0.0
    %2306 = vmatpush1.msra.mxu0 0.0
    %2307 = vmatprep.subr.mxu0 0.0
    %2308 = vmatpush1.msra.mxu0 0.0
    %2309 = vmatprep.subr.mxu0 0.0
    %2310 = vmatpush1.msra.mxu0 0.0
    %2311 = vmatprep.subr.mxu0 0.0
    %2312 = vmatpush1.msra.mxu0 0.0
    %2313 = vmatprep.subr.mxu0 0.0
    %2314 = vmatpush1.msra.mxu0 0.0
    %2315 = vmatprep.subr.mxu0 0.0
    %2316 = vmatpush1.msra.mxu0 0.0
    %2317 = vmatprep.subr.mxu0 0.0
    %2318 = vmatpush1.msra.mxu0 0.0
    %2319 = vmatprep.subr.mxu0 0.0
    %2320 = vmatpush1.msra.mxu0 0.0
    %2321 = vmatprep.subr.mxu0 0.0
    %2322 = vmatpush1.msra.mxu0 0.0
    %2323 = vmatprep.subr.mxu0 0.0
    %2324 = vmatpush1.msra.mxu0 0.0
    %2325 = vmatprep.subr.mxu0 0.0
    %2326 = vmatpush1.msra.mxu0 0.0
    %2327 = vmatprep.subr.mxu0 0.0
    %2328 = vmatpush1.msra.mxu0 0.0
    %2329 = vmatprep.subr.mxu0 0.0
    %2330 = vmatpush1.msra.mxu0 0.0
    %2331 = vmatprep.subr.mxu0 0.0
    %2332 = vmatpush1.msra.mxu0 0.0
    %2333 = vmatprep.subr.mxu0 0.0
    %2334 = vmatpush1.msra.mxu0 0.0
    %2335 = vmatprep.subr.mxu0 0.0
    %2336 = vmatpush1.msra.mxu0 0.0
    %2337 = vmatprep.subr.mxu0 0.0
    %2338 = vmatpush1.msra.mxu0 0.0
    %2339 = vmatprep.subr.mxu0 0.0
    %2340 = vmatpush1.msra.mxu0 0.0
    %2341 = vmatprep.subr.mxu0 0.0
    %2342 = vmatpush1.msra.mxu0 0.0
    %2343 = vmatprep.subr.mxu0 0.0
    %2344 = vmatpush1.msra.mxu0 0.0
    %2345 = vmatprep.subr.mxu0 0.0
    %2346 = vmatpush1.msra.mxu0 0.0
    %2347 = vmatprep.subr.mxu0 0.0
    %2348 = vmatpush1.msra.mxu0 0.0
    %2349 = vmatprep.subr.mxu0 0.0
    %2350 = vmatpush1.msra.mxu0 0.0
    %2351 = vmatprep.subr.mxu0 0.0
    %2352 = vmatpush1.msra.mxu0 0.0
    %2353 = vmatprep.subr.mxu0 0.0
    %2354 = vmatpush1.msra.mxu0 0.0
    %2355 = vmatprep.subr.mxu0 0.0
    %2356 = vmatpush1.msra.mxu0 0.0
    %2357 = vmatprep.subr.mxu0 0.0
    %2358 = vmatpush1.msra.mxu0 0.0
    %2359 = vmatprep.subr.mxu0 0.0
    %2360 = vmatpush1.msra.mxu0 0.0
    %2361 = vmatprep.mubr.f32.mxu0 0.0
    %2362 = vmatmul.mubr.f32.gmra.mrb[0].mxu0 %v2292
    %v2363 = vpop.f32.mrb[0].mxu0
    %v2364 = vadd.f32 %v2283, %v2363
    %v2365 = vpop.f32.mrb[0].mxu0
    %2366 = vmatprep.mubr.f32.mxu0 0.0
    %2367 = vmatmul.mubr.f32.gmra.mrb[0].mxu0 %v2295
    %v2368 = vpop.f32.mrb[0].mxu0
    %v2369 = vadd.f32 %v2288, %v2368
    %v2370 = vpop.f32.mrb[0].mxu0
    %2371 = vdwg.mxu0
    %2372 = vrot.lane.b32.xlu0 %v1792, 112
    %v2373 = vpop.permute.xlu0 %2372
    %2374 = vrot.lane.b32.xlu0 %v1797, 112
    %v2375 = vpop.permute.xlu0 %2374
    %2376 = vrot.lane.b32.xlu0 %v1792, 80
    %v2377 = vpop.permute.xlu0 %2376
    %2378 = vrot.lane.b32.xlu0 %v1797, 80
    %v2379 = vpop.permute.xlu0 %2378
    %v2380 = vsel %vm75, %v2373, 0
    %v2382 = vsel %vm75, %v2375, 0
    %v2384 = vsel %vm75, %v2377, 0
    %v2386 = vsel %vm75, %v2379, 0
    %2388 = vmatprep.subr.mxu0 0.0
    %2389 = vmatpush1.xpose.msra.mxu0 %v2384
    %2390 = vmatprep.subr.mxu0 0.0
    %2391 = vmatpush1.xpose.msra.mxu0 %v2386
    %2392 = vmatprep.subr.mxu0 0.0
    %2393 = vmatpush1.xpose.msra.mxu0 0.0
    %2394 = vmatprep.subr.mxu0 0.0
    %2395 = vmatpush1.xpose.msra.mxu0 0.0
    %2396 = vmatprep.subr.mxu0 0.0
    %2397 = vmatpush1.xpose.msra.mxu0 0.0
    %2398 = vmatprep.subr.mxu0 0.0
    %2399 = vmatpush1.xpose.msra.mxu0 0.0
    %2400 = vmatprep.subr.mxu0 0.0
    %2401 = vmatpush1.xpose.msra.mxu0 0.0
    %2402 = vmatprep.subr.mxu0 0.0
    %2403 = vmatpush1.xpose.msra.mxu0 0.0
    %2404 = vmatprep.subr.mxu0 0.0
    %2405 = vmatpush1.xpose.msra.mxu0 0.0
    %2406 = vmatprep.subr.mxu0 0.0
    %2407 = vmatpush1.xpose.msra.mxu0 0.0
    %2408 = vmatprep.subr.mxu0 0.0
    %2409 = vmatpush1.xpose.msra.mxu0 0.0
    %2410 = vmatprep.subr.mxu0 0.0
    %2411 = vmatpush1.xpose.msra.mxu0 0.0
    %2412 = vmatprep.subr.mxu0 0.0
    %2413 = vmatpush1.xpose.msra.mxu0 0.0
    %2414 = vmatprep.subr.mxu0 0.0
    %2415 = vmatpush1.xpose.msra.mxu0 0.0
    %2416 = vmatprep.subr.mxu0 0.0
    %2417 = vmatpush1.xpose.msra.mxu0 0.0
    %2418 = vmatprep.subr.mxu0 0.0
    %2419 = vmatpush1.xpose.msra.mxu0 0.0
    %2420 = vmatprep.subr.mxu0 0.0
    %2421 = vmatpush1.xpose.msra.mxu0 0.0
    %2422 = vmatprep.subr.mxu0 0.0
    %2423 = vmatpush1.xpose.msra.mxu0 0.0
    %2424 = vmatprep.subr.mxu0 0.0
    %2425 = vmatpush1.xpose.msra.mxu0 0.0
    %2426 = vmatprep.subr.mxu0 0.0
    %2427 = vmatpush1.xpose.msra.mxu0 0.0
    %2428 = vmatprep.subr.mxu0 0.0
    %2429 = vmatpush1.xpose.msra.mxu0 0.0
    %2430 = vmatprep.subr.mxu0 0.0
    %2431 = vmatpush1.xpose.msra.mxu0 0.0
    %2432 = vmatprep.subr.mxu0 0.0
    %2433 = vmatpush1.xpose.msra.mxu0 0.0
    %2434 = vmatprep.subr.mxu0 0.0
    %2435 = vmatpush1.xpose.msra.mxu0 0.0
    %2436 = vmatprep.subr.mxu0 0.0
    %2437 = vmatpush1.xpose.msra.mxu0 0.0
    %2438 = vmatprep.subr.mxu0 0.0
    %2439 = vmatpush1.xpose.msra.mxu0 0.0
    %2440 = vmatprep.subr.mxu0 0.0
    %2441 = vmatpush1.xpose.msra.mxu0 0.0
    %2442 = vmatprep.subr.mxu0 0.0
    %2443 = vmatpush1.xpose.msra.mxu0 0.0
    %2444 = vmatprep.subr.mxu0 0.0
    %2445 = vmatpush1.xpose.msra.mxu0 0.0
    %2446 = vmatprep.subr.mxu0 0.0
    %2447 = vmatpush1.xpose.msra.mxu0 0.0
    %2448 = vmatprep.subr.mxu0 0.0
    %2449 = vmatpush1.xpose.msra.mxu0 0.0
    %2450 = vmatprep.subr.mxu0 0.0
    %2451 = vmatpush1.xpose.msra.mxu0 0.0
    %2452 = vmatprep.mubr.f32.mxu0 0.0
    %2453 = vmatmul.mubr.f32.gmra.mrb[0].mxu0 %v2380
    %v2454 = vpop.f32.mrb[0].mxu0
    %v2455 = vadd.f32 0.0, %v2454
    %v2456 = vpop.f32.mrb[0].mxu0
    %2457 = vmatprep.mubr.f32.mxu0 0.0
    %2458 = vmatmul.mubr.f32.gmra.mrb[0].mxu0 %v2382
    %v2459 = vpop.f32.mrb[0].mxu0
    %v2460 = vadd.f32 0.0, %v2459
    %v2461 = vpop.f32.mrb[0].mxu0
    %2462 = vdwg.mxu0
    %v2463 = vmul.f32 %v2455, 0.35355338
    %v2464 = vmul.f32 %v2460, 0.35355338
    %v2465 = vadd.f32 %v2463, %v63
    %v2466 = vadd.f32 %v2464, %v64
    %v2467 = vsel %vm347, %v2465, -inf
    %2468 = vmax.xlane.f32.xlu0 %v2467
    %v2469 = vpop.xlane.xlu0 %2468
    %v2470 = vsel %vm347, %v2466, -inf
    %2471 = vmax.xlane.f32.xlu0 %v2470
    %v2472 = vpop.xlane.xlu0 %2471
    %v2473 = vsub.f32 %v2465, %v2469
    %v2474 = vsub.f32 %v2466, %v2472
    %v2475 = vmul.f32 %v2473, 1.442695
    %v2476 = vpow.pop %v2475
    %v2477 = vmul.f32 %v2474, 1.442695
    %v2478 = vpow.pop %v2477
    %v2479 = vsel %vm347, %v2476, 0.0
    %2480 = vadd.xlane.f32.xlu0 %v2479
    %v2481 = vpop.xlane.xlu0 %2480
    %v2482 = vsel %vm347, %v2478, 0.0
    %2483 = vadd.xlane.f32.xlu0 %v2482
    %v2484 = vpop.xlane.xlu0 %2483
    %v2485 = vrcp.pop %v2481
    %v2486 = vrcp.pop %v2484
    %v2487 = vmul.f32 %v2476, %v2485
    %v2488 = vmul.f32 %v2478, %v2486
    %2489 = vrot.lane.b32.xlu0 %v1792, 48
    %v2490 = vpop.permute.xlu0 %2489
    %2491 = vrot.lane.b32.xlu0 %v1797, 48
    %v2492 = vpop.permute.xlu0 %2491
    %v2496 = vsel %vm347, %v2487, 0
    %v2499 = vsel %vm347, %v2488, 0
    %2501 = vmatprep.subr.mxu0 0.0
    %2502 = vmatpush1.msra.mxu0 %v2490
    %2503 = vmatprep.subr.mxu0 0.0
    %2504 = vmatpush1.msra.mxu0 %v2492
    %2505 = vmatprep.subr.mxu0 0.0
    %2506 = vmatpush1.msra.mxu0 0.0
    %2507 = vmatprep.subr.mxu0 0.0
    %2508 = vmatpush1.msra.mxu0 0.0
    %2509 = vmatprep.subr.mxu0 0.0
    %2510 = vmatpush1.msra.mxu0 0.0
    %2511 = vmatprep.subr.mxu0 0.0
    %2512 = vmatpush1.msra.mxu0 0.0
    %2513 = vmatprep.subr.mxu0 0.0
    %2514 = vmatpush1.msra.mxu0 0.0
    %2515 = vmatprep.subr.mxu0 0.0
    %2516 = vmatpush1.msra.mxu0 0.0
    %2517 = vmatprep.subr.mxu0 0.0
    %2518 = vmatpush1.msra.mxu0 0.0
    %2519 = vmatprep.subr.mxu0 0.0
    %2520 = vmatpush1.msra.mxu0 0.0
    %2521 = vmatprep.subr.mxu0 0.0
    %2522 = vmatpush1.msra.mxu0 0.0
    %2523 = vmatprep.subr.mxu0 0.0
    %2524 = vmatpush1.msra.mxu0 0.0
    %2525 = vmatprep.subr.mxu0 0.0
    %2526 = vmatpush1.msra.mxu0 0.0
    %2527 = vmatprep.subr.mxu0 0.0
    %2528 = vmatpush1.msra.mxu0 0.0
    %2529 = vmatprep.subr.mxu0 0.0
    %2530 = vmatpush1.msra.mxu0 0.0
    %2531 = vmatprep.subr.mxu0 0.0
    %2532 = vmatpush1.msra.mxu0 0.0
    %2533 = vmatprep.subr.mxu0 0.0
    %2534 = vmatpush1.msra.mxu0 0.0
    %2535 = vmatprep.subr.mxu0 0.0
    %2536 = vmatpush1.msra.mxu0 0.0
    %2537 = vmatprep.subr.mxu0 0.0
    %2538 = vmatpush1.msra.mxu0 0.0
    %2539 = vmatprep.subr.mxu0 0.0
    %2540 = vmatpush1.msra.mxu0 0.0
    %2541 = vmatprep.subr.mxu0 0.0
    %2542 = vmatpush1.msra.mxu0 0.0
    %2543 = vmatprep.subr.mxu0 0.0
    %2544 = vmatpush1.msra.mxu0 0.0
    %2545 = vmatprep.subr.mxu0 0.0
    %2546 = vmatpush1.msra.mxu0 0.0
    %2547 = vmatprep.subr.mxu0 0.0
    %2548 = vmatpush1.msra.mxu0 0.0
    %2549 = vmatprep.subr.mxu0 0.0
    %2550 = vmatpush1.msra.mxu0 0.0
    %2551 = vmatprep.subr.mxu0 0.0
    %2552 = vmatpush1.msra.mxu0 0.0
    %2553 = vmatprep.subr.mxu0 0.0
    %2554 = vmatpush1.msra.mxu0 0.0
    %2555 = vmatprep.subr.mxu0 0.0
    %2556 = vmatpush1.msra.mxu0 0.0
    %2557 = vmatprep.subr.mxu0 0.0
    %2558 = vmatpush1.msra.mxu0 0.0
    %2559 = vmatprep.subr.mxu0 0.0
    %2560 = vmatpush1.msra.mxu0 0.0
    %2561 = vmatprep.subr.mxu0 0.0
    %2562 = vmatpush1.msra.mxu0 0.0
    %2563 = vmatprep.subr.mxu0 0.0
    %2564 = vmatpush1.msra.mxu0 0.0
    %2565 = vmatprep.mubr.f32.mxu0 0.0
    %2566 = vmatmul.mubr.f32.gmra.mrb[0].mxu0 %v2496
    %v2567 = vpop.f32.mrb[0].mxu0
    %v2568 = vadd.f32 0.0, %v2567
    %v2569 = vpop.f32.mrb[0].mxu0
    %2570 = vmatprep.mubr.f32.mxu0 0.0
    %2571 = vmatmul.mubr.f32.gmra.mrb[0].mxu0 %v2499
    %v2572 = vpop.f32.mrb[0].mxu0
    %v2573 = vadd.f32 0.0, %v2572
    %v2574 = vpop.f32.mrb[0].mxu0
    %2575 = vdwg.mxu0
    %s2576 = scalar_lea.vmem %s7, 48
    %v2577 = vld [vmem:[%s2576] sm:$0xff]
    %v2579 = vsel %vm75, %v2568, 0
    %v2582 = vsel %vm75, %v2573, 0
    %2584 = vmatprep.subr.mxu0 0.0
    %2585 = vmatpush1.msra.mxu0 %v2577
    %2586 = vmatprep.subr.mxu0 0.0
    %2587 = vmatpush1.msra.mxu0 0.0
    %2588 = vmatprep.subr.mxu0 0.0
    %2589 = vmatpush1.msra.mxu0 0.0
    %2590 = vmatprep.subr.mxu0 0.0
    %2591 = vmatpush1.msra.mxu0 0.0
    %2592 = vmatprep.subr.mxu0 0.0
    %2593 = vmatpush1.msra.mxu0 0.0
    %2594 = vmatprep.subr.mxu0 0.0
    %2595 = vmatpush1.msra.mxu0 0.0
    %2596 = vmatprep.subr.mxu0 0.0
    %2597 = vmatpush1.msra.mxu0 0.0
    %2598 = vmatprep.subr.mxu0 0.0
    %2599 = vmatpush1.msra.mxu0 0.0
    %2600 = vmatprep.subr.mxu0 0.0
    %2601 = vmatpush1.msra.mxu0 0.0
    %2602 = vmatprep.subr.mxu0 0.0
    %2603 = vmatpush1.msra.mxu0 0.0
    %2604 = vmatprep.subr.mxu0 0.0
    %2605 = vmatpush1.msra.mxu0 0.0
    %2606 = vmatprep.subr.mxu0 0.0
    %2607 = vmatpush1.msra.mxu0 0.0
    %2608 = vmatprep.subr.mxu0 0.0
    %2609 = vmatpush1.msra.mxu0 0.0
    %2610 = vmatprep.subr.mxu0 0.0
    %2611 = vmatpush1.msra.mxu0 0.0
    %2612 = vmatprep.subr.mxu0 0.0
    %2613 = vmatpush1.msra.mxu0 0.0
    %2614 = vmatprep.subr.mxu0 0.0
    %2615 = vmatpush1.msra.mxu0 0.0
    %2616 = vmatprep.subr.mxu0 0.0
    %2617 = vmatpush1.msra.mxu0 0.0
    %2618 = vmatprep.subr.mxu0 0.0
    %2619 = vmatpush1.msra.mxu0 0.0
    %2620 = vmatprep.subr.mxu0 0.0
    %2621 = vmatpush1.msra.mxu0 0.0
    %2622 = vmatprep.subr.mxu0 0.0
    %2623 = vmatpush1.msra.mxu0 0.0
    %2624 = vmatprep.subr.mxu0 0.0
    %2625 = vmatpush1.msra.mxu0 0.0
    %2626 = vmatprep.subr.mxu0 0.0
    %2627 = vmatpush1.msra.mxu0 0.0
    %2628 = vmatprep.subr.mxu0 0.0
    %2629 = vmatpush1.msra.mxu0 0.0
    %2630 = vmatprep.subr.mxu0 0.0
    %2631 = vmatpush1.msra.mxu0 0.0
    %2632 = vmatprep.subr.mxu0 0.0
    %2633 = vmatpush1.msra.mxu0 0.0
    %2634 = vmatprep.subr.mxu0 0.0
    %2635 = vmatpush1.msra.mxu0 0.0
    %2636 = vmatprep.subr.mxu0 0.0
    %2637 = vmatpush1.msra.mxu0 0.0
    %2638 = vmatprep.subr.mxu0 0.0
    %2639 = vmatpush1.msra.mxu0 0.0
    %2640 = vmatprep.subr.mxu0 0.0
    %2641 = vmatpush1.msra.mxu0 0.0
    %2642 = vmatprep.subr.mxu0 0.0
    %2643 = vmatpush1.msra.mxu0 0.0
    %2644 = vmatprep.subr.mxu0 0.0
    %2645 = vmatpush1.msra.mxu0 0.0
    %2646 = vmatprep.subr.mxu0 0.0
    %2647 = vmatpush1.msra.mxu0 0.0
    %2648 = vmatprep.mubr.f32.mxu0 0.0
    %2649 = vmatmul.mubr.f32.gmra.mrb[0].mxu0 %v2579
    %v2650 = vpop.f32.mrb[0].mxu0
    %v2651 = vadd.f32 0.0, %v2650
    %v2652 = vpop.f32.mrb[0].mxu0
    %2653 = vmatprep.mubr.f32.mxu0 0.0
    %2654 = vmatmul.mubr.f32.gmra.mrb[0].mxu0 %v2582
    %v2655 = vpop.f32.mrb[0].mxu0
    %v2656 = vadd.f32 0.0, %v2655
    %v2657 = vpop.f32.mrb[0].mxu0
    %2658 = vdwg.mxu0
    %v2659 = vadd.f32 %v2364, %v2651
    %v2660 = vadd.f32 %v2369, %v2656
    %2661 = vrot.lane.b32.xlu0 %v1792, 104
    %v2662 = vpop.permute.xlu0 %2661
    %2663 = vrot.lane.b32.xlu0 %v1797, 104
    %v2664 = vpop.permute.xlu0 %2663
    %2665 = vrot.lane.b32.xlu0 %v1792, 72
    %v2666 = vpop.permute.xlu0 %2665
    %2667 = vrot.lane.b32.xlu0 %v1797, 72
    %v2668 = vpop.permute.xlu0 %2667
    %v2669 = vsel %vm75, %v2662, 0
    %v2671 = vsel %vm75, %v2664, 0
    %v2673 = vsel %vm75, %v2666, 0
    %v2675 = vsel %vm75, %v2668, 0
    %2677 = vmatprep.subr.mxu0 0.0
    %2678 = vmatpush1.xpose.msra.mxu0 %v2673
    %2679 = vmatprep.subr.mxu0 0.0
    %2680 = vmatpush1.xpose.msra.mxu0 %v2675
    %2681 = vmatprep.subr.mxu0 0.0
    %2682 = vmatpush1.xpose.msra.mxu0 0.0
    %2683 = vmatprep.subr.mxu0 0.0
    %2684 = vmatpush1.xpose.msra.mxu0 0.0
    %2685 = vmatprep.subr.mxu0 0.0
    %2686 = vmatpush1.xpose.msra.mxu0 0.0
    %2687 = vmatprep.subr.mxu0 0.0
    %2688 = vmatpush1.xpose.msra.mxu0 0.0
    %2689 = vmatprep.subr.mxu0 0.0
    %2690 = vmatpush1.xpose.msra.mxu0 0.0
    %2691 = vmatprep.subr.mxu0 0.0
    %2692 = vmatpush1.xpose.msra.mxu0 0.0
    %2693 = vmatprep.subr.mxu0 0.0
    %2694 = vmatpush1.xpose.msra.mxu0 0.0
    %2695 = vmatprep.subr.mxu0 0.0
    %2696 = vmatpush1.xpose.msra.mxu0 0.0
    %2697 = vmatprep.subr.mxu0 0.0
    %2698 = vmatpush1.xpose.msra.mxu0 0.0
    %2699 = vmatprep.subr.mxu0 0.0
    %2700 = vmatpush1.xpose.msra.mxu0 0.0
    %2701 = vmatprep.subr.mxu0 0.0
    %2702 = vmatpush1.xpose.msra.mxu0 0.0
    %2703 = vmatprep.subr.mxu0 0.0
    %2704 = vmatpush1.xpose.msra.mxu0 0.0
    %2705 = vmatprep.subr.mxu0 0.0
    %2706 = vmatpush1.xpose.msra.mxu0 0.0
    %2707 = vmatprep.subr.mxu0 0.0
    %2708 = vmatpush1.xpose.msra.mxu0 0.0
    %2709 = vmatprep.subr.mxu0 0.0
    %2710 = vmatpush1.xpose.msra.mxu0 0.0
    %2711 = vmatprep.subr.mxu0 0.0
    %2712 = vmatpush1.xpose.msra.mxu0 0.0
    %2713 = vmatprep.subr.mxu0 0.0
    %2714 = vmatpush1.xpose.msra.mxu0 0.0
    %2715 = vmatprep.subr.mxu0 0.0
    %2716 = vmatpush1.xpose.msra.mxu0 0.0
    %2717 = vmatprep.subr.mxu0 0.0
    %2718 = vmatpush1.xpose.msra.mxu0 0.0
    %2719 = vmatprep.subr.mxu0 0.0
    %2720 = vmatpush1.xpose.msra.mxu0 0.0
    %2721 = vmatprep.subr.mxu0 0.0
    %2722 = vmatpush1.xpose.msra.mxu0 0.0
    %2723 = vmatprep.subr.mxu0 0.0
    %2724 = vmatpush1.xpose.msra.mxu0 0.0
    %2725 = vmatprep.subr.mxu0 0.0
    %2726 = vmatpush1.xpose.msra.mxu0 0.0
    %2727 = vmatprep.subr.mxu0 0.0
    %2728 = vmatpush1.xpose.msra.mxu0 0.0
    %2729 = vmatprep.subr.mxu0 0.0
    %2730 = vmatpush1.xpose.msra.mxu0 0.0
    %2731 = vmatprep.subr.mxu0 0.0
    %2732 = vmatpush1.xpose.msra.mxu0 0.0
    %2733 = vmatprep.subr.mxu0 0.0
    %2734 = vmatpush1.xpose.msra.mxu0 0.0
    %2735 = vmatprep.subr.mxu0 0.0
    %2736 = vmatpush1.xpose.msra.mxu0 0.0
    %2737 = vmatprep.subr.mxu0 0.0
    %2738 = vmatpush1.xpose.msra.mxu0 0.0
    %2739 = vmatprep.subr.mxu0 0.0
    %2740 = vmatpush1.xpose.msra.mxu0 0.0
    %2741 = vmatprep.mubr.f32.mxu0 0.0
    %2742 = vmatmul.mubr.f32.gmra.mrb[0].mxu0 %v2669
    %v2743 = vpop.f32.mrb[0].mxu0
    %v2744 = vadd.f32 0.0, %v2743
    %v2745 = vpop.f32.mrb[0].mxu0
    %2746 = vmatprep.mubr.f32.mxu0 0.0
    %2747 = vmatmul.mubr.f32.gmra.mrb[0].mxu0 %v2671
    %v2748 = vpop.f32.mrb[0].mxu0
    %v2749 = vadd.f32 0.0, %v2748
    %v2750 = vpop.f32.mrb[0].mxu0
    %2751 = vdwg.mxu0
    %v2752 = vmul.f32 %v2744, 0.35355338
    %v2753 = vmul.f32 %v2749, 0.35355338
    %v2754 = vadd.f32 %v2752, %v63
    %v2755 = vadd.f32 %v2753, %v64
    %v2756 = vsel %vm347, %v2754, -inf
    %2757 = vmax.xlane.f32.xlu0 %v2756
    %v2758 = vpop.xlane.xlu0 %2757
    %v2759 = vsel %vm347, %v2755, -inf
    %2760 = vmax.xlane.f32.xlu0 %v2759
    %v2761 = vpop.xlane.xlu0 %2760
    %v2762 = vsub.f32 %v2754, %v2758
    %v2763 = vsub.f32 %v2755, %v2761
    %v2764 = vmul.f32 %v2762, 1.442695
    %v2765 = vpow.pop %v2764
    %v2766 = vmul.f32 %v2763, 1.442695
    %v2767 = vpow.pop %v2766
    %v2768 = vsel %vm347, %v2765, 0.0
    %2769 = vadd.xlane.f32.xlu0 %v2768
    %v2770 = vpop.xlane.xlu0 %2769
    %v2771 = vsel %vm347, %v2767, 0.0
    %2772 = vadd.xlane.f32.xlu0 %v2771
    %v2773 = vpop.xlane.xlu0 %2772
    %v2774 = vrcp.pop %v2770
    %v2775 = vrcp.pop %v2773
    %v2776 = vmul.f32 %v2765, %v2774
    %v2777 = vmul.f32 %v2767, %v2775
    %2778 = vrot.lane.b32.xlu0 %v1792, 40
    %v2779 = vpop.permute.xlu0 %2778
    %2780 = vrot.lane.b32.xlu0 %v1797, 40
    %v2781 = vpop.permute.xlu0 %2780
    %v2785 = vsel %vm347, %v2776, 0
    %v2788 = vsel %vm347, %v2777, 0
    %2790 = vmatprep.subr.mxu0 0.0
    %2791 = vmatpush1.msra.mxu0 %v2779
    %2792 = vmatprep.subr.mxu0 0.0
    %2793 = vmatpush1.msra.mxu0 %v2781
    %2794 = vmatprep.subr.mxu0 0.0
    %2795 = vmatpush1.msra.mxu0 0.0
    %2796 = vmatprep.subr.mxu0 0.0
    %2797 = vmatpush1.msra.mxu0 0.0
    %2798 = vmatprep.subr.mxu0 0.0
    %2799 = vmatpush1.msra.mxu0 0.0
    %2800 = vmatprep.subr.mxu0 0.0
    %2801 = vmatpush1.msra.mxu0 0.0
    %2802 = vmatprep.subr.mxu0 0.0
    %2803 = vmatpush1.msra.mxu0 0.0
    %2804 = vmatprep.subr.mxu0 0.0
    %2805 = vmatpush1.msra.mxu0 0.0
    %2806 = vmatprep.subr.mxu0 0.0
    %2807 = vmatpush1.msra.mxu0 0.0
    %2808 = vmatprep.subr.mxu0 0.0
    %2809 = vmatpush1.msra.mxu0 0.0
    %2810 = vmatprep.subr.mxu0 0.0
    %2811 = vmatpush1.msra.mxu0 0.0
    %2812 = vmatprep.subr.mxu0 0.0
    %2813 = vmatpush1.msra.mxu0 0.0
    %2814 = vmatprep.subr.mxu0 0.0
    %2815 = vmatpush1.msra.mxu0 0.0
    %2816 = vmatprep.subr.mxu0 0.0
    %2817 = vmatpush1.msra.mxu0 0.0
    %2818 = vmatprep.subr.mxu0 0.0
    %2819 = vmatpush1.msra.mxu0 0.0
    %2820 = vmatprep.subr.mxu0 0.0
    %2821 = vmatpush1.msra.mxu0 0.0
    %2822 = vmatprep.subr.mxu0 0.0
    %2823 = vmatpush1.msra.mxu0 0.0
    %2824 = vmatprep.subr.mxu0 0.0
    %2825 = vmatpush1.msra.mxu0 0.0
    %2826 = vmatprep.subr.mxu0 0.0
    %2827 = vmatpush1.msra.mxu0 0.0
    %2828 = vmatprep.subr.mxu0 0.0
    %2829 = vmatpush1.msra.mxu0 0.0
    %2830 = vmatprep.subr.mxu0 0.0
    %2831 = vmatpush1.msra.mxu0 0.0
    %2832 = vmatprep.subr.mxu0 0.0
    %2833 = vmatpush1.msra.mxu0 0.0
    %2834 = vmatprep.subr.mxu0 0.0
    %2835 = vmatpush1.msra.mxu0 0.0
    %2836 = vmatprep.subr.mxu0 0.0
    %2837 = vmatpush1.msra.mxu0 0.0
    %2838 = vmatprep.subr.mxu0 0.0
    %2839 = vmatpush1.msra.mxu0 0.0
    %2840 = vmatprep.subr.mxu0 0.0
    %2841 = vmatpush1.msra.mxu0 0.0
    %2842 = vmatprep.subr.mxu0 0.0
    %2843 = vmatpush1.msra.mxu0 0.0
    %2844 = vmatprep.subr.mxu0 0.0
    %2845 = vmatpush1.msra.mxu0 0.0
    %2846 = vmatprep.subr.mxu0 0.0
    %2847 = vmatpush1.msra.mxu0 0.0
    %2848 = vmatprep.subr.mxu0 0.0
    %2849 = vmatpush1.msra.mxu0 0.0
    %2850 = vmatprep.subr.mxu0 0.0
    %2851 = vmatpush1.msra.mxu0 0.0
    %2852 = vmatprep.subr.mxu0 0.0
    %2853 = vmatpush1.msra.mxu0 0.0
    %2854 = vmatprep.mubr.f32.mxu0 0.0
    %2855 = vmatmul.mubr.f32.gmra.mrb[0].mxu0 %v2785
    %v2856 = vpop.f32.mrb[0].mxu0
    %v2857 = vadd.f32 0.0, %v2856
    %v2858 = vpop.f32.mrb[0].mxu0
    %2859 = vmatprep.mubr.f32.mxu0 0.0
    %2860 = vmatmul.mubr.f32.gmra.mrb[0].mxu0 %v2788
    %v2861 = vpop.f32.mrb[0].mxu0
    %v2862 = vadd.f32 0.0, %v2861
    %v2863 = vpop.f32.mrb[0].mxu0
    %2864 = vdwg.mxu0
    %s2865 = scalar_lea.vmem %s7, 56
    %v2866 = vld [vmem:[%s2865] sm:$0xff]
    %v2868 = vsel %vm75, %v2857, 0
    %v2871 = vsel %vm75, %v2862, 0
    %2873 = vmatprep.subr.mxu0 0.0
    %2874 = vmatpush1.msra.mxu0 %v2866
    %2875 = vmatprep.subr.mxu0 0.0
    %2876 = vmatpush1.msra.mxu0 0.0
    %2877 = vmatprep.subr.mxu0 0.0
    %2878 = vmatpush1.msra.mxu0 0.0
    %2879 = vmatprep.subr.mxu0 0.0
    %2880 = vmatpush1.msra.mxu0 0.0
    %2881 = vmatprep.subr.mxu0 0.0
    %2882 = vmatpush1.msra.mxu0 0.0
    %2883 = vmatprep.subr.mxu0 0.0
    %2884 = vmatpush1.msra.mxu0 0.0
    %2885 = vmatprep.subr.mxu0 0.0
    %2886 = vmatpush1.msra.mxu0 0.0
    %2887 = vmatprep.subr.mxu0 0.0
    %2888 = vmatpush1.msra.mxu0 0.0
    %2889 = vmatprep.subr.mxu0 0.0
    %2890 = vmatpush1.msra.mxu0 0.0
    %2891 = vmatprep.subr.mxu0 0.0
    %2892 = vmatpush1.msra.mxu0 0.0
    %2893 = vmatprep.subr.mxu0 0.0
    %2894 = vmatpush1.msra.mxu0 0.0
    %2895 = vmatprep.subr.mxu0 0.0
    %2896 = vmatpush1.msra.mxu0 0.0
    %2897 = vmatprep.subr.mxu0 0.0
    %2898 = vmatpush1.msra.mxu0 0.0
    %2899 = vmatprep.subr.mxu0 0.0
    %2900 = vmatpush1.msra.mxu0 0.0
    %2901 = vmatprep.subr.mxu0 0.0
    %2902 = vmatpush1.msra.mxu0 0.0
    %2903 = vmatprep.subr.mxu0 0.0
    %2904 = vmatpush1.msra.mxu0 0.0
    %2905 = vmatprep.subr.mxu0 0.0
    %2906 = vmatpush1.msra.mxu0 0.0
    %2907 = vmatprep.subr.mxu0 0.0
    %2908 = vmatpush1.msra.mxu0 0.0
    %2909 = vmatprep.subr.mxu0 0.0
    %2910 = vmatpush1.msra.mxu0 0.0
    %2911 = vmatprep.subr.mxu0 0.0
    %2912 = vmatpush1.msra.mxu0 0.0
    %2913 = vmatprep.subr.mxu0 0.0
    %2914 = vmatpush1.msra.mxu0 0.0
    %2915 = vmatprep.subr.mxu0 0.0
    %2916 = vmatpush1.msra.mxu0 0.0
    %2917 = vmatprep.subr.mxu0 0.0
    %2918 = vmatpush1.msra.mxu0 0.0
    %2919 = vmatprep.subr.mxu0 0.0
    %2920 = vmatpush1.msra.mxu0 0.0
    %2921 = vmatprep.subr.mxu0 0.0
    %2922 = vmatpush1.msra.mxu0 0.0
    %2923 = vmatprep.subr.mxu0 0.0
    %2924 = vmatpush1.msra.mxu0 0.0
    %2925 = vmatprep.subr.mxu0 0.0
    %2926 = vmatpush1.msra.mxu0 0.0
    %2927 = vmatprep.subr.mxu0 0.0
    %2928 = vmatpush1.msra.mxu0 0.0
    %2929 = vmatprep.subr.mxu0 0.0
    %2930 = vmatpush1.msra.mxu0 0.0
    %2931 = vmatprep.subr.mxu0 0.0
    %2932 = vmatpush1.msra.mxu0 0.0
    %2933 = vmatprep.subr.mxu0 0.0
    %2934 = vmatpush1.msra.mxu0 0.0
    %2935 = vmatprep.subr.mxu0 0.0
    %2936 = vmatpush1.msra.mxu0 0.0
    %2937 = vmatprep.mubr.f32.mxu0 0.0
    %2938 = vmatmul.mubr.f32.gmra.mrb[0].mxu0 %v2868
    %v2939 = vpop.f32.mrb[0].mxu0
    %v2940 = vadd.f32 0.0, %v2939
    %v2941 = vpop.f32.mrb[0].mxu0
    %2942 = vmatprep.mubr.f32.mxu0 0.0
    %2943 = vmatmul.mubr.f32.gmra.mrb[0].mxu0 %v2871
    %v2944 = vpop.f32.mrb[0].mxu0
    %v2945 = vadd.f32 0.0, %v2944
    %v2946 = vpop.f32.mrb[0].mxu0
    %2947 = vdwg.mxu0
    %v2948 = vadd.f32 %v2659, %v2940
    %v2949 = vadd.f32 %v2660, %v2945
    %s2950 = scalar_lea.vmem %s8, 1
    %v2951 = vld [vmem:[%s2950] sm:$0x1]
    %v2953 = vlaneseq
    %v2954 = vshrl.u32 %v2953, 7
    %v2955 = vsub.s32 0, %v2954
    %v2956 = vrot.slane %v2951, %v2955
    %v2958 = vadd.f32 %v2948, %v2956
    %v2959 = vadd.f32 %v2949, %v2956
    %v2960 = vadd.f32 %v1704, %v2958
    %v2961 = vadd.f32 %v1705, %v2959
    %s2962 = scalar_lea.vmem %s9, 1
    %v2963 = vld [vmem:[%s2962] sm:$0x1]
    %s2964 = scalar_lea.vmem %s10, 1
    %v2965 = vld [vmem:[%s2964] sm:$0x1]
    %v2966 = vsel %vm172, %v2960, 0.0
    %2967 = vadd.xlane.f32.xlu0 %v2966
    %v2968 = vpop.xlane.xlu0 %2967
    %v2969 = vsel %vm172, %v2961, 0.0
    %2970 = vadd.xlane.f32.xlu0 %v2969
    %v2971 = vpop.xlane.xlu0 %2970
    %v2972 = vmul.f32 %v2968, %v1423
    %v2973 = vmul.f32 %v2971, %v1423
    %v2974 = vsub.f32 %v2960, %v2972
    %v2975 = vsub.f32 %v2961, %v2973
    %v2976 = vmul.f32 %v2974, %v2974
    %v2977 = vmul.f32 %v2975, %v2975
    %v2978 = vsel %vm172, %v2976, 0.0
    %2979 = vadd.xlane.f32.xlu0 %v2978
    %v2980 = vpop.xlane.xlu0 %2979
    %v2981 = vsel %vm172, %v2977, 0.0
    %2982 = vadd.xlane.f32.xlu0 %v2981
    %v2983 = vpop.xlane.xlu0 %2982
    %v2984 = vmul.f32 %v2980, %v1423
    %v2985 = vmul.f32 %v2983, %v1423
    %v2986 = vadd.f32 %v2984, 1e-05
    %v2987 = vadd.f32 %v2985, 1e-05
    %v2988 = vrsqrt.pop %v2986
    %v2989 = vrsqrt.pop %v2987
    %v2990 = vmul.f32 %v2974, %v2988
    %v2991 = vmul.f32 %v2975, %v2989
    %v2993 = vlaneseq
    %v2994 = vshrl.u32 %v2993, 7
    %v2995 = vsub.s32 0, %v2994
    %v2996 = vrot.slane %v2963, %v2995
    %v2998 = vmul.f32 %v2990, %v2996
    %v2999 = vmul.f32 %v2991, %v2996
    %v3001 = vlaneseq
    %v3002 = vshrl.u32 %v3001, 7
    %v3003 = vsub.s32 0, %v3002
    %v3004 = vrot.slane %v2965, %v3003
    %v3006 = vadd.f32 %v2998, %v3004
    %v3007 = vadd.f32 %v2999, %v3004
    %s3008 = scalar_lea.vmem %s11, 32
    %v3009 = vld [vmem:[%s3008] sm:$0xff]
    %v3010 = vld [vmem:[%s3008 + $0x8] sm:$0xff]
    %v3011 = vld [vmem:[%s3008 + $0x10] sm:$0xff]
    %v3012 = vld [vmem:[%s3008 + $0x18] sm:$0xff]
    %s3013 = scalar_lea.vmem %s12, 1
    %v3014 = vld [vmem:[%s3013] sm:$0x1]
    %v3016 = vlaneseq
    %v3017 = vshrl.u32 %v3016, 7
    %v3018 = vsub.s32 0, %v3017
    %v3019 = vrot.slane %v3014, %v3018
    %v3022 = vsel %vm172, %v3006, 0
    %v3025 = vsel %vm172, %v3007, 0
    %3027 = vmatprep.subr.mxu0 0.0
    %3028 = vmatpush1.msra.mxu0 %v3009
    %3029 = vmatprep.subr.mxu0 0.0
    %3030 = vmatpush1.msra.mxu0 %v3010
    %3031 = vmatprep.subr.mxu0 0.0
    %3032 = vmatpush1.msra.mxu0 %v3011
    %3033 = vmatprep.subr.mxu0 0.0
    %3034 = vmatpush1.msra.mxu0 %v3012
    %3035 = vmatprep.subr.mxu0 0.0
    %3036 = vmatpush1.msra.mxu0 0.0
    %3037 = vmatprep.subr.mxu0 0.0
    %3038 = vmatpush1.msra.mxu0 0.0
    %3039 = vmatprep.subr.mxu0 0.0
    %3040 = vmatpush1.msra.mxu0 0.0
    %3041 = vmatprep.subr.mxu0 0.0
    %3042 = vmatpush1.msra.mxu0 0.0
    %3043 = vmatprep.subr.mxu0 0.0
    %3044 = vmatpush1.msra.mxu0 0.0
    %3045 = vmatprep.subr.mxu0 0.0
    %3046 = vmatpush1.msra.mxu0 0.0
    %3047 = vmatprep.subr.mxu0 0.0
    %3048 = vmatpush1.msra.mxu0 0.0
    %3049 = vmatprep.subr.mxu0 0.0
    %3050 = vmatpush1.msra.mxu0 0.0
    %3051 = vmatprep.subr.mxu0 0.0
    %3052 = vmatpush1.msra.mxu0 0.0
    %3053 = vmatprep.subr.mxu0 0.0
    %3054 = vmatpush1.msra.mxu0 0.0
    %3055 = vmatprep.subr.mxu0 0.0
    %3056 = vmatpush1.msra.mxu0 0.0
    %3057 = vmatprep.subr.mxu0 0.0
    %3058 = vmatpush1.msra.mxu0 0.0
    %3059 = vmatprep.subr.mxu0 0.0
    %3060 = vmatpush1.msra.mxu0 0.0
    %3061 = vmatprep.subr.mxu0 0.0
    %3062 = vmatpush1.msra.mxu0 0.0
    %3063 = vmatprep.subr.mxu0 0.0
    %3064 = vmatpush1.msra.mxu0 0.0
    %3065 = vmatprep.subr.mxu0 0.0
    %3066 = vmatpush1.msra.mxu0 0.0
    %3067 = vmatprep.subr.mxu0 0.0
    %3068 = vmatpush1.msra.mxu0 0.0
    %3069 = vmatprep.subr.mxu0 0.0
    %3070 = vmatpush1.msra.mxu0 0.0
    %3071 = vmatprep.subr.mxu0 0.0
    %3072 = vmatpush1.msra.mxu0 0.0
    %3073 = vmatprep.subr.mxu0 0.0
    %3074 = vmatpush1.msra.mxu0 0.0
    %3075 = vmatprep.subr.mxu0 0.0
    %3076 = vmatpush1.msra.mxu0 0.0
    %3077 = vmatprep.subr.mxu0 0.0
    %3078 = vmatpush1.msra.mxu0 0.0
    %3079 = vmatprep.subr.mxu0 0.0
    %3080 = vmatpush1.msra.mxu0 0.0
    %3081 = vmatprep.subr.mxu0 0.0
    %3082 = vmatpush1.msra.mxu0 0.0
    %3083 = vmatprep.subr.mxu0 0.0
    %3084 = vmatpush1.msra.mxu0 0.0
    %3085 = vmatprep.subr.mxu0 0.0
    %3086 = vmatpush1.msra.mxu0 0.0
    %3087 = vmatprep.subr.mxu0 0.0
    %3088 = vmatpush1.msra.mxu0 0.0
    %3089 = vmatprep.subr.mxu0 0.0
    %3090 = vmatpush1.msra.mxu0 0.0
    %3091 = vmatprep.mubr.f32.mxu0 0.0
    %3092 = vmatmul.mubr.f32.gmra.mrb[0].mxu0 %v3022
    %v3093 = vpop.f32.mrb[0].mxu0
    %v3094 = vadd.f32 %v3019, %v3093
    %v3095 = vpop.f32.mrb[0].mxu0
    %3096 = vmatprep.mubr.f32.mxu0 0.0
    %3097 = vmatmul.mubr.f32.gmra.mrb[0].mxu0 %v3025
    %v3098 = vpop.f32.mrb[0].mxu0
    %v3099 = vadd.f32 %v3019, %v3098
    %v3100 = vpop.f32.mrb[0].mxu0
    %3101 = vdwg.mxu0
    %v3102 = vmul.f32 %v3094, 0.5
    %v3103 = vmul.f32 %v3099, 0.5
    %v3104 = vmul.f32 %v3094, 0.70710677
    %v3105 = vmul.f32 %v3099, 0.70710677
    %v3106 = verf.f32.pop %v3104
    %v3107 = verf.f32.pop %v3105
    %v3108 = vadd.f32 %v3106, 1.0
    %v3109 = vadd.f32 %v3107, 1.0
    %v3110 = vmul.f32 %v3102, %v3108
    %v3111 = vmul.f32 %v3103, %v3109
    %s3112 = scalar_lea.vmem %s13, 128
    %v3113 = vld [vmem:[%s3112] sm:$0xff]
    %v3114 = vld [vmem:[%s3112 + $0x8] sm:$0xff]
    %v3115 = vld [vmem:[%s3112 + $0x10] sm:$0xff]
    %v3116 = vld [vmem:[%s3112 + $0x18] sm:$0xff]
    %v3117 = vld [vmem:[%s3112 + $0x20] sm:$0xff]
    %v3118 = vld [vmem:[%s3112 + $0x28] sm:$0xff]
    %v3119 = vld [vmem:[%s3112 + $0x30] sm:$0xff]
    %v3120 = vld [vmem:[%s3112 + $0x38] sm:$0xff]
    %v3121 = vld [vmem:[%s3112 + $0x40] sm:$0xff]
    %v3122 = vld [vmem:[%s3112 + $0x48] sm:$0xff]
    %v3123 = vld [vmem:[%s3112 + $0x50] sm:$0xff]
    %v3124 = vld [vmem:[%s3112 + $0x58] sm:$0xff]
    %v3125 = vld [vmem:[%s3112 + $0x60] sm:$0xff]
    %v3126 = vld [vmem:[%s3112 + $0x68] sm:$0xff]
    %v3127 = vld [vmem:[%s3112 + $0x70] sm:$0xff]
    %v3128 = vld [vmem:[%s3112 + $0x78] sm:$0xff]
    %s3129 = scalar_lea.vmem %s14, 1
    %v3130 = vld [vmem:[%s3129] sm:$0x1]
    %v3132 = vlaneseq
    %v3133 = vshrl.u32 %v3132, 7
    %v3134 = vsub.s32 0, %v3133
    %v3135 = vrot.slane %v3130, %v3134
    %3137 = vmatprep.subr.mxu0 0.0
    %3138 = vmatpush1.msra.mxu0 %v3113
    %3139 = vmatprep.subr.mxu0 0.0
    %3140 = vmatpush1.msra.mxu0 %v3114
    %3141 = vmatprep.subr.mxu0 0.0
    %3142 = vmatpush1.msra.mxu0 %v3115
    %3143 = vmatprep.subr.mxu0 0.0
    %3144 = vmatpush1.msra.mxu0 %v3116
    %3145 = vmatprep.subr.mxu0 0.0
    %3146 = vmatpush1.msra.mxu0 %v3117
    %3147 = vmatprep.subr.mxu0 0.0
    %3148 = vmatpush1.msra.mxu0 %v3118
    %3149 = vmatprep.subr.mxu0 0.0
    %3150 = vmatpush1.msra.mxu0 %v3119
    %3151 = vmatprep.subr.mxu0 0.0
    %3152 = vmatpush1.msra.mxu0 %v3120
    %3153 = vmatprep.subr.mxu0 0.0
    %3154 = vmatpush1.msra.mxu0 %v3121
    %3155 = vmatprep.subr.mxu0 0.0
    %3156 = vmatpush1.msra.mxu0 %v3122
    %3157 = vmatprep.subr.mxu0 0.0
    %3158 = vmatpush1.msra.mxu0 %v3123
    %3159 = vmatprep.subr.mxu0 0.0
    %3160 = vmatpush1.msra.mxu0 %v3124
    %3161 = vmatprep.subr.mxu0 0.0
    %3162 = vmatpush1.msra.mxu0 %v3125
    %3163 = vmatprep.subr.mxu0 0.0
    %3164 = vmatpush1.msra.mxu0 %v3126
    %3165 = vmatprep.subr.mxu0 0.0
    %3166 = vmatpush1.msra.mxu0 %v3127
    %3167 = vmatprep.subr.mxu0 0.0
    %3168 = vmatpush1.msra.mxu0 %v3128
    %3169 = vmatprep.subr.mxu0 0.0
    %3170 = vmatpush1.msra.mxu0 0.0
    %3171 = vmatprep.subr.mxu0 0.0
    %3172 = vmatpush1.msra.mxu0 0.0
    %3173 = vmatprep.subr.mxu0 0.0
    %3174 = vmatpush1.msra.mxu0 0.0
    %3175 = vmatprep.subr.mxu0 0.0
    %3176 = vmatpush1.msra.mxu0 0.0
    %3177 = vmatprep.subr.mxu0 0.0
    %3178 = vmatpush1.msra.mxu0 0.0
    %3179 = vmatprep.subr.mxu0 0.0
    %3180 = vmatpush1.msra.mxu0 0.0
    %3181 = vmatprep.subr.mxu0 0.0
    %3182 = vmatpush1.msra.mxu0 0.0
    %3183 = vmatprep.subr.mxu0 0.0
    %3184 = vmatpush1.msra.mxu0 0.0
    %3185 = vmatprep.subr.mxu0 0.0
    %3186 = vmatpush1.msra.mxu0 0.0
    %3187 = vmatprep.subr.mxu0 0.0
    %3188 = vmatpush1.msra.mxu0 0.0
    %3189 = vmatprep.subr.mxu0 0.0
    %3190 = vmatpush1.msra.mxu0 0.0
    %3191 = vmatprep.subr.mxu0 0.0
    %3192 = vmatpush1.msra.mxu0 0.0
    %3193 = vmatprep.subr.mxu0 0.0
    %3194 = vmatpush1.msra.mxu0 0.0
    %3195 = vmatprep.subr.mxu0 0.0
    %3196 = vmatpush1.msra.mxu0 0.0
    %3197 = vmatprep.subr.mxu0 0.0
    %3198 = vmatpush1.msra.mxu0 0.0
    %3199 = vmatprep.subr.mxu0 0.0
    %3200 = vmatpush1.msra.mxu0 0.0
    %3201 = vmatprep.mubr.f32.mxu0 0.0
    %3202 = vmatmul.mubr.f32.gmra.mrb[0].mxu0 %v3110
    %v3203 = vpop.f32.mrb[0].mxu0
    %v3204 = vadd.f32 %v3135, %v3203
    %v3205 = vpop.f32.mrb[0].mxu0
    %3206 = vmatprep.mubr.f32.mxu0 0.0
    %3207 = vmatmul.mubr.f32.gmra.mrb[0].mxu0 %v3111
    %v3208 = vpop.f32.mrb[0].mxu0
    %v3209 = vadd.f32 %v3135, %v3208
    %v3210 = vpop.f32.mrb[0].mxu0
    %3211 = vdwg.mxu0
    %v3212 = vadd.f32 %v3006, %v3204
    %v3213 = vadd.f32 %v3007, %v3209
    %s3214 = scalar_lea.vmem %s15, 1
    %v3215 = vld [vmem:[%s3214] sm:$0x1]
    %s3216 = scalar_lea.vmem %s16, 1
    %v3217 = vld [vmem:[%s3216] sm:$0x1]
    %v3218 = vsel %vm172, %v3212, 0.0
    %3219 = vadd.xlane.f32.xlu0 %v3218
    %v3220 = vpop.xlane.xlu0 %3219
    %v3221 = vsel %vm172, %v3213, 0.0
    %3222 = vadd.xlane.f32.xlu0 %v3221
    %v3223 = vpop.xlane.xlu0 %3222
    %v3224 = vmul.f32 %v3220, %v1423
    %v3225 = vmul.f32 %v3223, %v1423
    %v3226 = vsub.f32 %v3212, %v3224
    %v3227 = vsub.f32 %v3213, %v3225
    %v3228 = vmul.f32 %v3226, %v3226
    %v3229 = vmul.f32 %v3227, %v3227
    %v3230 = vsel %vm172, %v3228, 0.0
    %3231 = vadd.xlane.f32.xlu0 %v3230
    %v3232 = vpop.xlane.xlu0 %3231
    %v3233 = vsel %vm172, %v3229, 0.0
    %3234 = vadd.xlane.f32.xlu0 %v3233
    %v3235 = vpop.xlane.xlu0 %3234
    %v3236 = vmul.f32 %v3232, %v1423
    %v3237 = vmul.f32 %v3235, %v1423
    %v3238 = vadd.f32 %v3236, 1e-05
    %v3239 = vadd.f32 %v3237, 1e-05
    %v3240 = vrsqrt.pop %v3238
    %v3241 = vrsqrt.pop %v3239
    %v3242 = vmul.f32 %v3226, %v3240
    %v3243 = vmul.f32 %v3227, %v3241
    %v3245 = vlaneseq
    %v3246 = vshrl.u32 %v3245, 7
    %v3247 = vsub.s32 0, %v3246
    %v3248 = vrot.slane %v3215, %v3247
    %v3250 = vmul.f32 %v3242, %v3248
    %v3251 = vmul.f32 %v3243, %v3248
    %v3253 = vlaneseq
    %v3254 = vshrl.u32 %v3253, 7
    %v3255 = vsub.s32 0, %v3254
    %v3256 = vrot.slane %v3217, %v3255
    %v3258 = vadd.f32 %v3250, %v3256
    %v3259 = vadd.f32 %v3251, %v3256
    %v3260 = vld [vmem:[%s17] sm:$0x1]
    %v3261 = vld [vmem:[%s18] sm:$0x1]
    %v3262 = vsel %vm172, %v3258, 0.0
    %3263 = vadd.xlane.f32.xlu0 %v3262
    %v3264 = vpop.xlane.xlu0 %3263
    %v3265 = vsel %vm172, %v3259, 0.0
    %3266 = vadd.xlane.f32.xlu0 %v3265
    %v3267 = vpop.xlane.xlu0 %3266
    %v3268 = vmul.f32 %v3264, %v1423
    %v3269 = vmul.f32 %v3267, %v1423
    %v3270 = vsub.f32 %v3258, %v3268
    %v3271 = vsub.f32 %v3259, %v3269
    %v3272 = vmul.f32 %v3270, %v3270
    %v3273 = vmul.f32 %v3271, %v3271
    %v3274 = vsel %vm172, %v3272, 0.0
    %3275 = vadd.xlane.f32.xlu0 %v3274
    %v3276 = vpop.xlane.xlu0 %3275
    %v3277 = vsel %vm172, %v3273, 0.0
    %3278 = vadd.xlane.f32.xlu0 %v3277
    %v3279 = vpop.xlane.xlu0 %3278
    %v3280 = vmul.f32 %v3276, %v1423
    %v3281 = vmul.f32 %v3279, %v1423
    %v3282 = vadd.f32 %v3280, 1e-05
    %v3283 = vadd.f32 %v3281, 1e-05
    %v3284 = vrsqrt.pop %v3282
    %v3285 = vrsqrt.pop %v3283
    %v3286 = vmul.f32 %v3270, %v3284
    %v3287 = vmul.f32 %v3271, %v3285
    %v3289 = vlaneseq
    %v3290 = vshrl.u32 %v3289, 7
    %v3291 = vsub.s32 0, %v3290
    %v3292 = vrot.slane %v3260, %v3291
    %v3294 = vmul.f32 %v3286, %v3292
    %v3295 = vmul.f32 %v3287, %v3292
    %v3297 = vlaneseq
    %v3298 = vshrl.u32 %v3297, 7
    %v3299 = vsub.s32 0, %v3298
    %v3300 = vrot.slane %v3261, %v3299
    %v3302 = vadd.f32 %v3294, %v3300
    %v3303 = vadd.f32 %v3295, %v3300
    %3304 = vst.msk [vmem:[#allocation2] sm:$0xff] %vm172, %v3302
    %3305 = vst.msk [vmem:[#allocation2 + $0x8] sm:$0xff] %vm172, %v3303
    // Predicated region
    $region78: #{tpu_custom_call.1} parent=1 // pred_check
      _
    $region79: #{tpu_custom_call.1} parent=1 // pred_check_branch
      %3307 = sbr.rel (0) target = $region81
    $region80: #{tpu_custom_call.1} parent=1 // pred_region
      %s3309 = ssub.s32 256, 256
      %3310 = vsyncadd [#allocation3], %s3309
      %s3311 = sshll.u32 [#allocation2], 4
      %s3312 = int_to_ptr.vmem [resolvable:$true] %s3311
      %3317 = dma.vmem_to_hbm [thread:$0]  %s3312, 256, %s19, [#allocation3], 128, 128, 8
    $region81: #{tpu_custom_call.1} parent=1 // pred_fallthru
      _
    // Predicated region
    $region82: #{tpu_custom_call.1} parent=1 // pred_check
      _
    $region83: #{tpu_custom_call.1} parent=1 // pred_check_branch
      %3319 = sbr.rel (0) target = $region85
    $region84: #{tpu_custom_call.1} parent=1 // pred_region
      %3320 = dma.done [#allocation3], 256
    $region85: #{tpu_custom_call.1} parent=1 // pred_fallthru
      _
    %3321 = vsyncpa [#allocation3], 1

</llo_original>
